<compile_context>
chip_gen: v7x
topology: tpu7x:2x2x1
jax: 0.10.0
libtpu: 0.0.40
codegen_flags: <defaults>
</compile_context>

<pallas_src>
import functools

import jax
import jax.numpy as jnp
from jax import lax
from jax.experimental import pallas as pl
from jax.experimental.pallas import tpu as pltpu

_LANE = 128     # flat pixel axis padded to a multiple of this
_CH_ALIGN = 16  # channel axes padded to a multiple of this (bf16 tile friendly)


def _round_up(n, m):
    return ((n + m - 1) // m) * m


# ----------------------------------------------------------------------------
# Pallas kernel: tap-accumulated matmul with fused shift / residual / ReLU
# ----------------------------------------------------------------------------
def _tapconv_kernel(*refs, offsets, relu, with_identity):
    if with_identity:
        x_ref, w_ref, shift_ref, id_ref, o_ref = refs
    else:
        x_ref, w_ref, shift_ref, o_ref = refs
        id_ref = None
    L = o_ref.shape[-1]
    acc = None
    for t, off in enumerate(offsets):
        contrib = jnp.dot(w_ref[t], x_ref[:, off:off + L],
                          preferred_element_type=jnp.float32)
        acc = contrib if acc is None else acc + contrib
    out = acc + shift_ref[...]          # (Cout, 1) broadcast along lanes
    if id_ref is not None:
        out = out + id_ref[...]          # fused residual add
    if relu:
        out = jnp.maximum(out, 0.0)
    o_ref[...] = out


def tapconv(x, w_taps, taps, shift, *, pad, out_hw, relu, identity=None):
    """One fused conv+BN(+residual)(+ReLU) stage as a single Pallas call.

    x:        (Cin, B, H, W) f32, channel-major.
    w_taps:   (ntaps, CoutS, Cin) f32 (BN scale already folded in).
    taps:     list of (dh, dw) spatial offsets into the padded grid.
    shift:    (CoutS,) f32 additive epilogue term (bias / BN folded).
    pad:      symmetric spatial zero padding applied to x.
    out_hw:   (Ho, Wo) valid output window of the padded grid.
    identity: optional (CoutS, B, Ho, Wo) f32 added before the ReLU.
    returns   (CoutS, B, Ho, Wo) f32.
    """
    cin, B, H, W = x.shape
    ntaps, couts, cin_w = w_taps.shape
    assert cin_w == cin and len(taps) == ntaps
    Ho, Wo = out_hw
    Hp, Wp = H + 2 * pad, W + 2 * pad
    if pad:
        x = jnp.pad(x, ((0, 0), (0, 0), (pad, pad), (pad, pad)))

    mflat = B * Hp * Wp
    L = _round_up(mflat, _LANE)
    offsets = tuple(dh * Wp + dw for dh, dw in taps)
    min_cols = _round_up(L + max(offsets), _LANE)
    cin_p = _round_up(cin, _CH_ALIGN)
    cout_p = _round_up(couts, _CH_ALIGN)

    x_flat = x.reshape(cin, mflat).astype(jnp.float32)
    x_flat = jnp.pad(x_flat, ((0, cin_p - cin), (0, min_cols - mflat)))
    x_flat = x_flat.astype(jnp.bfloat16)

    w_p = jnp.pad(w_taps.astype(jnp.float32),
                  ((0, 0), (0, cout_p - couts), (0, cin_p - cin)))
    w_p = w_p.astype(jnp.bfloat16)
    shift_p = jnp.pad(shift.astype(jnp.float32), (0, cout_p - couts))
    shift_p = shift_p.reshape(cout_p, 1)

    args = [x_flat, w_p, shift_p]
    if identity is not None:
        idp = jnp.pad(identity.astype(jnp.float32),
                      ((0, cout_p - couts), (0, 0),
                       (0, Hp - Ho), (0, Wp - Wo)))
        idp = idp.reshape(cout_p, mflat)
        idp = jnp.pad(idp, ((0, 0), (0, L - mflat)))
        args.append(idp)

    vmem = pl.BlockSpec(memory_space=pltpu.MemorySpace.VMEM)
    out = pl.pallas_call(
        functools.partial(_tapconv_kernel, offsets=offsets, relu=relu,
                          with_identity=identity is not None),
        out_shape=jax.ShapeDtypeStruct((cout_p, L), jnp.float32),
        in_specs=[vmem] * len(args),
        out_specs=vmem,
    )(*args)

    out = out[:couts, :mflat].reshape(couts, B, Hp, Wp)
    return out[:, :, :Ho, :Wo]


# ----------------------------------------------------------------------------
# Weight / BN preparation (wrapper-side algebra, no extra kernel work)
# ----------------------------------------------------------------------------
def _fold_bn(bn, bias, cout):
    gamma, beta, mean, var = bn
    s = gamma * lax.rsqrt(var + 1e-5)
    b = bias if bias is not None else jnp.zeros((cout,), jnp.float32)
    return s, beta + (b - mean) * s


def _conv_taps(w, scale):
    """Conv2d weight (Cout, Cin, kh, kw) -> (ntaps, Cout, Cin) + tap offsets."""
    cout, cin, kh, kw = w.shape
    wf = w.astype(jnp.float32) * scale[:, None, None, None]
    taps = [(di, dj) for di in range(kh) for dj in range(kw)]
    w_taps = jnp.stack([wf[:, :, di, dj] for di, dj in taps], axis=0)
    return w_taps, taps


def _convT_phase_taps(w, scale):
    """ConvTranspose2d(k=4,s=2,p=1) weight (Cin, Cout, 4, 4) -> stacked-phase
    stride-1 conv: 9 taps over the 1-padded input; output row
    (rh*2+rw)*Cout + co holds the (2q+rh, 2p+rw) output phase."""
    cin, cout, kh, kw = w.shape
    wf = w.astype(jnp.float32) * scale[None, :, None, None]
    taps = [(dh, dw) for dh in range(kh - 1) for dw in range(kw - 1)]
    zeros = jnp.zeros((cout, cin), jnp.float32)
    blocks = []
    for dh, dw in taps:
        rows = []
        for rh in range(2):
            for rw in range(2):
                a, c = dh - rh, dw - rw
                if 0 <= a < 2 and 0 <= c < 2:
                    rows.append(wf[:, :, 3 - rh - 2 * a, 3 - rw - 2 * c].T)
                else:
                    rows.append(zeros)
        blocks.append(jnp.concatenate(rows, axis=0))     # (4*Cout, Cin)
    return jnp.stack(blocks, axis=0), taps               # (9, 4*Cout, Cin)


def _interleave_phases(y, cout, B, H, W):
    """(4*Cout, B, H, W) stacked phases -> (Cout, B, 2H, 2W)."""
    y = y.reshape(2, 2, cout, B, H, W)
    y = jnp.transpose(y, (2, 3, 4, 0, 5, 1))
    return y.reshape(cout, B, 2 * H, 2 * W)


# ----------------------------------------------------------------------------
# Conv stage wrappers
# ----------------------------------------------------------------------------
def conv1x1_bn(x, w, bias, bn, *, relu, identity=None):
    cout = w.shape[0]
    s, shift = _fold_bn(bn, bias, cout)
    w_taps, taps = _conv_taps(w, s)
    _, B, H, W = x.shape
    return tapconv(x, w_taps, taps, shift, pad=0, out_hw=(H, W),
                   relu=relu, identity=identity)


def conv_bn(x, w, bias, bn, *, stride, padding, relu):
    """Conv2d(k, stride, padding) + BN (+ReLU)."""
    cout, cin, kh, kw = w.shape
    s, shift = _fold_bn(bn, bias, cout)
    w_taps, taps = _conv_taps(w, s)
    _, B, H, W = x.shape
    ho_full = H + 2 * padding - kh + 1
    wo_full = W + 2 * padding - kw + 1
    y = tapconv(x, w_taps, taps, shift, pad=padding,
                out_hw=(ho_full, wo_full), relu=relu)
    if stride > 1:
        # TODO(synk): stride>1 computes the stride-1 map then subsamples
        # (extra MACs); negligible at these sizes.
        ho = (H + 2 * padding - kh) // stride + 1
        wo = (W + 2 * padding - kw) // stride + 1
        y = y[:, :, ::stride, ::stride][:, :, :ho, :wo]
    return y


def convT_bn(x, w, bias, bn, *, relu):
    """ConvTranspose2d(k=4, s=2, p=1) + BN (+ReLU), phase-decomposed."""
    cin, cout, _, _ = w.shape
    s, shift = _fold_bn(bn, bias, cout)
    w_taps, taps = _convT_phase_taps(w, s)
    shift_stacked = jnp.tile(shift, 4)
    _, B, H, W = x.shape
    y = tapconv(x, w_taps, taps, shift_stacked, pad=1, out_hw=(H, W), relu=relu)
    return _interleave_phases(y, cout, B, H, W)


# ----------------------------------------------------------------------------
# Bottleneck forward (Pallas path)
# ----------------------------------------------------------------------------
def bottleneck_forward(x_nchw, p):
    x = jnp.transpose(x_nchw, (1, 0, 2, 3)).astype(jnp.float32)  # (Cin,B,H,W)

    # conv1 (1x1) + bn1 + relu
    h = conv1x1_bn(x, p['conv1_w'], None, p['bn1'], relu=True)

    # conv2 + bn2 + relu
    if p['stride'] > 0:
        h = conv_bn(h, p['conv2_w'], None, p['bn2'],
                    stride=p['stride'], padding=1, relu=True)
    else:
        h = convT_bn(h, p['conv2_w'], None, p['bn2'], relu=True)

    # residual branch
    r = p['res']
    if r is None:
        identity = x
    elif r['kind'] == 'convT':
        identity = convT_bn(x, r['w'], r['b'], r['bn'], relu=False)
    elif r['kind'] == 'conv_s2':
        identity = conv_bn(x, r['w'], r['b'], r['bn'],
                           stride=2, padding=1, relu=False)
    else:  # 'conv1x1'
        identity = conv1x1_bn(x, r['w'], None, r['bn'], relu=False)

    # conv3 (1x1) + bn3 + residual add + final ReLU fused into one epilogue
    out = conv1x1_bn(h, p['conv3_w'], None, p['bn3'], relu=True,
                     identity=identity)
    return jnp.transpose(out, (1, 0, 2, 3))                      # NCHW


# ----------------------------------------------------------------------------
# Pure-JAX reference (same bf16 operand quantization, for correctness check)
# ----------------------------------------------------------------------------
def _ref_conv(x, w, scale, shift, *, stride=1, padding=0,
              lhs_dilation=None, relu=False, identity=None):
    wf = (w.astype(jnp.float32) * scale[:, None, None, None]).astype(jnp.bfloat16)
    y = lax.conv_general_dilated(
        x.astype(jnp.bfloat16), wf, (stride, stride),
        [(padding, padding), (padding, padding)],
        lhs_dilation=lhs_dilation,
        dimension_numbers=("NCHW", "OIHW", "NCHW"),
        preferred_element_type=jnp.float32)
    y = y + shift.reshape(1, -1, 1, 1)
    if identity is not None:
        y = y + identity
    return jnp.maximum(y, 0.0) if relu else y


def reference_bottleneck(x, p):
    width = p['conv1_w'].shape[0]
    outp = p['conv3_w'].shape[0]

    s1, sh1 = _fold_bn(p['bn1'], None, width)
    h = _ref_conv(x, p['conv1_w'], s1, sh1, relu=True)

    s2, sh2 = _fold_bn(p['bn2'], None, width)
    if p['stride'] > 0:
        h = _ref_conv(h, p['conv2_w'], s2, sh2, stride=p['stride'], padding=1,
                      relu=True)
    else:
        weq = jnp.flip(jnp.transpose(p['conv2_w'], (1, 0, 2, 3)), (2, 3))
        h = _ref_conv(h, weq, s2, sh2, padding=2, lhs_dilation=(2, 2), relu=True)

    r = p['res']
    if r is None:
        identity = x.astype(jnp.float32)
    elif r['kind'] == 'convT':
        sr, shr = _fold_bn(r['bn'], r['b'], outp)
        weq = jnp.flip(jnp.transpose(r['w'], (1, 0, 2, 3)), (2, 3))
        identity = _ref_conv(x, weq, sr, shr, padding=2, lhs_dilation=(2, 2))
    elif r['kind'] == 'conv_s2':
        sr, shr = _fold_bn(r['bn'], r['b'], outp)
        identity = _ref_conv(x, r['w'], sr, shr, stride=2, padding=1)
    else:
        sr, shr = _fold_bn(r['bn'], None, outp)
        identity = _ref_conv(x, r['w'], sr, shr)

    s3, sh3 = _fold_bn(p['bn3'], None, outp)
    return _ref_conv(h, p['conv3_w'], s3, sh3, relu=True, identity=identity)


# ----------------------------------------------------------------------------
# Deterministic synthetic parameters (PyTorch layout conventions)
# ----------------------------------------------------------------------------
class _ParamGen:
    def __init__(self, key):
        self._key = key

    def _next(self):
        self._key, k = jax.random.split(self._key)
        return k

    def normal(self, shape, std=1.0):
        return std * jax.random.normal(self._next(), shape, jnp.float32)


def _init_bn(pg, c):
    gamma = 1.0 + 0.05 * pg.normal((c,))
    beta = 0.05 * pg.normal((c,))
    mean = 0.05 * pg.normal((c,))
    var = 0.9 + 0.1 * jnp.abs(pg.normal((c,)))
    return (gamma, beta, mean, var)


def init_bottleneck(key, inplanes, outplanes, stride):
    pg = _ParamGen(key)
    width = min(inplanes, outplanes, 32) // 2
    p = {'stride': stride,
         'conv1_w': pg.normal((width, inplanes, 1, 1), std=inplanes ** -0.5),
         'bn1': _init_bn(pg, width)}
    if stride > 0:
        p['conv2_w'] = pg.normal((width, width, 3, 3), std=(9 * width) ** -0.5)
    else:
        # ConvTranspose2d weight layout: (Cin, Cout, 4, 4)
        p['conv2_w'] = pg.normal((width, width, 4, 4), std=(4 * width) ** -0.5)
    p['bn2'] = _init_bn(pg, width)
    p['conv3_w'] = pg.normal((outplanes, width, 1, 1), std=width ** -0.5)
    p['bn3'] = _init_bn(pg, outplanes)
    if stride > 1:
        p['res'] = {'kind': 'conv_s2',
                    'w': pg.normal((outplanes, inplanes, 4, 4),
                                   std=(16 * inplanes) ** -0.5),
                    'b': 0.1 * pg.normal((outplanes,)),
                    'bn': _init_bn(pg, outplanes)}
    elif stride < -1:
        p['res'] = {'kind': 'convT',
                    'w': pg.normal((inplanes, outplanes, 4, 4),
                                   std=(4 * inplanes) ** -0.5),
                    'b': 0.1 * pg.normal((outplanes,)),
                    'bn': _init_bn(pg, outplanes)}
    elif inplanes != outplanes:
        p['res'] = {'kind': 'conv1x1',
                    'w': pg.normal((outplanes, inplanes, 1, 1),
                                   std=inplanes ** -0.5),
                    'b': None,
                    'bn': _init_bn(pg, outplanes)}
    else:
        p['res'] = None
    return p


# ----------------------------------------------------------------------------
if __name__ == "__main__":
    root = jax.random.PRNGKey(0)
    xkey, *pkeys = jax.random.split(root, 5)

    # Input in PyTorch NCHW convention: (B=2, C=8, H=16, W=16)
    x = jax.random.normal(xkey, (2, 8, 16, 16), jnp.float32)

    # Exercise every Bottleneck branch:
    #   conv2 in {ConvTranspose 4x4 s2, 3x3 s1, 3x3 s2}
    #   residual in {ConvTranspose, identity, strided 4x4 conv, 1x1 conv}
    configs = [(8, 8, -2), (8, 8, 1), (8, 16, 2), (8, 16, 1)]

    for (inp, outp, stride), k in zip(configs, pkeys):
        params = init_bottleneck(k, inp, outp, stride)
        fwd = jax.jit(lambda xx, p=params: bottleneck_forward(xx, p))
        out = jax.block_until_ready(fwd(x))
        ref = jax.block_until_ready(reference_bottleneck(x, params))
        assert out.shape == ref.shape, (stride, out.shape, ref.shape)
        assert bool(jnp.all(jnp.isfinite(out))), stride
        err = float(jnp.max(jnp.abs(out - ref)))
        assert err < 5e-2, (stride, err)

    print("KERNEL_OK")
</pallas_src>

<mosaic_0001>
module attributes {stable_mosaic.version = 11 : i64} {
  func.func @_tapconv_kernel(%arg0: memref<16x512xbf16, #tpu.memory_space<vmem>>, %arg1: memref<1x16x16xbf16, #tpu.memory_space<vmem>>, %arg2: memref<16x1xf32, #tpu.memory_space<vmem>>, %arg3: memref<16x512xf32, #tpu.memory_space<vmem>>) attributes {dimension_semantics = [], scalar_prefetch = 0 : i64, scratch_operands = 0 : i64, tpu.core_type = #tpu.core_type<tc>} {
    %c0 = arith.constant 0 : index
    %c0_0 = arith.constant 0 : index
    %c0_1 = arith.constant 0 : index
    %0 = vector.load %arg1[%c0, %c0_0, %c0_1] : memref<1x16x16xbf16, #tpu.memory_space<vmem>>, vector<1x16x16xbf16>
    %1 = vector.shape_cast %0 : vector<1x16x16xbf16> to vector<16x16xbf16>
    %c0_2 = arith.constant 0 : index
    %c0_3 = arith.constant 0 : index
    %2 = vector.load %arg0[%c0_2, %c0_3] : memref<16x512xbf16, #tpu.memory_space<vmem>>, vector<16x512xbf16>
    %cst = arith.constant dense<0.000000e+00> : vector<16x512xf32>
    %3 = tpu.matmul %1, %2, %cst {dimension_numbers = #tpu.dot_dimension_numbers<[1], [0], [0], [1], [0, 0, 1, 1], [], []>} : vector<16x16xbf16>, vector<16x512xbf16>, vector<16x512xf32> -> vector<16x512xf32>
    %c0_4 = arith.constant 0 : index
    %c0_5 = arith.constant 0 : index
    %4 = vector.load %arg2[%c0_4, %c0_5] : memref<16x1xf32, #tpu.memory_space<vmem>>, vector<16x1xf32>
    %5 = vector.broadcast %4 : vector<16x1xf32> to vector<16x512xf32>
    %6 = arith.addf %3, %5 : vector<16x512xf32>
    %cst_6 = arith.constant 0.000000e+00 : f32
    %7 = vector.broadcast %cst_6 : f32 to vector<16x512xf32>
    %8 = arith.maximumf %6, %7 : vector<16x512xf32>
    %c0_7 = arith.constant 0 : index
    %c0_8 = arith.constant 0 : index
    %9 = vector.load %arg3[%c0_7, %c0_8] : memref<16x512xf32, #tpu.memory_space<vmem>>, vector<16x512xf32>
    tpu.vector_store %arg3[%c0_7, %c0_8], %8 {strides = array<i32>} : memref<16x512xf32, #tpu.memory_space<vmem>>, vector<16x512xf32>,
    return
  }
}

module attributes {stable_mosaic.version = 11 : i64} {
  func.func @_tapconv_kernel(%arg0: memref<16x896xbf16, #tpu.memory_space<vmem>>, %arg1: memref<9x16x16xbf16, #tpu.memory_space<vmem>>, %arg2: memref<16x1xf32, #tpu.memory_space<vmem>>, %arg3: memref<16x768xf32, #tpu.memory_space<vmem>>) attributes {dimension_semantics = [], scalar_prefetch = 0 : i64, scratch_operands = 0 : i64, tpu.core_type = #tpu.core_type<tc>} {
    %c0 = arith.constant 0 : index
    %c0_0 = arith.constant 0 : index
    %c0_1 = arith.constant 0 : index
    %0 = vector.load %arg1[%c0, %c0_0, %c0_1] : memref<9x16x16xbf16, #tpu.memory_space<vmem>>, vector<1x16x16xbf16>
    %1 = vector.shape_cast %0 : vector<1x16x16xbf16> to vector<16x16xbf16>
    %c0_2 = arith.constant 0 : index
    %c0_3 = arith.constant 0 : index
    %2 = vector.load %arg0[%c0_2, %c0_3] : memref<16x896xbf16, #tpu.memory_space<vmem>>, vector<16x768xbf16>
    %cst = arith.constant dense<0.000000e+00> : vector<16x768xf32>
    %3 = tpu.matmul %1, %2, %cst {dimension_numbers = #tpu.dot_dimension_numbers<[1], [0], [0], [1], [0, 0, 1, 1], [], []>} : vector<16x16xbf16>, vector<16x768xbf16>, vector<16x768xf32> -> vector<16x768xf32>
    %c1 = arith.constant 1 : index
    %c0_4 = arith.constant 0 : index
    %c0_5 = arith.constant 0 : index
    %4 = vector.load %arg1[%c1, %c0_4, %c0_5] : memref<9x16x16xbf16, #tpu.memory_space<vmem>>, vector<1x16x16xbf16>
    %5 = vector.shape_cast %4 : vector<1x16x16xbf16> to vector<16x16xbf16>
    %c0_6 = arith.constant 0 : index
    %c1_7 = arith.constant 1 : index
    %6 = vector.load %arg0[%c0_6, %c1_7] : memref<16x896xbf16, #tpu.memory_space<vmem>>, vector<16x768xbf16>
    %cst_8 = arith.constant dense<0.000000e+00> : vector<16x768xf32>
    %7 = tpu.matmul %5, %6, %cst_8 {dimension_numbers = #tpu.dot_dimension_numbers<[1], [0], [0], [1], [0, 0, 1, 1], [], []>} : vector<16x16xbf16>, vector<16x768xbf16>, vector<16x768xf32> -> vector<16x768xf32>
    %8 = arith.addf %3, %7 : vector<16x768xf32>
    %c2 = arith.constant 2 : index
    %c0_9 = arith.constant 0 : index
    %c0_10 = arith.constant 0 : index
    %9 = vector.load %arg1[%c2, %c0_9, %c0_10] : memref<9x16x16xbf16, #tpu.memory_space<vmem>>, vector<1x16x16xbf16>
    %10 = vector.shape_cast %9 : vector<1x16x16xbf16> to vector<16x16xbf16>
    %c0_11 = arith.constant 0 : index
    %c2_12 = arith.constant 2 : index
    %11 = vector.load %arg0[%c0_11, %c2_12] : memref<16x896xbf16, #tpu.memory_space<vmem>>, vector<16x768xbf16>
    %cst_13 = arith.constant dense<0.000000e+00> : vector<16x768xf32>
    %12 = tpu.matmul %10, %11, %cst_13 {dimension_numbers = #tpu.dot_dimension_numbers<[1], [0], [0], [1], [0, 0, 1, 1], [], []>} : vector<16x16xbf16>, vector<16x768xbf16>, vector<16x768xf32> -> vector<16x768xf32>
    %13 = arith.addf %8, %12 : vector<16x768xf32>
    %c3 = arith.constant 3 : index
    %c0_14 = arith.constant 0 : index
    %c0_15 = arith.constant 0 : index
    %14 = vector.load %arg1[%c3, %c0_14, %c0_15] : memref<9x16x16xbf16, #tpu.memory_space<vmem>>, vector<1x16x16xbf16>
    %15 = vector.shape_cast %14 : vector<1x16x16xbf16> to vector<16x16xbf16>
    %c0_16 = arith.constant 0 : index
    %c18 = arith.constant 18 : index
    %16 = vector.load %arg0[%c0_16, %c18] : memref<16x896xbf16, #tpu.memory_space<vmem>>, vector<16x768xbf16>
    %cst_17 = arith.constant dense<0.000000e+00> : vector<16x768xf32>
    %17 = tpu.matmul %15, %16, %cst_17 {dimension_numbers = #tpu.dot_dimension_numbers<[1], [0], [0], [1], [0, 0, 1, 1], [], []>} : vector<16x16xbf16>, vector<16x768xbf16>, vector<16x768xf32> -> vector<16x768xf32>
    %18 = arith.addf %13, %17 : vector<16x768xf32>
    %c4 = arith.constant 4 : index
    %c0_18 = arith.constant 0 : index
    %c0_19 = arith.constant 0 : index
    %19 = vector.load %arg1[%c4, %c0_18, %c0_19] : memref<9x16x16xbf16, #tpu.memory_space<vmem>>, vector<1x16x16xbf16>
    %20 = vector.shape_cast %19 : vector<1x16x16xbf16> to vector<16x16xbf16>
    %c0_20 = arith.constant 0 : index
    %c19 = arith.constant 19 : index
    %21 = vector.load %arg0[%c0_20, %c19] : memref<16x896xbf16, #tpu.memory_space<vmem>>, vector<16x768xbf16>
    %cst_21 = arith.constant dense<0.000000e+00> : vector<16x768xf32>
    %22 = tpu.matmul %20, %21, %cst_21 {dimension_numbers = #tpu.dot_dimension_numbers<[1], [0], [0], [1], [0, 0, 1, 1], [], []>} : vector<16x16xbf16>, vector<16x768xbf16>, vector<16x768xf32> -> vector<16x768xf32>
    %23 = arith.addf %18, %22 : vector<16x768xf32>
    %c5 = arith.constant 5 : index
    %c0_22 = arith.constant 0 : index
    %c0_23 = arith.constant 0 : index
    %24 = vector.load %arg1[%c5, %c0_22, %c0_23] : memref<9x16x16xbf16, #tpu.memory_space<vmem>>, vector<1x16x16xbf16>
    %25 = vector.shape_cast %24 : vector<1x16x16xbf16> to vector<16x16xbf16>
    %c0_24 = arith.constant 0 : index
    %c20 = arith.constant 20 : index
    %26 = vector.load %arg0[%c0_24, %c20] : memref<16x896xbf16, #tpu.memory_space<vmem>>, vector<16x768xbf16>
    %cst_25 = arith.constant dense<0.000000e+00> : vector<16x768xf32>
    %27 = tpu.matmul %25, %26, %cst_25 {dimension_numbers = #tpu.dot_dimension_numbers<[1], [0], [0], [1], [0, 0, 1, 1], [], []>} : vector<16x16xbf16>, vector<16x768xbf16>, vector<16x768xf32> -> vector<16x768xf32>
    %28 = arith.addf %23, %27 : vector<16x768xf32>
    %c6 = arith.constant 6 : index
    %c0_26 = arith.constant 0 : index
    %c0_27 = arith.constant 0 : index
    %29 = vector.load %arg1[%c6, %c0_26, %c0_27] : memref<9x16x16xbf16, #tpu.memory_space<vmem>>, vector<1x16x16xbf16>
    %30 = vector.shape_cast %29 : vector<1x16x16xbf16> to vector<16x16xbf16>
    %c0_28 = arith.constant 0 : index
    %c36 = arith.constant 36 : index
    %31 = vector.load %arg0[%c0_28, %c36] : memref<16x896xbf16, #tpu.memory_space<vmem>>, vector<16x768xbf16>
    %cst_29 = arith.constant dense<0.000000e+00> : vector<16x768xf32>
    %32 = tpu.matmul %30, %31, %cst_29 {dimension_numbers = #tpu.dot_dimension_numbers<[1], [0], [0], [1], [0, 0, 1, 1], [], []>} : vector<16x16xbf16>, vector<16x768xbf16>, vector<16x768xf32> -> vector<16x768xf32>
    %33 = arith.addf %28, %32 : vector<16x768xf32>
    %c7 = arith.constant 7 : index
    %c0_30 = arith.constant 0 : index
    %c0_31 = arith.constant 0 : index
    %34 = vector.load %arg1[%c7, %c0_30, %c0_31] : memref<9x16x16xbf16, #tpu.memory_space<vmem>>, vector<1x16x16xbf16>
    %35 = vector.shape_cast %34 : vector<1x16x16xbf16> to vector<16x16xbf16>
    %c0_32 = arith.constant 0 : index
    %c37 = arith.constant 37 : index
    %36 = vector.load %arg0[%c0_32, %c37] : memref<16x896xbf16, #tpu.memory_space<vmem>>, vector<16x768xbf16>
    %cst_33 = arith.constant dense<0.000000e+00> : vector<16x768xf32>
    %37 = tpu.matmul %35, %36, %cst_33 {dimension_numbers = #tpu.dot_dimension_numbers<[1], [0], [0], [1], [0, 0, 1, 1], [], []>} : vector<16x16xbf16>, vector<16x768xbf16>, vector<16x768xf32> -> vector<16x768xf32>
    %38 = arith.addf %33, %37 : vector<16x768xf32>
    %c8 = arith.constant 8 : index
    %c0_34 = arith.constant 0 : index
    %c0_35 = arith.constant 0 : index
    %39 = vector.load %arg1[%c8, %c0_34, %c0_35] : memref<9x16x16xbf16, #tpu.memory_space<vmem>>, vector<1x16x16xbf16>
    %40 = vector.shape_cast %39 : vector<1x16x16xbf16> to vector<16x16xbf16>
    %c0_36 = arith.constant 0 : index
    %c38 = arith.constant 38 : index
    %41 = vector.load %arg0[%c0_36, %c38] : memref<16x896xbf16, #tpu.memory_space<vmem>>, vector<16x768xbf16>
    %cst_37 = arith.constant dense<0.000000e+00> : vector<16x768xf32>
    %42 = tpu.matmul %40, %41, %cst_37 {dimension_numbers = #tpu.dot_dimension_numbers<[1], [0], [0], [1], [0, 0, 1, 1], [], []>} : vector<16x16xbf16>, vector<16x768xbf16>, vector<16x768xf32> -> vector<16x768xf32>
    %43 = arith.addf %38, %42 : vector<16x768xf32>
    %c0_38 = arith.constant 0 : index
    %c0_39 = arith.constant 0 : index
    %44 = vector.load %arg2[%c0_38, %c0_39] : memref<16x1xf32, #tpu.memory_space<vmem>>, vector<16x1xf32>
    %45 = vector.broadcast %44 : vector<16x1xf32> to vector<16x768xf32>
    %46 = arith.addf %43, %45 : vector<16x768xf32>
    %cst_40 = arith.constant 0.000000e+00 : f32
    %47 = vector.broadcast %cst_40 : f32 to vector<16x768xf32>
    %48 = arith.maximumf %46, %47 : vector<16x768xf32>
    %c0_41 = arith.constant 0 : index
    %c0_42 = arith.constant 0 : index
    %49 = vector.load %arg3[%c0_41, %c0_42] : memref<16x768xf32, #tpu.memory_space<vmem>>, vector<16x768xf32>
    tpu.vector_store %arg3[%c0_41, %c0_42], %48 {strides = array<i32>} : memref<16x768xf32, #tpu.memory_space<vmem>>, vector<16x768xf32>,
    return
  }
}

module attributes {stable_mosaic.version = 11 : i64} {
  func.func @_tapconv_kernel(%arg0: memref<16x896xbf16, #tpu.memory_space<vmem>>, %arg1: memref<9x32x16xbf16, #tpu.memory_space<vmem>>, %arg2: memref<32x1xf32, #tpu.memory_space<vmem>>, %arg3: memref<32x768xf32, #tpu.memory_space<vmem>>) attributes {dimension_semantics = [], scalar_prefetch = 0 : i64, scratch_operands = 0 : i64, tpu.core_type = #tpu.core_type<tc>} {
    %c0 = arith.constant 0 : index
    %c0_0 = arith.constant 0 : index
    %c0_1 = arith.constant 0 : index
    %0 = vector.load %arg1[%c0, %c0_0, %c0_1] : memref<9x32x16xbf16, #tpu.memory_space<vmem>>, vector<1x32x16xbf16>
    %1 = vector.shape_cast %0 : vector<1x32x16xbf16> to vector<32x16xbf16>
    %c0_2 = arith.constant 0 : index
    %c0_3 = arith.constant 0 : index
    %2 = vector.load %arg0[%c0_2, %c0_3] : memref<16x896xbf16, #tpu.memory_space<vmem>>, vector<16x768xbf16>
    %cst = arith.constant dense<0.000000e+00> : vector<32x768xf32>
    %3 = tpu.matmul %1, %2, %cst {dimension_numbers = #tpu.dot_dimension_numbers<[1], [0], [0], [1], [0, 0, 1, 1], [], []>} : vector<32x16xbf16>, vector<16x768xbf16>, vector<32x768xf32> -> vector<32x768xf32>
    %c1 = arith.constant 1 : index
    %c0_4 = arith.constant 0 : index
    %c0_5 = arith.constant 0 : index
    %4 = vector.load %arg1[%c1, %c0_4, %c0_5] : memref<9x32x16xbf16, #tpu.memory_space<vmem>>, vector<1x32x16xbf16>
    %5 = vector.shape_cast %4 : vector<1x32x16xbf16> to vector<32x16xbf16>
    %c0_6 = arith.constant 0 : index
    %c1_7 = arith.constant 1 : index
    %6 = vector.load %arg0[%c0_6, %c1_7] : memref<16x896xbf16, #tpu.memory_space<vmem>>, vector<16x768xbf16>
    %cst_8 = arith.constant dense<0.000000e+00> : vector<32x768xf32>
    %7 = tpu.matmul %5, %6, %cst_8 {dimension_numbers = #tpu.dot_dimension_numbers<[1], [0], [0], [1], [0, 0, 1, 1], [], []>} : vector<32x16xbf16>, vector<16x768xbf16>, vector<32x768xf32> -> vector<32x768xf32>
    %8 = arith.addf %3, %7 : vector<32x768xf32>
    %c2 = arith.constant 2 : index
    %c0_9 = arith.constant 0 : index
    %c0_10 = arith.constant 0 : index
    %9 = vector.load %arg1[%c2, %c0_9, %c0_10] : memref<9x32x16xbf16, #tpu.memory_space<vmem>>, vector<1x32x16xbf16>
    %10 = vector.shape_cast %9 : vector<1x32x16xbf16> to vector<32x16xbf16>
    %c0_11 = arith.constant 0 : index
    %c2_12 = arith.constant 2 : index
    %11 = vector.load %arg0[%c0_11, %c2_12] : memref<16x896xbf16, #tpu.memory_space<vmem>>, vector<16x768xbf16>
    %cst_13 = arith.constant dense<0.000000e+00> : vector<32x768xf32>
    %12 = tpu.matmul %10, %11, %cst_13 {dimension_numbers = #tpu.dot_dimension_numbers<[1], [0], [0], [1], [0, 0, 1, 1], [], []>} : vector<32x16xbf16>, vector<16x768xbf16>, vector<32x768xf32> -> vector<32x768xf32>
    %13 = arith.addf %8, %12 : vector<32x768xf32>
    %c3 = arith.constant 3 : index
    %c0_14 = arith.constant 0 : index
    %c0_15 = arith.constant 0 : index
    %14 = vector.load %arg1[%c3, %c0_14, %c0_15] : memref<9x32x16xbf16, #tpu.memory_space<vmem>>, vector<1x32x16xbf16>
    %15 = vector.shape_cast %14 : vector<1x32x16xbf16> to vector<32x16xbf16>
    %c0_16 = arith.constant 0 : index
    %c18 = arith.constant 18 : index
    %16 = vector.load %arg0[%c0_16, %c18] : memref<16x896xbf16, #tpu.memory_space<vmem>>, vector<16x768xbf16>
    %cst_17 = arith.constant dense<0.000000e+00> : vector<32x768xf32>
    %17 = tpu.matmul %15, %16, %cst_17 {dimension_numbers = #tpu.dot_dimension_numbers<[1], [0], [0], [1], [0, 0, 1, 1], [], []>} : vector<32x16xbf16>, vector<16x768xbf16>, vector<32x768xf32> -> vector<32x768xf32>
    %18 = arith.addf %13, %17 : vector<32x768xf32>
    %c4 = arith.constant 4 : index
    %c0_18 = arith.constant 0 : index
    %c0_19 = arith.constant 0 : index
    %19 = vector.load %arg1[%c4, %c0_18, %c0_19] : memref<9x32x16xbf16, #tpu.memory_space<vmem>>, vector<1x32x16xbf16>
    %20 = vector.shape_cast %19 : vector<1x32x16xbf16> to vector<32x16xbf16>
    %c0_20 = arith.constant 0 : index
    %c19 = arith.constant 19 : index
    %21 = vector.load %arg0[%c0_20, %c19] : memref<16x896xbf16, #tpu.memory_space<vmem>>, vector<16x768xbf16>
    %cst_21 = arith.constant dense<0.000000e+00> : vector<32x768xf32>
    %22 = tpu.matmul %20, %21, %cst_21 {dimension_numbers = #tpu.dot_dimension_numbers<[1], [0], [0], [1], [0, 0, 1, 1], [], []>} : vector<32x16xbf16>, vector<16x768xbf16>, vector<32x768xf32> -> vector<32x768xf32>
    %23 = arith.addf %18, %22 : vector<32x768xf32>
    %c5 = arith.constant 5 : index
    %c0_22 = arith.constant 0 : index
    %c0_23 = arith.constant 0 : index
    %24 = vector.load %arg1[%c5, %c0_22, %c0_23] : memref<9x32x16xbf16, #tpu.memory_space<vmem>>, vector<1x32x16xbf16>
    %25 = vector.shape_cast %24 : vector<1x32x16xbf16> to vector<32x16xbf16>
    %c0_24 = arith.constant 0 : index
    %c20 = arith.constant 20 : index
    %26 = vector.load %arg0[%c0_24, %c20] : memref<16x896xbf16, #tpu.memory_space<vmem>>, vector<16x768xbf16>
    %cst_25 = arith.constant dense<0.000000e+00> : vector<32x768xf32>
    %27 = tpu.matmul %25, %26, %cst_25 {dimension_numbers = #tpu.dot_dimension_numbers<[1], [0], [0], [1], [0, 0, 1, 1], [], []>} : vector<32x16xbf16>, vector<16x768xbf16>, vector<32x768xf32> -> vector<32x768xf32>
    %28 = arith.addf %23, %27 : vector<32x768xf32>
    %c6 = arith.constant 6 : index
    %c0_26 = arith.constant 0 : index
    %c0_27 = arith.constant 0 : index
    %29 = vector.load %arg1[%c6, %c0_26, %c0_27] : memref<9x32x16xbf16, #tpu.memory_space<vmem>>, vector<1x32x16xbf16>
    %30 = vector.shape_cast %29 : vector<1x32x16xbf16> to vector<32x16xbf16>
    %c0_28 = arith.constant 0 : index
    %c36 = arith.constant 36 : index
    %31 = vector.load %arg0[%c0_28, %c36] : memref<16x896xbf16, #tpu.memory_space<vmem>>, vector<16x768xbf16>
    %cst_29 = arith.constant dense<0.000000e+00> : vector<32x768xf32>
    %32 = tpu.matmul %30, %31, %cst_29 {dimension_numbers = #tpu.dot_dimension_numbers<[1], [0], [0], [1], [0, 0, 1, 1], [], []>} : vector<32x16xbf16>, vector<16x768xbf16>, vector<32x768xf32> -> vector<32x768xf32>
    %33 = arith.addf %28, %32 : vector<32x768xf32>
    %c7 = arith.constant 7 : index
    %c0_30 = arith.constant 0 : index
    %c0_31 = arith.constant 0 : index
    %34 = vector.load %arg1[%c7, %c0_30, %c0_31] : memref<9x32x16xbf16, #tpu.memory_space<vmem>>, vector<1x32x16xbf16>
    %35 = vector.shape_cast %34 : vector<1x32x16xbf16> to vector<32x16xbf16>
    %c0_32 = arith.constant 0 : index
    %c37 = arith.constant 37 : index
    %36 = vector.load %arg0[%c0_32, %c37] : memref<16x896xbf16, #tpu.memory_space<vmem>>, vector<16x768xbf16>
    %cst_33 = arith.constant dense<0.000000e+00> : vector<32x768xf32>
    %37 = tpu.matmul %35, %36, %cst_33 {dimension_numbers = #tpu.dot_dimension_numbers<[1], [0], [0], [1], [0, 0, 1, 1], [], []>} : vector<32x16xbf16>, vector<16x768xbf16>, vector<32x768xf32> -> vector<32x768xf32>
    %38 = arith.addf %33, %37 : vector<32x768xf32>
    %c8 = arith.constant 8 : index
    %c0_34 = arith.constant 0 : index
    %c0_35 = arith.constant 0 : index
    %39 = vector.load %arg1[%c8, %c0_34, %c0_35] : memref<9x32x16xbf16, #tpu.memory_space<vmem>>, vector<1x32x16xbf16>
    %40 = vector.shape_cast %39 : vector<1x32x16xbf16> to vector<32x16xbf16>
    %c0_36 = arith.constant 0 : index
    %c38 = arith.constant 38 : index
    %41 = vector.load %arg0[%c0_36, %c38] : memref<16x896xbf16, #tpu.memory_space<vmem>>, vector<16x768xbf16>
    %cst_37 = arith.constant dense<0.000000e+00> : vector<32x768xf32>
    %42 = tpu.matmul %40, %41, %cst_37 {dimension_numbers = #tpu.dot_dimension_numbers<[1], [0], [0], [1], [0, 0, 1, 1], [], []>} : vector<32x16xbf16>, vector<16x768xbf16>, vector<32x768xf32> -> vector<32x768xf32>
    %43 = arith.addf %38, %42 : vector<32x768xf32>
    %c0_38 = arith.constant 0 : index
    %c0_39 = arith.constant 0 : index
    %44 = vector.load %arg2[%c0_38, %c0_39] : memref<32x1xf32, #tpu.memory_space<vmem>>, vector<32x1xf32>
    %45 = vector.broadcast %44 : vector<32x1xf32> to vector<32x768xf32>
    %46 = arith.addf %43, %45 : vector<32x768xf32>
    %c0_40 = arith.constant 0 : index
    %c0_41 = arith.constant 0 : index
    %47 = vector.load %arg3[%c0_40, %c0_41] : memref<32x768xf32, #tpu.memory_space<vmem>>, vector<32x768xf32>
    tpu.vector_store %arg3[%c0_40, %c0_41], %46 {strides = array<i32>} : memref<32x768xf32, #tpu.memory_space<vmem>>, vector<32x768xf32>,
    return
  }
}

module attributes {stable_mosaic.version = 11 : i64} {
  func.func @_tapconv_kernel(%arg0: memref<16x2048xbf16, #tpu.memory_space<vmem>>, %arg1: memref<1x16x16xbf16, #tpu.memory_space<vmem>>, %arg2: memref<16x1xf32, #tpu.memory_space<vmem>>, %arg3: memref<16x2048xf32, #tpu.memory_space<vmem>>, %arg4: memref<16x2048xf32, #tpu.memory_space<vmem>>) attributes {dimension_semantics = [], scalar_prefetch = 0 : i64, scratch_operands = 0 : i64, tpu.core_type = #tpu.core_type<tc>} {
    %c0 = arith.constant 0 : index
    %c0_0 = arith.constant 0 : index
    %c0_1 = arith.constant 0 : index
    %0 = vector.load %arg1[%c0, %c0_0, %c0_1] : memref<1x16x16xbf16, #tpu.memory_space<vmem>>, vector<1x16x16xbf16>
    %1 = vector.shape_cast %0 : vector<1x16x16xbf16> to vector<16x16xbf16>
    %c0_2 = arith.constant 0 : index
    %c0_3 = arith.constant 0 : index
    %2 = vector.load %arg0[%c0_2, %c0_3] : memref<16x2048xbf16, #tpu.memory_space<vmem>>, vector<16x2048xbf16>
    %cst = arith.constant dense<0.000000e+00> : vector<16x2048xf32>
    %3 = tpu.matmul %1, %2, %cst {dimension_numbers = #tpu.dot_dimension_numbers<[1], [0], [0], [1], [0, 0, 1, 1], [], []>} : vector<16x16xbf16>, vector<16x2048xbf16>, vector<16x2048xf32> -> vector<16x2048xf32>
    %c0_4 = arith.constant 0 : index
    %c0_5 = arith.constant 0 : index
    %4 = vector.load %arg2[%c0_4, %c0_5] : memref<16x1xf32, #tpu.memory_space<vmem>>, vector<16x1xf32>
    %5 = vector.broadcast %4 : vector<16x1xf32> to vector<16x2048xf32>
    %6 = arith.addf %3, %5 : vector<16x2048xf32>
    %c0_6 = arith.constant 0 : index
    %c0_7 = arith.constant 0 : index
    %7 = vector.load %arg3[%c0_6, %c0_7] : memref<16x2048xf32, #tpu.memory_space<vmem>>, vector<16x2048xf32>
    %8 = arith.addf %6, %7 : vector<16x2048xf32>
    %cst_8 = arith.constant 0.000000e+00 : f32
    %9 = vector.broadcast %cst_8 : f32 to vector<16x2048xf32>
    %10 = arith.maximumf %8, %9 : vector<16x2048xf32>
    %c0_9 = arith.constant 0 : index
    %c0_10 = arith.constant 0 : index
    %11 = vector.load %arg4[%c0_9, %c0_10] : memref<16x2048xf32, #tpu.memory_space<vmem>>, vector<16x2048xf32>
    tpu.vector_store %arg4[%c0_9, %c0_10], %10 {strides = array<i32>} : memref<16x2048xf32, #tpu.memory_space<vmem>>, vector<16x2048xf32>,
    return
  }
}

</mosaic_0001>

<llo_original>
// kernel: tile.10
$region0: #{tile.10}
  #allocation0 [shape = 's32[1]{0}', space=sflag, size = 0x4, scoped, tag = 'scoped memory for tile.10']
  %s0 = inlined_call_operand.vmem [shape: f32[4], index: 0, kind: input, shape index: {}]
  %s1 = inlined_call_operand.vmem [shape: f32[4,4], index: 1, kind: output, shape index: {}]
  // Predicated region
  $region2: #{tile.10} parent=0 // pred_check
    _
  $region3: #{tile.10} parent=0 // pred_check_branch
    %3 = sbr.rel (0) target = $region5
  $region4: #{tile.10} parent=0 // pred_region
    _
  $region5: #{tile.10} parent=0 // pred_fallthru
    _
  %v4 = vld [vmem:[%s0] ss:$0 sm:$0xff]
  %5 = vst [vmem:[%s1] sm:$0xf] %v4

// kernel: tile.14
$region0: #{tile.14}
  #allocation0 [shape = 's32[1]{0}', space=sflag, size = 0x4, scoped, tag = 'scoped memory for tile.14']
  %s0 = inlined_call_operand.vmem [shape: f32[8], index: 0, kind: input, shape index: {}]
  %s1 = inlined_call_operand.vmem [shape: f32[4,8], index: 1, kind: output, shape index: {}]
  // Predicated region
  $region2: #{tile.14} parent=0 // pred_check
    _
  $region3: #{tile.14} parent=0 // pred_check_branch
    %3 = sbr.rel (0) target = $region5
  $region4: #{tile.14} parent=0 // pred_region
    _
  $region5: #{tile.14} parent=0 // pred_fallthru
    _
  %v4 = vld [vmem:[%s0] ss:$0 sm:$0xff]
  %5 = vst [vmem:[%s1] sm:$0xf] %v4

// kernel: _lambda_.4
$region0: #{_lambda_.4}
  #allocation0 [shape = 'u32[]', space=smem, size = 0x4, offset = 0x4, fixed_abs, tag = 'smem constant byte address 0x4 - core index']
  #allocation1 [shape = 'u32[144,128]{1,0:T(1,128)}', space=vmem, size = 0x12000, scoped, tag = 'internal scratch']
  %s0 = inlined_call_operand.vmem [shape: bf16[16,512], index: 0, kind: input, shape index: {}]
  %s1 = inlined_call_operand.vmem [shape: bf16[1,16,16], index: 1, kind: input, shape index: {}]
  %s2 = inlined_call_operand.vmem [shape: f32[16,1], index: 2, kind: input, shape index: {}]
  %s3 = inlined_call_operand.vmem [shape: f32[16,512], index: 3, kind: output, shape index: {}]
  %s4 = sld [smem:[#allocation0]]
  $region22: #{_lambda_.4} parent=0
    _
  %s6 = ssub.s32 1, %s4
  %s7 = scalar_select 0, %s6, %s4
  // Predicated region
  $region2: #{_lambda_.4} parent=0 // pred_check
    _
  $region3: #{_lambda_.4} parent=0 // pred_check_branch
    %9 = sbr.rel (0) target = $region5
  $region4: #{_lambda_.4} parent=0 // pred_region
    _
  $region5: #{_lambda_.4} parent=0 // pred_fallthru
    _
  // Predicated region
  $region6: #{_lambda_.4} parent=0 // pred_check
    _
  $region7: #{_lambda_.4} parent=0 // pred_check_branch
    %11 = sbr.rel (0) target = $region9
  $region8: #{_lambda_.4} parent=0 // pred_region
    _
  $region9: #{_lambda_.4} parent=0 // pred_fallthru
    _
  // Predicated region
  $region10: #{_lambda_.4} parent=0 // pred_check
    _
  $region11: #{_lambda_.4} parent=0 // pred_check_branch
    %13 = sbr.rel (0) target = $region13
  $region12: #{_lambda_.4} parent=0 // pred_region
    _
  $region13: #{_lambda_.4} parent=0 // pred_fallthru
    _
  %v15 = vld [vmem:[%s1] sm:$0xf]
  %v16 = vld [vmem:[%s1 + $0x4] sm:$0xf]
  %v17 = vld [vmem:[%s0] sm:$0xff]
  %v18 = vld [vmem:[%s0 + $0x8] sm:$0xff]
  %v19 = vld [vmem:[%s0 + $0x10] sm:$0xff]
  %v20 = vld [vmem:[%s0 + $0x18] sm:$0xff]
  %v21 = vld [vmem:[%s2] sm:$0xff]
  %v22 = vld [vmem:[%s2 + $0x8] sm:$0xff]
  %24 = vset.pattern.permute.xlu0 0
  %25 = vperm.xlu0 %24, %v21
  %v26 = vpop.permute.xlu0 %25
  %29 = vset.pattern.permute.xlu0 0
  %30 = vperm.xlu0 %29, %v22
  %v31 = vpop.permute.xlu0 %30
  %v35 = vunpack.c.l.b16 %v15
  %v36 = vunpack.c.l.b16 %v16
  %v37 = vpack.c.b16 %v36, %v35
  %v42 = vunpack.c.l.b16 %v17
  %v43 = vunpack.c.h.b16 %v17
  %v44 = vunpack.c.l.b16 %v18
  %v45 = vunpack.c.h.b16 %v18
  %v46 = vunpack.c.l.b16 %v19
  %v47 = vunpack.c.h.b16 %v19
  %v48 = vunpack.c.l.b16 %v20
  %v49 = vunpack.c.h.b16 %v20
  %v50 = vpack.c.b16 %v46, %v42
  %v51 = vpack.c.b16 %v47, %v43
  %v52 = vpack.c.b16 %v48, %v44
  %v53 = vpack.c.b16 %v49, %v45
  %vm58 = vcmask 130048
  %v60 = vsel %vm58, %v37, 0
  %62 = vmatprep.subr.bf16.mxu0 %v51
  %63 = vmatpush1.bf16.msra.mxu0 %v50
  %64 = vmatprep.subr.bf16.mxu0 0
  %65 = vmatpush1.bf16.msra.mxu0 0
  %66 = vmatprep.subr.bf16.mxu0 0
  %67 = vmatpush1.bf16.msra.mxu0 0
  %68 = vmatprep.subr.bf16.mxu0 0
  %69 = vmatpush1.bf16.msra.mxu0 0
  %70 = vmatprep.subr.bf16.mxu0 0
  %71 = vmatpush1.bf16.msra.mxu0 0
  %72 = vmatprep.subr.bf16.mxu0 0
  %73 = vmatpush1.bf16.msra.mxu0 0
  %74 = vmatprep.subr.bf16.mxu0 0
  %75 = vmatpush1.bf16.msra.mxu0 0
  %76 = vmatprep.subr.bf16.mxu0 0
  %77 = vmatpush1.bf16.msra.mxu0 0
  %78 = vmatprep.subr.bf16.mxu0 0
  %79 = vmatpush1.bf16.msra.mxu0 0
  %80 = vmatprep.subr.bf16.mxu0 0
  %81 = vmatpush1.bf16.msra.mxu0 0
  %82 = vmatprep.subr.bf16.mxu0 0
  %83 = vmatpush1.bf16.msra.mxu0 0
  %84 = vmatprep.subr.bf16.mxu0 0
  %85 = vmatpush1.bf16.msra.mxu0 0
  %86 = vmatprep.subr.bf16.mxu0 0
  %87 = vmatpush1.bf16.msra.mxu0 0
  %88 = vmatprep.subr.bf16.mxu0 0
  %89 = vmatpush1.bf16.msra.mxu0 0
  %90 = vmatprep.subr.bf16.mxu0 0
  %91 = vmatpush1.bf16.msra.mxu0 0
  %92 = vmatprep.subr.bf16.mxu0 0
  %93 = vmatpush1.bf16.msra.mxu0 0
  %94 = vmatprep.mubr.bf16.mxu0 0
  %95 = vmatmul.mubr.bf16.gmra.mrb[0].mxu0 %v60
  %v96 = vpop.f32.mrb[0].mxu0
  %v97 = vadd.f32 %v26, %v96
  %v98 = vpop.f32.mrb[0].mxu0
  %v99 = vadd.f32 %v26, %v98
  %v100 = vpop.f32.mrb[0].mxu0
  %v101 = vadd.f32 %v31, %v100
  %v102 = vpop.f32.mrb[0].mxu0
  %v103 = vadd.f32 %v31, %v102
  %104 = vdwg.mxu0
  %105 = vmatprep.subr.bf16.mxu0 %v53
  %106 = vmatpush1.bf16.msra.mxu0 %v52
  %107 = vmatprep.subr.bf16.mxu0 0
  %108 = vmatpush1.bf16.msra.mxu0 0
  %109 = vmatprep.subr.bf16.mxu0 0
  %110 = vmatpush1.bf16.msra.mxu0 0
  %111 = vmatprep.subr.bf16.mxu0 0
  %112 = vmatpush1.bf16.msra.mxu0 0
  %113 = vmatprep.subr.bf16.mxu0 0
  %114 = vmatpush1.bf16.msra.mxu0 0
  %115 = vmatprep.subr.bf16.mxu0 0
  %116 = vmatpush1.bf16.msra.mxu0 0
  %117 = vmatprep.subr.bf16.mxu0 0
  %118 = vmatpush1.bf16.msra.mxu0 0
  %119 = vmatprep.subr.bf16.mxu0 0
  %120 = vmatpush1.bf16.msra.mxu0 0
  %121 = vmatprep.subr.bf16.mxu0 0
  %122 = vmatpush1.bf16.msra.mxu0 0
  %123 = vmatprep.subr.bf16.mxu0 0
  %124 = vmatpush1.bf16.msra.mxu0 0
  %125 = vmatprep.subr.bf16.mxu0 0
  %126 = vmatpush1.bf16.msra.mxu0 0
  %127 = vmatprep.subr.bf16.mxu0 0
  %128 = vmatpush1.bf16.msra.mxu0 0
  %129 = vmatprep.subr.bf16.mxu0 0
  %130 = vmatpush1.bf16.msra.mxu0 0
  %131 = vmatprep.subr.bf16.mxu0 0
  %132 = vmatpush1.bf16.msra.mxu0 0
  %133 = vmatprep.subr.bf16.mxu0 0
  %134 = vmatpush1.bf16.msra.mxu0 0
  %135 = vmatprep.subr.bf16.mxu0 0
  %136 = vmatpush1.bf16.msra.mxu0 0
  %137 = vmatprep.mubr.bf16.mxu0 0
  %138 = vmatmul.mubr.bf16.gmra.mrb[0].mxu0 %v60
  %v139 = vpop.f32.mrb[0].mxu0
  %v140 = vadd.f32 %v26, %v139
  %v141 = vpop.f32.mrb[0].mxu0
  %v142 = vadd.f32 %v26, %v141
  %v143 = vpop.f32.mrb[0].mxu0
  %v144 = vadd.f32 %v31, %v143
  %v145 = vpop.f32.mrb[0].mxu0
  %v146 = vadd.f32 %v31, %v145
  %147 = vdwg.mxu0
  %v148 = vmax.f32 %v97, 0.0
  %v149 = vmax.f32 %v99, 0.0
  %v150 = vmax.f32 %v140, 0.0
  %v151 = vmax.f32 %v142, 0.0
  %v152 = vmax.f32 %v101, 0.0
  %v153 = vmax.f32 %v103, 0.0
  %v154 = vmax.f32 %v144, 0.0
  %v155 = vmax.f32 %v146, 0.0
  %156 = vst [vmem:[%s3] sm:$0xff] %v148
  %157 = vst [vmem:[%s3 + $0x8] sm:$0xff] %v149
  %158 = vst [vmem:[%s3 + $0x10] sm:$0xff] %v150
  %159 = vst [vmem:[%s3 + $0x18] sm:$0xff] %v151
  %160 = vst [vmem:[%s3 + $0x20] sm:$0xff] %v152
  %161 = vst [vmem:[%s3 + $0x28] sm:$0xff] %v153
  %162 = vst [vmem:[%s3 + $0x30] sm:$0xff] %v154
  %163 = vst [vmem:[%s3 + $0x38] sm:$0xff] %v155
  // Predicated region
  $region14: #{_lambda_.4} parent=0 // pred_check
    _
  $region15: #{_lambda_.4} parent=0 // pred_check_branch
    %165 = sbr.rel (0) target = $region17
  $region16: #{_lambda_.4} parent=0 // pred_region
    _
  $region17: #{_lambda_.4} parent=0 // pred_fallthru
    _
  // Predicated region
  $region18: #{_lambda_.4} parent=0 // pred_check
    _
  $region19: #{_lambda_.4} parent=0 // pred_check_branch
    %167 = sbr.rel (0) target = $region21
  $region20: #{_lambda_.4} parent=0 // pred_region
    _
  $region21: #{_lambda_.4} parent=0 // pred_fallthru
    _

// kernel: _lambda_.5
$region0: #{_lambda_.5}
  #allocation0 [shape = 'u32[]', space=smem, size = 0x4, offset = 0x4, fixed_abs, tag = 'smem constant byte address 0x4 - core index']
  #allocation1 [shape = 'u32[144,128]{1,0:T(1,128)}', space=vmem, size = 0x12000, scoped, tag = 'internal scratch']
  %s0 = inlined_call_operand.vmem [shape: bf16[16,896], index: 0, kind: input, shape index: {}]
  %s1 = inlined_call_operand.vmem [shape: bf16[9,16,16], index: 1, kind: input, shape index: {}]
  %s2 = inlined_call_operand.vmem [shape: f32[16,1], index: 2, kind: input, shape index: {}]
  %s3 = inlined_call_operand.vmem [shape: f32[16,768], index: 3, kind: output, shape index: {}]
  %s4 = sld [smem:[#allocation0]]
  $region22: #{_lambda_.5} parent=0
    _
  %s6 = ssub.s32 1, %s4
  %s7 = scalar_select 0, %s6, %s4
  // Predicated region
  $region2: #{_lambda_.5} parent=0 // pred_check
    _
  $region3: #{_lambda_.5} parent=0 // pred_check_branch
    %9 = sbr.rel (0) target = $region5
  $region4: #{_lambda_.5} parent=0 // pred_region
    _
  $region5: #{_lambda_.5} parent=0 // pred_fallthru
    _
  // Predicated region
  $region6: #{_lambda_.5} parent=0 // pred_check
    _
  $region7: #{_lambda_.5} parent=0 // pred_check_branch
    %11 = sbr.rel (0) target = $region9
  $region8: #{_lambda_.5} parent=0 // pred_region
    _
  $region9: #{_lambda_.5} parent=0 // pred_fallthru
    _
  // Predicated region
  $region10: #{_lambda_.5} parent=0 // pred_check
    _
  $region11: #{_lambda_.5} parent=0 // pred_check_branch
    %13 = sbr.rel (0) target = $region13
  $region12: #{_lambda_.5} parent=0 // pred_region
    _
  $region13: #{_lambda_.5} parent=0 // pred_fallthru
    _
  %v15 = vld [vmem:[%s1] sm:$0xf]
  %v16 = vld [vmem:[%s1 + $0x4] sm:$0xf]
  %v17 = vld [vmem:[%s0] sm:$0xff]
  %v18 = vld [vmem:[%s0 + $0x8] sm:$0xff]
  %v19 = vld [vmem:[%s0 + $0x10] sm:$0xff]
  %v20 = vld [vmem:[%s0 + $0x1c] sm:$0xff]
  %v21 = vld [vmem:[%s0 + $0x24] sm:$0xff]
  %v22 = vld [vmem:[%s0 + $0x2c] sm:$0xff]
  %s23 = scalar_lea.vmem %s1, 8
  %v24 = vld [vmem:[%s23] sm:$0xf]
  %v25 = vld [vmem:[%s23 + $0x4] sm:$0xf]
  %v26 = vld [vmem:[%s0] sm:$0xff]
  %v27 = vld [vmem:[%s0 + $0x8] sm:$0xff]
  %v28 = vld [vmem:[%s0 + $0x10] sm:$0xff]
  %v29 = vld [vmem:[%s0 + $0x18] sm:$0xf]
  %v30 = vld [vmem:[%s0 + $0x1c] sm:$0xff]
  %v31 = vld [vmem:[%s0 + $0x24] sm:$0xff]
  %v32 = vld [vmem:[%s0 + $0x2c] sm:$0xff]
  %v33 = vld [vmem:[%s0 + $0x34] sm:$0xf]
  %v36 = vunpack.c.l.b16 %v24
  %v37 = vunpack.c.l.b16 %v25
  %v38 = vpack.c.b16 %v37, %v36
  %v47 = vunpack.c.l.b16 %v26
  %v48 = vunpack.c.h.b16 %v26
  %v49 = vunpack.c.l.b16 %v27
  %v50 = vunpack.c.h.b16 %v27
  %v51 = vunpack.c.l.b16 %v28
  %v52 = vunpack.c.h.b16 %v28
  %v53 = vunpack.c.l.b16 %v29
  %v54 = vunpack.c.l.b16 %v30
  %v55 = vunpack.c.h.b16 %v30
  %v56 = vunpack.c.l.b16 %v31
  %v57 = vunpack.c.h.b16 %v31
  %v58 = vunpack.c.l.b16 %v32
  %v59 = vunpack.c.h.b16 %v32
  %v60 = vunpack.c.l.b16 %v33
  %v61 = vpack.c.b16 %v54, %v47
  %v62 = vpack.c.b16 %v55, %v48
  %v63 = vpack.c.b16 %v56, %v49
  %v64 = vpack.c.b16 %v57, %v50
  %v65 = vpack.c.b16 %v58, %v51
  %v66 = vpack.c.b16 %v59, %v52
  %v67 = vpack.c.b16 %v60, %v53
  %68 = vrot.lane.b32.xlu0 %v61, 127
  %v69 = vpop.permute.xlu0 %68
  %70 = vrot.lane.b32.xlu0 %v62, 127
  %v71 = vpop.permute.xlu0 %70
  %72 = vrot.lane.b32.xlu0 %v63, 127
  %v73 = vpop.permute.xlu0 %72
  %74 = vrot.lane.b32.xlu0 %v64, 127
  %v75 = vpop.permute.xlu0 %74
  %76 = vrot.lane.b32.xlu0 %v65, 127
  %v77 = vpop.permute.xlu0 %76
  %78 = vrot.lane.b32.xlu0 %v66, 127
  %v79 = vpop.permute.xlu0 %78
  %80 = vrot.lane.b32.xlu0 %v67, 127
  %v81 = vpop.permute.xlu0 %80
  %vm82 = vcmask 1039360
  %v83 = vsel %vm82, %v69, %v71
  %v84 = vsel %vm82, %v71, %v73
  %v85 = vsel %vm82, %v73, %v75
  %v86 = vsel %vm82, %v75, %v77
  %v87 = vsel %vm82, %v77, %v79
  %v88 = vsel %vm82, %v79, %v81
  %vm95 = vcmask 130048
  %v97 = vsel %vm95, %v38, 0
  %99 = vmatprep.subr.bf16.mxu0 %v84
  %100 = vmatpush1.bf16.msra.mxu0 %v83
  %101 = vmatprep.subr.bf16.mxu0 0
  %102 = vmatpush1.bf16.msra.mxu0 0
  %103 = vmatprep.subr.bf16.mxu0 0
  %104 = vmatpush1.bf16.msra.mxu0 0
  %105 = vmatprep.subr.bf16.mxu0 0
  %106 = vmatpush1.bf16.msra.mxu0 0
  %107 = vmatprep.subr.bf16.mxu0 0
  %108 = vmatpush1.bf16.msra.mxu0 0
  %109 = vmatprep.subr.bf16.mxu0 0
  %110 = vmatpush1.bf16.msra.mxu0 0
  %111 = vmatprep.subr.bf16.mxu0 0
  %112 = vmatpush1.bf16.msra.mxu0 0
  %113 = vmatprep.subr.bf16.mxu0 0
  %114 = vmatpush1.bf16.msra.mxu0 0
  %115 = vmatprep.subr.bf16.mxu0 0
  %116 = vmatpush1.bf16.msra.mxu0 0
  %117 = vmatprep.subr.bf16.mxu0 0
  %118 = vmatpush1.bf16.msra.mxu0 0
  %119 = vmatprep.subr.bf16.mxu0 0
  %120 = vmatpush1.bf16.msra.mxu0 0
  %121 = vmatprep.subr.bf16.mxu0 0
  %122 = vmatpush1.bf16.msra.mxu0 0
  %123 = vmatprep.subr.bf16.mxu0 0
  %124 = vmatpush1.bf16.msra.mxu0 0
  %125 = vmatprep.subr.bf16.mxu0 0
  %126 = vmatpush1.bf16.msra.mxu0 0
  %127 = vmatprep.subr.bf16.mxu0 0
  %128 = vmatpush1.bf16.msra.mxu0 0
  %129 = vmatprep.subr.bf16.mxu0 0
  %130 = vmatpush1.bf16.msra.mxu0 0
  %131 = vmatprep.mubr.bf16.mxu0 0
  %132 = vmatmul.mubr.bf16.gmra.mrb[0].mxu0 %v97
  %v133 = vpop.f32.mrb[0].mxu0
  %v134 = vadd.f32 0.0, %v133
  %v135 = vpop.f32.mrb[0].mxu0
  %v136 = vadd.f32 0.0, %v135
  %v137 = vpop.f32.mrb[0].mxu0
  %v138 = vadd.f32 0.0, %v137
  %v139 = vpop.f32.mrb[0].mxu0
  %v140 = vadd.f32 0.0, %v139
  %141 = vdwg.mxu0
  %142 = vmatprep.subr.bf16.mxu0 %v86
  %143 = vmatpush1.bf16.msra.mxu0 %v85
  %144 = vmatprep.subr.bf16.mxu0 0
  %145 = vmatpush1.bf16.msra.mxu0 0
  %146 = vmatprep.subr.bf16.mxu0 0
  %147 = vmatpush1.bf16.msra.mxu0 0
  %148 = vmatprep.subr.bf16.mxu0 0
  %149 = vmatpush1.bf16.msra.mxu0 0
  %150 = vmatprep.subr.bf16.mxu0 0
  %151 = vmatpush1.bf16.msra.mxu0 0
  %152 = vmatprep.subr.bf16.mxu0 0
  %153 = vmatpush1.bf16.msra.mxu0 0
  %154 = vmatprep.subr.bf16.mxu0 0
  %155 = vmatpush1.bf16.msra.mxu0 0
  %156 = vmatprep.subr.bf16.mxu0 0
  %157 = vmatpush1.bf16.msra.mxu0 0
  %158 = vmatprep.subr.bf16.mxu0 0
  %159 = vmatpush1.bf16.msra.mxu0 0
  %160 = vmatprep.subr.bf16.mxu0 0
  %161 = vmatpush1.bf16.msra.mxu0 0
  %162 = vmatprep.subr.bf16.mxu0 0
  %163 = vmatpush1.bf16.msra.mxu0 0
  %164 = vmatprep.subr.bf16.mxu0 0
  %165 = vmatpush1.bf16.msra.mxu0 0
  %166 = vmatprep.subr.bf16.mxu0 0
  %167 = vmatpush1.bf16.msra.mxu0 0
  %168 = vmatprep.subr.bf16.mxu0 0
  %169 = vmatpush1.bf16.msra.mxu0 0
  %170 = vmatprep.subr.bf16.mxu0 0
  %171 = vmatpush1.bf16.msra.mxu0 0
  %172 = vmatprep.subr.bf16.mxu0 0
  %173 = vmatpush1.bf16.msra.mxu0 0
  %174 = vmatprep.mubr.bf16.mxu0 0
  %175 = vmatmul.mubr.bf16.gmra.mrb[0].mxu0 %v97
  %v176 = vpop.f32.mrb[0].mxu0
  %v177 = vadd.f32 0.0, %v176
  %v178 = vpop.f32.mrb[0].mxu0
  %v179 = vadd.f32 0.0, %v178
  %v180 = vpop.f32.mrb[0].mxu0
  %v181 = vadd.f32 0.0, %v180
  %v182 = vpop.f32.mrb[0].mxu0
  %v183 = vadd.f32 0.0, %v182
  %184 = vdwg.mxu0
  %185 = vmatprep.subr.bf16.mxu0 %v88
  %186 = vmatpush1.bf16.msra.mxu0 %v87
  %187 = vmatprep.subr.bf16.mxu0 0
  %188 = vmatpush1.bf16.msra.mxu0 0
  %189 = vmatprep.subr.bf16.mxu0 0
  %190 = vmatpush1.bf16.msra.mxu0 0
  %191 = vmatprep.subr.bf16.mxu0 0
  %192 = vmatpush1.bf16.msra.mxu0 0
  %193 = vmatprep.subr.bf16.mxu0 0
  %194 = vmatpush1.bf16.msra.mxu0 0
  %195 = vmatprep.subr.bf16.mxu0 0
  %196 = vmatpush1.bf16.msra.mxu0 0
  %197 = vmatprep.subr.bf16.mxu0 0
  %198 = vmatpush1.bf16.msra.mxu0 0
  %199 = vmatprep.subr.bf16.mxu0 0
  %200 = vmatpush1.bf16.msra.mxu0 0
  %201 = vmatprep.subr.bf16.mxu0 0
  %202 = vmatpush1.bf16.msra.mxu0 0
  %203 = vmatprep.subr.bf16.mxu0 0
  %204 = vmatpush1.bf16.msra.mxu0 0
  %205 = vmatprep.subr.bf16.mxu0 0
  %206 = vmatpush1.bf16.msra.mxu0 0
  %207 = vmatprep.subr.bf16.mxu0 0
  %208 = vmatpush1.bf16.msra.mxu0 0
  %209 = vmatprep.subr.bf16.mxu0 0
  %210 = vmatpush1.bf16.msra.mxu0 0
  %211 = vmatprep.subr.bf16.mxu0 0
  %212 = vmatpush1.bf16.msra.mxu0 0
  %213 = vmatprep.subr.bf16.mxu0 0
  %214 = vmatpush1.bf16.msra.mxu0 0
  %215 = vmatprep.subr.bf16.mxu0 0
  %216 = vmatpush1.bf16.msra.mxu0 0
  %217 = vmatprep.mubr.bf16.mxu0 0
  %218 = vmatmul.mubr.bf16.gmra.mrb[0].mxu0 %v97
  %v219 = vpop.f32.mrb[0].mxu0
  %v220 = vadd.f32 0.0, %v219
  %v221 = vpop.f32.mrb[0].mxu0
  %v222 = vadd.f32 0.0, %v221
  %v223 = vpop.f32.mrb[0].mxu0
  %v224 = vadd.f32 0.0, %v223
  %v225 = vpop.f32.mrb[0].mxu0
  %v226 = vadd.f32 0.0, %v225
  %227 = vdwg.mxu0
  %v230 = vunpack.c.l.b16 %v15
  %v231 = vunpack.c.l.b16 %v16
  %v232 = vpack.c.b16 %v231, %v230
  %v239 = vunpack.c.l.b16 %v17
  %v240 = vunpack.c.h.b16 %v17
  %v241 = vunpack.c.l.b16 %v18
  %v242 = vunpack.c.h.b16 %v18
  %v243 = vunpack.c.l.b16 %v19
  %v244 = vunpack.c.h.b16 %v19
  %v245 = vunpack.c.l.b16 %v20
  %v246 = vunpack.c.h.b16 %v20
  %v247 = vunpack.c.l.b16 %v21
  %v248 = vunpack.c.h.b16 %v21
  %v249 = vunpack.c.l.b16 %v22
  %v250 = vunpack.c.h.b16 %v22
  %v251 = vpack.c.b16 %v245, %v239
  %v252 = vpack.c.b16 %v246, %v240
  %v253 = vpack.c.b16 %v247, %v241
  %v254 = vpack.c.b16 %v248, %v242
  %v255 = vpack.c.b16 %v249, %v243
  %v256 = vpack.c.b16 %v250, %v244
  %v264 = vsel %vm95, %v232, 0
  %266 = vmatprep.subr.bf16.mxu0 %v252
  %267 = vmatpush1.bf16.msra.mxu0 %v251
  %268 = vmatprep.subr.bf16.mxu0 0
  %269 = vmatpush1.bf16.msra.mxu0 0
  %270 = vmatprep.subr.bf16.mxu0 0
  %271 = vmatpush1.bf16.msra.mxu0 0
  %272 = vmatprep.subr.bf16.mxu0 0
  %273 = vmatpush1.bf16.msra.mxu0 0
  %274 = vmatprep.subr.bf16.mxu0 0
  %275 = vmatpush1.bf16.msra.mxu0 0
  %276 = vmatprep.subr.bf16.mxu0 0
  %277 = vmatpush1.bf16.msra.mxu0 0
  %278 = vmatprep.subr.bf16.mxu0 0
  %279 = vmatpush1.bf16.msra.mxu0 0
  %280 = vmatprep.subr.bf16.mxu0 0
  %281 = vmatpush1.bf16.msra.mxu0 0
  %282 = vmatprep.subr.bf16.mxu0 0
  %283 = vmatpush1.bf16.msra.mxu0 0
  %284 = vmatprep.subr.bf16.mxu0 0
  %285 = vmatpush1.bf16.msra.mxu0 0
  %286 = vmatprep.subr.bf16.mxu0 0
  %287 = vmatpush1.bf16.msra.mxu0 0
  %288 = vmatprep.subr.bf16.mxu0 0
  %289 = vmatpush1.bf16.msra.mxu0 0
  %290 = vmatprep.subr.bf16.mxu0 0
  %291 = vmatpush1.bf16.msra.mxu0 0
  %292 = vmatprep.subr.bf16.mxu0 0
  %293 = vmatpush1.bf16.msra.mxu0 0
  %294 = vmatprep.subr.bf16.mxu0 0
  %295 = vmatpush1.bf16.msra.mxu0 0
  %296 = vmatprep.subr.bf16.mxu0 0
  %297 = vmatpush1.bf16.msra.mxu0 0
  %298 = vmatprep.mubr.bf16.mxu0 0
  %299 = vmatmul.mubr.bf16.gmra.mrb[0].mxu0 %v264
  %v300 = vpop.f32.mrb[0].mxu0
  %v301 = vadd.f32 %v134, %v300
  %v302 = vpop.f32.mrb[0].mxu0
  %v303 = vadd.f32 %v136, %v302
  %v304 = vpop.f32.mrb[0].mxu0
  %v305 = vadd.f32 %v138, %v304
  %v306 = vpop.f32.mrb[0].mxu0
  %v307 = vadd.f32 %v140, %v306
  %308 = vdwg.mxu0
  %309 = vmatprep.subr.bf16.mxu0 %v254
  %310 = vmatpush1.bf16.msra.mxu0 %v253
  %311 = vmatprep.subr.bf16.mxu0 0
  %312 = vmatpush1.bf16.msra.mxu0 0
  %313 = vmatprep.subr.bf16.mxu0 0
  %314 = vmatpush1.bf16.msra.mxu0 0
  %315 = vmatprep.subr.bf16.mxu0 0
  %316 = vmatpush1.bf16.msra.mxu0 0
  %317 = vmatprep.subr.bf16.mxu0 0
  %318 = vmatpush1.bf16.msra.mxu0 0
  %319 = vmatprep.subr.bf16.mxu0 0
  %320 = vmatpush1.bf16.msra.mxu0 0
  %321 = vmatprep.subr.bf16.mxu0 0
  %322 = vmatpush1.bf16.msra.mxu0 0
  %323 = vmatprep.subr.bf16.mxu0 0
  %324 = vmatpush1.bf16.msra.mxu0 0
  %325 = vmatprep.subr.bf16.mxu0 0
  %326 = vmatpush1.bf16.msra.mxu0 0
  %327 = vmatprep.subr.bf16.mxu0 0
  %328 = vmatpush1.bf16.msra.mxu0 0
  %329 = vmatprep.subr.bf16.mxu0 0
  %330 = vmatpush1.bf16.msra.mxu0 0
  %331 = vmatprep.subr.bf16.mxu0 0
  %332 = vmatpush1.bf16.msra.mxu0 0
  %333 = vmatprep.subr.bf16.mxu0 0
  %334 = vmatpush1.bf16.msra.mxu0 0
  %335 = vmatprep.subr.bf16.mxu0 0
  %336 = vmatpush1.bf16.msra.mxu0 0
  %337 = vmatprep.subr.bf16.mxu0 0
  %338 = vmatpush1.bf16.msra.mxu0 0
  %339 = vmatprep.subr.bf16.mxu0 0
  %340 = vmatpush1.bf16.msra.mxu0 0
  %341 = vmatprep.mubr.bf16.mxu0 0
  %342 = vmatmul.mubr.bf16.gmra.mrb[0].mxu0 %v264
  %v343 = vpop.f32.mrb[0].mxu0
  %v344 = vadd.f32 %v177, %v343
  %v345 = vpop.f32.mrb[0].mxu0
  %v346 = vadd.f32 %v179, %v345
  %v347 = vpop.f32.mrb[0].mxu0
  %v348 = vadd.f32 %v181, %v347
  %v349 = vpop.f32.mrb[0].mxu0
  %v350 = vadd.f32 %v183, %v349
  %351 = vdwg.mxu0
  %352 = vmatprep.subr.bf16.mxu0 %v256
  %353 = vmatpush1.bf16.msra.mxu0 %v255
  %354 = vmatprep.subr.bf16.mxu0 0
  %355 = vmatpush1.bf16.msra.mxu0 0
  %356 = vmatprep.subr.bf16.mxu0 0
  %357 = vmatpush1.bf16.msra.mxu0 0
  %358 = vmatprep.subr.bf16.mxu0 0
  %359 = vmatpush1.bf16.msra.mxu0 0
  %360 = vmatprep.subr.bf16.mxu0 0
  %361 = vmatpush1.bf16.msra.mxu0 0
  %362 = vmatprep.subr.bf16.mxu0 0
  %363 = vmatpush1.bf16.msra.mxu0 0
  %364 = vmatprep.subr.bf16.mxu0 0
  %365 = vmatpush1.bf16.msra.mxu0 0
  %366 = vmatprep.subr.bf16.mxu0 0
  %367 = vmatpush1.bf16.msra.mxu0 0
  %368 = vmatprep.subr.bf16.mxu0 0
  %369 = vmatpush1.bf16.msra.mxu0 0
  %370 = vmatprep.subr.bf16.mxu0 0
  %371 = vmatpush1.bf16.msra.mxu0 0
  %372 = vmatprep.subr.bf16.mxu0 0
  %373 = vmatpush1.bf16.msra.mxu0 0
  %374 = vmatprep.subr.bf16.mxu0 0
  %375 = vmatpush1.bf16.msra.mxu0 0
  %376 = vmatprep.subr.bf16.mxu0 0
  %377 = vmatpush1.bf16.msra.mxu0 0
  %378 = vmatprep.subr.bf16.mxu0 0
  %379 = vmatpush1.bf16.msra.mxu0 0
  %380 = vmatprep.subr.bf16.mxu0 0
  %381 = vmatpush1.bf16.msra.mxu0 0
  %382 = vmatprep.subr.bf16.mxu0 0
  %383 = vmatpush1.bf16.msra.mxu0 0
  %384 = vmatprep.mubr.bf16.mxu0 0
  %385 = vmatmul.mubr.bf16.gmra.mrb[0].mxu0 %v264
  %v386 = vpop.f32.mrb[0].mxu0
  %v387 = vadd.f32 %v220, %v386
  %v388 = vpop.f32.mrb[0].mxu0
  %v389 = vadd.f32 %v222, %v388
  %v390 = vpop.f32.mrb[0].mxu0
  %v391 = vadd.f32 %v224, %v390
  %v392 = vpop.f32.mrb[0].mxu0
  %v393 = vadd.f32 %v226, %v392
  %394 = vdwg.mxu0
  %s395 = scalar_lea.vmem %s1, 16
  %v396 = vld [vmem:[%s395] sm:$0xf]
  %v397 = vld [vmem:[%s395 + $0x4] sm:$0xf]
  %v400 = vunpack.c.l.b16 %v396
  %v401 = vunpack.c.l.b16 %v397
  %v402 = vpack.c.b16 %v401, %v400
  %403 = vrot.lane.b32.xlu0 %v61, 126
  %v404 = vpop.permute.xlu0 %403
  %405 = vrot.lane.b32.xlu0 %v62, 126
  %v406 = vpop.permute.xlu0 %405
  %407 = vrot.lane.b32.xlu0 %v63, 126
  %v408 = vpop.permute.xlu0 %407
  %409 = vrot.lane.b32.xlu0 %v64, 126
  %v410 = vpop.permute.xlu0 %409
  %411 = vrot.lane.b32.xlu0 %v65, 126
  %v412 = vpop.permute.xlu0 %411
  %413 = vrot.lane.b32.xlu0 %v66, 126
  %v414 = vpop.permute.xlu0 %413
  %415 = vrot.lane.b32.xlu0 %v67, 126
  %v416 = vpop.permute.xlu0 %415
  %vm417 = vcmask 1031168
  %v418 = vsel %vm417, %v404, %v406
  %v419 = vsel %vm417, %v406, %v408
  %v420 = vsel %vm417, %v408, %v410
  %v421 = vsel %vm417, %v410, %v412
  %v422 = vsel %vm417, %v412, %v414
  %v423 = vsel %vm417, %v414, %v416
  %v431 = vsel %vm95, %v402, 0
  %433 = vmatprep.subr.bf16.mxu0 %v419
  %434 = vmatpush1.bf16.msra.mxu0 %v418
  %435 = vmatprep.subr.bf16.mxu0 0
  %436 = vmatpush1.bf16.msra.mxu0 0
  %437 = vmatprep.subr.bf16.mxu0 0
  %438 = vmatpush1.bf16.msra.mxu0 0
  %439 = vmatprep.subr.bf16.mxu0 0
  %440 = vmatpush1.bf16.msra.mxu0 0
  %441 = vmatprep.subr.bf16.mxu0 0
  %442 = vmatpush1.bf16.msra.mxu0 0
  %443 = vmatprep.subr.bf16.mxu0 0
  %444 = vmatpush1.bf16.msra.mxu0 0
  %445 = vmatprep.subr.bf16.mxu0 0
  %446 = vmatpush1.bf16.msra.mxu0 0
  %447 = vmatprep.subr.bf16.mxu0 0
  %448 = vmatpush1.bf16.msra.mxu0 0
  %449 = vmatprep.subr.bf16.mxu0 0
  %450 = vmatpush1.bf16.msra.mxu0 0
  %451 = vmatprep.subr.bf16.mxu0 0
  %452 = vmatpush1.bf16.msra.mxu0 0
  %453 = vmatprep.subr.bf16.mxu0 0
  %454 = vmatpush1.bf16.msra.mxu0 0
  %455 = vmatprep.subr.bf16.mxu0 0
  %456 = vmatpush1.bf16.msra.mxu0 0
  %457 = vmatprep.subr.bf16.mxu0 0
  %458 = vmatpush1.bf16.msra.mxu0 0
  %459 = vmatprep.subr.bf16.mxu0 0
  %460 = vmatpush1.bf16.msra.mxu0 0
  %461 = vmatprep.subr.bf16.mxu0 0
  %462 = vmatpush1.bf16.msra.mxu0 0
  %463 = vmatprep.subr.bf16.mxu0 0
  %464 = vmatpush1.bf16.msra.mxu0 0
  %465 = vmatprep.mubr.bf16.mxu0 0
  %466 = vmatmul.mubr.bf16.gmra.mrb[0].mxu0 %v431
  %v467 = vpop.f32.mrb[0].mxu0
  %v468 = vadd.f32 0.0, %v467
  %v469 = vpop.f32.mrb[0].mxu0
  %v470 = vadd.f32 0.0, %v469
  %v471 = vpop.f32.mrb[0].mxu0
  %v472 = vadd.f32 0.0, %v471
  %v473 = vpop.f32.mrb[0].mxu0
  %v474 = vadd.f32 0.0, %v473
  %475 = vdwg.mxu0
  %476 = vmatprep.subr.bf16.mxu0 %v421
  %477 = vmatpush1.bf16.msra.mxu0 %v420
  %478 = vmatprep.subr.bf16.mxu0 0
  %479 = vmatpush1.bf16.msra.mxu0 0
  %480 = vmatprep.subr.bf16.mxu0 0
  %481 = vmatpush1.bf16.msra.mxu0 0
  %482 = vmatprep.subr.bf16.mxu0 0
  %483 = vmatpush1.bf16.msra.mxu0 0
  %484 = vmatprep.subr.bf16.mxu0 0
  %485 = vmatpush1.bf16.msra.mxu0 0
  %486 = vmatprep.subr.bf16.mxu0 0
  %487 = vmatpush1.bf16.msra.mxu0 0
  %488 = vmatprep.subr.bf16.mxu0 0
  %489 = vmatpush1.bf16.msra.mxu0 0
  %490 = vmatprep.subr.bf16.mxu0 0
  %491 = vmatpush1.bf16.msra.mxu0 0
  %492 = vmatprep.subr.bf16.mxu0 0
  %493 = vmatpush1.bf16.msra.mxu0 0
  %494 = vmatprep.subr.bf16.mxu0 0
  %495 = vmatpush1.bf16.msra.mxu0 0
  %496 = vmatprep.subr.bf16.mxu0 0
  %497 = vmatpush1.bf16.msra.mxu0 0
  %498 = vmatprep.subr.bf16.mxu0 0
  %499 = vmatpush1.bf16.msra.mxu0 0
  %500 = vmatprep.subr.bf16.mxu0 0
  %501 = vmatpush1.bf16.msra.mxu0 0
  %502 = vmatprep.subr.bf16.mxu0 0
  %503 = vmatpush1.bf16.msra.mxu0 0
  %504 = vmatprep.subr.bf16.mxu0 0
  %505 = vmatpush1.bf16.msra.mxu0 0
  %506 = vmatprep.subr.bf16.mxu0 0
  %507 = vmatpush1.bf16.msra.mxu0 0
  %508 = vmatprep.mubr.bf16.mxu0 0
  %509 = vmatmul.mubr.bf16.gmra.mrb[0].mxu0 %v431
  %v510 = vpop.f32.mrb[0].mxu0
  %v511 = vadd.f32 0.0, %v510
  %v512 = vpop.f32.mrb[0].mxu0
  %v513 = vadd.f32 0.0, %v512
  %v514 = vpop.f32.mrb[0].mxu0
  %v515 = vadd.f32 0.0, %v514
  %v516 = vpop.f32.mrb[0].mxu0
  %v517 = vadd.f32 0.0, %v516
  %518 = vdwg.mxu0
  %519 = vmatprep.subr.bf16.mxu0 %v423
  %520 = vmatpush1.bf16.msra.mxu0 %v422
  %521 = vmatprep.subr.bf16.mxu0 0
  %522 = vmatpush1.bf16.msra.mxu0 0
  %523 = vmatprep.subr.bf16.mxu0 0
  %524 = vmatpush1.bf16.msra.mxu0 0
  %525 = vmatprep.subr.bf16.mxu0 0
  %526 = vmatpush1.bf16.msra.mxu0 0
  %527 = vmatprep.subr.bf16.mxu0 0
  %528 = vmatpush1.bf16.msra.mxu0 0
  %529 = vmatprep.subr.bf16.mxu0 0
  %530 = vmatpush1.bf16.msra.mxu0 0
  %531 = vmatprep.subr.bf16.mxu0 0
  %532 = vmatpush1.bf16.msra.mxu0 0
  %533 = vmatprep.subr.bf16.mxu0 0
  %534 = vmatpush1.bf16.msra.mxu0 0
  %535 = vmatprep.subr.bf16.mxu0 0
  %536 = vmatpush1.bf16.msra.mxu0 0
  %537 = vmatprep.subr.bf16.mxu0 0
  %538 = vmatpush1.bf16.msra.mxu0 0
  %539 = vmatprep.subr.bf16.mxu0 0
  %540 = vmatpush1.bf16.msra.mxu0 0
  %541 = vmatprep.subr.bf16.mxu0 0
  %542 = vmatpush1.bf16.msra.mxu0 0
  %543 = vmatprep.subr.bf16.mxu0 0
  %544 = vmatpush1.bf16.msra.mxu0 0
  %545 = vmatprep.subr.bf16.mxu0 0
  %546 = vmatpush1.bf16.msra.mxu0 0
  %547 = vmatprep.subr.bf16.mxu0 0
  %548 = vmatpush1.bf16.msra.mxu0 0
  %549 = vmatprep.subr.bf16.mxu0 0
  %550 = vmatpush1.bf16.msra.mxu0 0
  %551 = vmatprep.mubr.bf16.mxu0 0
  %552 = vmatmul.mubr.bf16.gmra.mrb[0].mxu0 %v431
  %v553 = vpop.f32.mrb[0].mxu0
  %v554 = vadd.f32 0.0, %v553
  %v555 = vpop.f32.mrb[0].mxu0
  %v556 = vadd.f32 0.0, %v555
  %v557 = vpop.f32.mrb[0].mxu0
  %v558 = vadd.f32 0.0, %v557
  %v559 = vpop.f32.mrb[0].mxu0
  %v560 = vadd.f32 0.0, %v559
  %561 = vdwg.mxu0
  %v562 = vadd.f32 %v301, %v468
  %v563 = vadd.f32 %v303, %v470
  %v564 = vadd.f32 %v344, %v511
  %v565 = vadd.f32 %v346, %v513
  %v566 = vadd.f32 %v387, %v554
  %v567 = vadd.f32 %v389, %v556
  %v568 = vadd.f32 %v305, %v472
  %v569 = vadd.f32 %v307, %v474
  %v570 = vadd.f32 %v348, %v515
  %v571 = vadd.f32 %v350, %v517
  %v572 = vadd.f32 %v391, %v558
  %v573 = vadd.f32 %v393, %v560
  %s574 = scalar_lea.vmem %s1, 24
  %v575 = vld [vmem:[%s574] sm:$0xf]
  %v576 = vld [vmem:[%s574 + $0x4] sm:$0xf]
  %v579 = vunpack.c.l.b16 %v575
  %v580 = vunpack.c.l.b16 %v576
  %v581 = vpack.c.b16 %v580, %v579
  %582 = vrot.lane.b32.xlu0 %v61, 110
  %v583 = vpop.permute.xlu0 %582
  %584 = vrot.lane.b32.xlu0 %v62, 110
  %v585 = vpop.permute.xlu0 %584
  %586 = vrot.lane.b32.xlu0 %v63, 110
  %v587 = vpop.permute.xlu0 %586
  %588 = vrot.lane.b32.xlu0 %v64, 110
  %v589 = vpop.permute.xlu0 %588
  %590 = vrot.lane.b32.xlu0 %v65, 110
  %v591 = vpop.permute.xlu0 %590
  %592 = vrot.lane.b32.xlu0 %v66, 110
  %v593 = vpop.permute.xlu0 %592
  %594 = vrot.lane.b32.xlu0 %v67, 110
  %v595 = vpop.permute.xlu0 %594
  %vm596 = vcmask 900096
  %v597 = vsel %vm596, %v583, %v585
  %v598 = vsel %vm596, %v585, %v587
  %v599 = vsel %vm596, %v587, %v589
  %v600 = vsel %vm596, %v589, %v591
  %v601 = vsel %vm596, %v591, %v593
  %v602 = vsel %vm596, %v593, %v595
  %v610 = vsel %vm95, %v581, 0
  %612 = vmatprep.subr.bf16.mxu0 %v598
  %613 = vmatpush1.bf16.msra.mxu0 %v597
  %614 = vmatprep.subr.bf16.mxu0 0
  %615 = vmatpush1.bf16.msra.mxu0 0
  %616 = vmatprep.subr.bf16.mxu0 0
  %617 = vmatpush1.bf16.msra.mxu0 0
  %618 = vmatprep.subr.bf16.mxu0 0
  %619 = vmatpush1.bf16.msra.mxu0 0
  %620 = vmatprep.subr.bf16.mxu0 0
  %621 = vmatpush1.bf16.msra.mxu0 0
  %622 = vmatprep.subr.bf16.mxu0 0
  %623 = vmatpush1.bf16.msra.mxu0 0
  %624 = vmatprep.subr.bf16.mxu0 0
  %625 = vmatpush1.bf16.msra.mxu0 0
  %626 = vmatprep.subr.bf16.mxu0 0
  %627 = vmatpush1.bf16.msra.mxu0 0
  %628 = vmatprep.subr.bf16.mxu0 0
  %629 = vmatpush1.bf16.msra.mxu0 0
  %630 = vmatprep.subr.bf16.mxu0 0
  %631 = vmatpush1.bf16.msra.mxu0 0
  %632 = vmatprep.subr.bf16.mxu0 0
  %633 = vmatpush1.bf16.msra.mxu0 0
  %634 = vmatprep.subr.bf16.mxu0 0
  %635 = vmatpush1.bf16.msra.mxu0 0
  %636 = vmatprep.subr.bf16.mxu0 0
  %637 = vmatpush1.bf16.msra.mxu0 0
  %638 = vmatprep.subr.bf16.mxu0 0
  %639 = vmatpush1.bf16.msra.mxu0 0
  %640 = vmatprep.subr.bf16.mxu0 0
  %641 = vmatpush1.bf16.msra.mxu0 0
  %642 = vmatprep.subr.bf16.mxu0 0
  %643 = vmatpush1.bf16.msra.mxu0 0
  %644 = vmatprep.mubr.bf16.mxu0 0
  %645 = vmatmul.mubr.bf16.gmra.mrb[0].mxu0 %v610
  %v646 = vpop.f32.mrb[0].mxu0
  %v647 = vadd.f32 0.0, %v646
  %v648 = vpop.f32.mrb[0].mxu0
  %v649 = vadd.f32 0.0, %v648
  %v650 = vpop.f32.mrb[0].mxu0
  %v651 = vadd.f32 0.0, %v650
  %v652 = vpop.f32.mrb[0].mxu0
  %v653 = vadd.f32 0.0, %v652
  %654 = vdwg.mxu0
  %655 = vmatprep.subr.bf16.mxu0 %v600
  %656 = vmatpush1.bf16.msra.mxu0 %v599
  %657 = vmatprep.subr.bf16.mxu0 0
  %658 = vmatpush1.bf16.msra.mxu0 0
  %659 = vmatprep.subr.bf16.mxu0 0
  %660 = vmatpush1.bf16.msra.mxu0 0
  %661 = vmatprep.subr.bf16.mxu0 0
  %662 = vmatpush1.bf16.msra.mxu0 0
  %663 = vmatprep.subr.bf16.mxu0 0
  %664 = vmatpush1.bf16.msra.mxu0 0
  %665 = vmatprep.subr.bf16.mxu0 0
  %666 = vmatpush1.bf16.msra.mxu0 0
  %667 = vmatprep.subr.bf16.mxu0 0
  %668 = vmatpush1.bf16.msra.mxu0 0
  %669 = vmatprep.subr.bf16.mxu0 0
  %670 = vmatpush1.bf16.msra.mxu0 0
  %671 = vmatprep.subr.bf16.mxu0 0
  %672 = vmatpush1.bf16.msra.mxu0 0
  %673 = vmatprep.subr.bf16.mxu0 0
  %674 = vmatpush1.bf16.msra.mxu0 0
  %675 = vmatprep.subr.bf16.mxu0 0
  %676 = vmatpush1.bf16.msra.mxu0 0
  %677 = vmatprep.subr.bf16.mxu0 0
  %678 = vmatpush1.bf16.msra.mxu0 0
  %679 = vmatprep.subr.bf16.mxu0 0
  %680 = vmatpush1.bf16.msra.mxu0 0
  %681 = vmatprep.subr.bf16.mxu0 0
  %682 = vmatpush1.bf16.msra.mxu0 0
  %683 = vmatprep.subr.bf16.mxu0 0
  %684 = vmatpush1.bf16.msra.mxu0 0
  %685 = vmatprep.subr.bf16.mxu0 0
  %686 = vmatpush1.bf16.msra.mxu0 0
  %687 = vmatprep.mubr.bf16.mxu0 0
  %688 = vmatmul.mubr.bf16.gmra.mrb[0].mxu0 %v610
  %v689 = vpop.f32.mrb[0].mxu0
  %v690 = vadd.f32 0.0, %v689
  %v691 = vpop.f32.mrb[0].mxu0
  %v692 = vadd.f32 0.0, %v691
  %v693 = vpop.f32.mrb[0].mxu0
  %v694 = vadd.f32 0.0, %v693
  %v695 = vpop.f32.mrb[0].mxu0
  %v696 = vadd.f32 0.0, %v695
  %697 = vdwg.mxu0
  %698 = vmatprep.subr.bf16.mxu0 %v602
  %699 = vmatpush1.bf16.msra.mxu0 %v601
  %700 = vmatprep.subr.bf16.mxu0 0
  %701 = vmatpush1.bf16.msra.mxu0 0
  %702 = vmatprep.subr.bf16.mxu0 0
  %703 = vmatpush1.bf16.msra.mxu0 0
  %704 = vmatprep.subr.bf16.mxu0 0
  %705 = vmatpush1.bf16.msra.mxu0 0
  %706 = vmatprep.subr.bf16.mxu0 0
  %707 = vmatpush1.bf16.msra.mxu0 0
  %708 = vmatprep.subr.bf16.mxu0 0
  %709 = vmatpush1.bf16.msra.mxu0 0
  %710 = vmatprep.subr.bf16.mxu0 0
  %711 = vmatpush1.bf16.msra.mxu0 0
  %712 = vmatprep.subr.bf16.mxu0 0
  %713 = vmatpush1.bf16.msra.mxu0 0
  %714 = vmatprep.subr.bf16.mxu0 0
  %715 = vmatpush1.bf16.msra.mxu0 0
  %716 = vmatprep.subr.bf16.mxu0 0
  %717 = vmatpush1.bf16.msra.mxu0 0
  %718 = vmatprep.subr.bf16.mxu0 0
  %719 = vmatpush1.bf16.msra.mxu0 0
  %720 = vmatprep.subr.bf16.mxu0 0
  %721 = vmatpush1.bf16.msra.mxu0 0
  %722 = vmatprep.subr.bf16.mxu0 0
  %723 = vmatpush1.bf16.msra.mxu0 0
  %724 = vmatprep.subr.bf16.mxu0 0
  %725 = vmatpush1.bf16.msra.mxu0 0
  %726 = vmatprep.subr.bf16.mxu0 0
  %727 = vmatpush1.bf16.msra.mxu0 0
  %728 = vmatprep.subr.bf16.mxu0 0
  %729 = vmatpush1.bf16.msra.mxu0 0
  %730 = vmatprep.mubr.bf16.mxu0 0
  %731 = vmatmul.mubr.bf16.gmra.mrb[0].mxu0 %v610
  %v732 = vpop.f32.mrb[0].mxu0
  %v733 = vadd.f32 0.0, %v732
  %v734 = vpop.f32.mrb[0].mxu0
  %v735 = vadd.f32 0.0, %v734
  %v736 = vpop.f32.mrb[0].mxu0
  %v737 = vadd.f32 0.0, %v736
  %v738 = vpop.f32.mrb[0].mxu0
  %v739 = vadd.f32 0.0, %v738
  %740 = vdwg.mxu0
  %v741 = vadd.f32 %v562, %v647
  %v742 = vadd.f32 %v563, %v649
  %v743 = vadd.f32 %v564, %v690
  %v744 = vadd.f32 %v565, %v692
  %v745 = vadd.f32 %v566, %v733
  %v746 = vadd.f32 %v567, %v735
  %v747 = vadd.f32 %v568, %v651
  %v748 = vadd.f32 %v569, %v653
  %v749 = vadd.f32 %v570, %v694
  %v750 = vadd.f32 %v571, %v696
  %v751 = vadd.f32 %v572, %v737
  %v752 = vadd.f32 %v573, %v739
  %s753 = scalar_lea.vmem %s1, 32
  %v754 = vld [vmem:[%s753] sm:$0xf]
  %v755 = vld [vmem:[%s753 + $0x4] sm:$0xf]
  %v758 = vunpack.c.l.b16 %v754
  %v759 = vunpack.c.l.b16 %v755
  %v760 = vpack.c.b16 %v759, %v758
  %761 = vrot.lane.b32.xlu0 %v61, 109
  %v762 = vpop.permute.xlu0 %761
  %763 = vrot.lane.b32.xlu0 %v62, 109
  %v764 = vpop.permute.xlu0 %763
  %765 = vrot.lane.b32.xlu0 %v63, 109
  %v766 = vpop.permute.xlu0 %765
  %767 = vrot.lane.b32.xlu0 %v64, 109
  %v768 = vpop.permute.xlu0 %767
  %769 = vrot.lane.b32.xlu0 %v65, 109
  %v770 = vpop.permute.xlu0 %769
  %771 = vrot.lane.b32.xlu0 %v66, 109
  %v772 = vpop.permute.xlu0 %771
  %773 = vrot.lane.b32.xlu0 %v67, 109
  %v774 = vpop.permute.xlu0 %773
  %vm775 = vcmask 891904
  %v776 = vsel %vm775, %v762, %v764
  %v777 = vsel %vm775, %v764, %v766
  %v778 = vsel %vm775, %v766, %v768
  %v779 = vsel %vm775, %v768, %v770
  %v780 = vsel %vm775, %v770, %v772
  %v781 = vsel %vm775, %v772, %v774
  %v789 = vsel %vm95, %v760, 0
  %791 = vmatprep.subr.bf16.mxu0 %v777
  %792 = vmatpush1.bf16.msra.mxu0 %v776
  %793 = vmatprep.subr.bf16.mxu0 0
  %794 = vmatpush1.bf16.msra.mxu0 0
  %795 = vmatprep.subr.bf16.mxu0 0
  %796 = vmatpush1.bf16.msra.mxu0 0
  %797 = vmatprep.subr.bf16.mxu0 0
  %798 = vmatpush1.bf16.msra.mxu0 0
  %799 = vmatprep.subr.bf16.mxu0 0
  %800 = vmatpush1.bf16.msra.mxu0 0
  %801 = vmatprep.subr.bf16.mxu0 0
  %802 = vmatpush1.bf16.msra.mxu0 0
  %803 = vmatprep.subr.bf16.mxu0 0
  %804 = vmatpush1.bf16.msra.mxu0 0
  %805 = vmatprep.subr.bf16.mxu0 0
  %806 = vmatpush1.bf16.msra.mxu0 0
  %807 = vmatprep.subr.bf16.mxu0 0
  %808 = vmatpush1.bf16.msra.mxu0 0
  %809 = vmatprep.subr.bf16.mxu0 0
  %810 = vmatpush1.bf16.msra.mxu0 0
  %811 = vmatprep.subr.bf16.mxu0 0
  %812 = vmatpush1.bf16.msra.mxu0 0
  %813 = vmatprep.subr.bf16.mxu0 0
  %814 = vmatpush1.bf16.msra.mxu0 0
  %815 = vmatprep.subr.bf16.mxu0 0
  %816 = vmatpush1.bf16.msra.mxu0 0
  %817 = vmatprep.subr.bf16.mxu0 0
  %818 = vmatpush1.bf16.msra.mxu0 0
  %819 = vmatprep.subr.bf16.mxu0 0
  %820 = vmatpush1.bf16.msra.mxu0 0
  %821 = vmatprep.subr.bf16.mxu0 0
  %822 = vmatpush1.bf16.msra.mxu0 0
  %823 = vmatprep.mubr.bf16.mxu0 0
  %824 = vmatmul.mubr.bf16.gmra.mrb[0].mxu0 %v789
  %v825 = vpop.f32.mrb[0].mxu0
  %v826 = vadd.f32 0.0, %v825
  %v827 = vpop.f32.mrb[0].mxu0
  %v828 = vadd.f32 0.0, %v827
  %v829 = vpop.f32.mrb[0].mxu0
  %v830 = vadd.f32 0.0, %v829
  %v831 = vpop.f32.mrb[0].mxu0
  %v832 = vadd.f32 0.0, %v831
  %833 = vdwg.mxu0
  %834 = vmatprep.subr.bf16.mxu0 %v779
  %835 = vmatpush1.bf16.msra.mxu0 %v778
  %836 = vmatprep.subr.bf16.mxu0 0
  %837 = vmatpush1.bf16.msra.mxu0 0
  %838 = vmatprep.subr.bf16.mxu0 0
  %839 = vmatpush1.bf16.msra.mxu0 0
  %840 = vmatprep.subr.bf16.mxu0 0
  %841 = vmatpush1.bf16.msra.mxu0 0
  %842 = vmatprep.subr.bf16.mxu0 0
  %843 = vmatpush1.bf16.msra.mxu0 0
  %844 = vmatprep.subr.bf16.mxu0 0
  %845 = vmatpush1.bf16.msra.mxu0 0
  %846 = vmatprep.subr.bf16.mxu0 0
  %847 = vmatpush1.bf16.msra.mxu0 0
  %848 = vmatprep.subr.bf16.mxu0 0
  %849 = vmatpush1.bf16.msra.mxu0 0
  %850 = vmatprep.subr.bf16.mxu0 0
  %851 = vmatpush1.bf16.msra.mxu0 0
  %852 = vmatprep.subr.bf16.mxu0 0
  %853 = vmatpush1.bf16.msra.mxu0 0
  %854 = vmatprep.subr.bf16.mxu0 0
  %855 = vmatpush1.bf16.msra.mxu0 0
  %856 = vmatprep.subr.bf16.mxu0 0
  %857 = vmatpush1.bf16.msra.mxu0 0
  %858 = vmatprep.subr.bf16.mxu0 0
  %859 = vmatpush1.bf16.msra.mxu0 0
  %860 = vmatprep.subr.bf16.mxu0 0
  %861 = vmatpush1.bf16.msra.mxu0 0
  %862 = vmatprep.subr.bf16.mxu0 0
  %863 = vmatpush1.bf16.msra.mxu0 0
  %864 = vmatprep.subr.bf16.mxu0 0
  %865 = vmatpush1.bf16.msra.mxu0 0
  %866 = vmatprep.mubr.bf16.mxu0 0
  %867 = vmatmul.mubr.bf16.gmra.mrb[0].mxu0 %v789
  %v868 = vpop.f32.mrb[0].mxu0
  %v869 = vadd.f32 0.0, %v868
  %v870 = vpop.f32.mrb[0].mxu0
  %v871 = vadd.f32 0.0, %v870
  %v872 = vpop.f32.mrb[0].mxu0
  %v873 = vadd.f32 0.0, %v872
  %v874 = vpop.f32.mrb[0].mxu0
  %v875 = vadd.f32 0.0, %v874
  %876 = vdwg.mxu0
  %877 = vmatprep.subr.bf16.mxu0 %v781
  %878 = vmatpush1.bf16.msra.mxu0 %v780
  %879 = vmatprep.subr.bf16.mxu0 0
  %880 = vmatpush1.bf16.msra.mxu0 0
  %881 = vmatprep.subr.bf16.mxu0 0
  %882 = vmatpush1.bf16.msra.mxu0 0
  %883 = vmatprep.subr.bf16.mxu0 0
  %884 = vmatpush1.bf16.msra.mxu0 0
  %885 = vmatprep.subr.bf16.mxu0 0
  %886 = vmatpush1.bf16.msra.mxu0 0
  %887 = vmatprep.subr.bf16.mxu0 0
  %888 = vmatpush1.bf16.msra.mxu0 0
  %889 = vmatprep.subr.bf16.mxu0 0
  %890 = vmatpush1.bf16.msra.mxu0 0
  %891 = vmatprep.subr.bf16.mxu0 0
  %892 = vmatpush1.bf16.msra.mxu0 0
  %893 = vmatprep.subr.bf16.mxu0 0
  %894 = vmatpush1.bf16.msra.mxu0 0
  %895 = vmatprep.subr.bf16.mxu0 0
  %896 = vmatpush1.bf16.msra.mxu0 0
  %897 = vmatprep.subr.bf16.mxu0 0
  %898 = vmatpush1.bf16.msra.mxu0 0
  %899 = vmatprep.subr.bf16.mxu0 0
  %900 = vmatpush1.bf16.msra.mxu0 0
  %901 = vmatprep.subr.bf16.mxu0 0
  %902 = vmatpush1.bf16.msra.mxu0 0
  %903 = vmatprep.subr.bf16.mxu0 0
  %904 = vmatpush1.bf16.msra.mxu0 0
  %905 = vmatprep.subr.bf16.mxu0 0
  %906 = vmatpush1.bf16.msra.mxu0 0
  %907 = vmatprep.subr.bf16.mxu0 0
  %908 = vmatpush1.bf16.msra.mxu0 0
  %909 = vmatprep.mubr.bf16.mxu0 0
  %910 = vmatmul.mubr.bf16.gmra.mrb[0].mxu0 %v789
  %v911 = vpop.f32.mrb[0].mxu0
  %v912 = vadd.f32 0.0, %v911
  %v913 = vpop.f32.mrb[0].mxu0
  %v914 = vadd.f32 0.0, %v913
  %v915 = vpop.f32.mrb[0].mxu0
  %v916 = vadd.f32 0.0, %v915
  %v917 = vpop.f32.mrb[0].mxu0
  %v918 = vadd.f32 0.0, %v917
  %919 = vdwg.mxu0
  %v920 = vadd.f32 %v741, %v826
  %v921 = vadd.f32 %v742, %v828
  %v922 = vadd.f32 %v743, %v869
  %v923 = vadd.f32 %v744, %v871
  %v924 = vadd.f32 %v745, %v912
  %v925 = vadd.f32 %v746, %v914
  %v926 = vadd.f32 %v747, %v830
  %v927 = vadd.f32 %v748, %v832
  %v928 = vadd.f32 %v749, %v873
  %v929 = vadd.f32 %v750, %v875
  %v930 = vadd.f32 %v751, %v916
  %v931 = vadd.f32 %v752, %v918
  %s932 = scalar_lea.vmem %s1, 40
  %v933 = vld [vmem:[%s932] sm:$0xf]
  %v934 = vld [vmem:[%s932 + $0x4] sm:$0xf]
  %v937 = vunpack.c.l.b16 %v933
  %v938 = vunpack.c.l.b16 %v934
  %v939 = vpack.c.b16 %v938, %v937
  %940 = vrot.lane.b32.xlu0 %v61, 108
  %v941 = vpop.permute.xlu0 %940
  %942 = vrot.lane.b32.xlu0 %v62, 108
  %v943 = vpop.permute.xlu0 %942
  %944 = vrot.lane.b32.xlu0 %v63, 108
  %v945 = vpop.permute.xlu0 %944
  %946 = vrot.lane.b32.xlu0 %v64, 108
  %v947 = vpop.permute.xlu0 %946
  %948 = vrot.lane.b32.xlu0 %v65, 108
  %v949 = vpop.permute.xlu0 %948
  %950 = vrot.lane.b32.xlu0 %v66, 108
  %v951 = vpop.permute.xlu0 %950
  %952 = vrot.lane.b32.xlu0 %v67, 108
  %v953 = vpop.permute.xlu0 %952
  %vm954 = vcmask 883712
  %v955 = vsel %vm954, %v941, %v943
  %v956 = vsel %vm954, %v943, %v945
  %v957 = vsel %vm954, %v945, %v947
  %v958 = vsel %vm954, %v947, %v949
  %v959 = vsel %vm954, %v949, %v951
  %v960 = vsel %vm954, %v951, %v953
  %v968 = vsel %vm95, %v939, 0
  %970 = vmatprep.subr.bf16.mxu0 %v956
  %971 = vmatpush1.bf16.msra.mxu0 %v955
  %972 = vmatprep.subr.bf16.mxu0 0
  %973 = vmatpush1.bf16.msra.mxu0 0
  %974 = vmatprep.subr.bf16.mxu0 0
  %975 = vmatpush1.bf16.msra.mxu0 0
  %976 = vmatprep.subr.bf16.mxu0 0
  %977 = vmatpush1.bf16.msra.mxu0 0
  %978 = vmatprep.subr.bf16.mxu0 0
  %979 = vmatpush1.bf16.msra.mxu0 0
  %980 = vmatprep.subr.bf16.mxu0 0
  %981 = vmatpush1.bf16.msra.mxu0 0
  %982 = vmatprep.subr.bf16.mxu0 0
  %983 = vmatpush1.bf16.msra.mxu0 0
  %984 = vmatprep.subr.bf16.mxu0 0
  %985 = vmatpush1.bf16.msra.mxu0 0
  %986 = vmatprep.subr.bf16.mxu0 0
  %987 = vmatpush1.bf16.msra.mxu0 0
  %988 = vmatprep.subr.bf16.mxu0 0
  %989 = vmatpush1.bf16.msra.mxu0 0
  %990 = vmatprep.subr.bf16.mxu0 0
  %991 = vmatpush1.bf16.msra.mxu0 0
  %992 = vmatprep.subr.bf16.mxu0 0
  %993 = vmatpush1.bf16.msra.mxu0 0
  %994 = vmatprep.subr.bf16.mxu0 0
  %995 = vmatpush1.bf16.msra.mxu0 0
  %996 = vmatprep.subr.bf16.mxu0 0
  %997 = vmatpush1.bf16.msra.mxu0 0
  %998 = vmatprep.subr.bf16.mxu0 0
  %999 = vmatpush1.bf16.msra.mxu0 0
  %1000 = vmatprep.subr.bf16.mxu0 0
  %1001 = vmatpush1.bf16.msra.mxu0 0
  %1002 = vmatprep.mubr.bf16.mxu0 0
  %1003 = vmatmul.mubr.bf16.gmra.mrb[0].mxu0 %v968
  %v1004 = vpop.f32.mrb[0].mxu0
  %v1005 = vadd.f32 0.0, %v1004
  %v1006 = vpop.f32.mrb[0].mxu0
  %v1007 = vadd.f32 0.0, %v1006
  %v1008 = vpop.f32.mrb[0].mxu0
  %v1009 = vadd.f32 0.0, %v1008
  %v1010 = vpop.f32.mrb[0].mxu0
  %v1011 = vadd.f32 0.0, %v1010
  %1012 = vdwg.mxu0
  %1013 = vmatprep.subr.bf16.mxu0 %v958
  %1014 = vmatpush1.bf16.msra.mxu0 %v957
  %1015 = vmatprep.subr.bf16.mxu0 0
  %1016 = vmatpush1.bf16.msra.mxu0 0
  %1017 = vmatprep.subr.bf16.mxu0 0
  %1018 = vmatpush1.bf16.msra.mxu0 0
  %1019 = vmatprep.subr.bf16.mxu0 0
  %1020 = vmatpush1.bf16.msra.mxu0 0
  %1021 = vmatprep.subr.bf16.mxu0 0
  %1022 = vmatpush1.bf16.msra.mxu0 0
  %1023 = vmatprep.subr.bf16.mxu0 0
  %1024 = vmatpush1.bf16.msra.mxu0 0
  %1025 = vmatprep.subr.bf16.mxu0 0
  %1026 = vmatpush1.bf16.msra.mxu0 0
  %1027 = vmatprep.subr.bf16.mxu0 0
  %1028 = vmatpush1.bf16.msra.mxu0 0
  %1029 = vmatprep.subr.bf16.mxu0 0
  %1030 = vmatpush1.bf16.msra.mxu0 0
  %1031 = vmatprep.subr.bf16.mxu0 0
  %1032 = vmatpush1.bf16.msra.mxu0 0
  %1033 = vmatprep.subr.bf16.mxu0 0
  %1034 = vmatpush1.bf16.msra.mxu0 0
  %1035 = vmatprep.subr.bf16.mxu0 0
  %1036 = vmatpush1.bf16.msra.mxu0 0
  %1037 = vmatprep.subr.bf16.mxu0 0
  %1038 = vmatpush1.bf16.msra.mxu0 0
  %1039 = vmatprep.subr.bf16.mxu0 0
  %1040 = vmatpush1.bf16.msra.mxu0 0
  %1041 = vmatprep.subr.bf16.mxu0 0
  %1042 = vmatpush1.bf16.msra.mxu0 0
  %1043 = vmatprep.subr.bf16.mxu0 0
  %1044 = vmatpush1.bf16.msra.mxu0 0
  %1045 = vmatprep.mubr.bf16.mxu0 0
  %1046 = vmatmul.mubr.bf16.gmra.mrb[0].mxu0 %v968
  %v1047 = vpop.f32.mrb[0].mxu0
  %v1048 = vadd.f32 0.0, %v1047
  %v1049 = vpop.f32.mrb[0].mxu0
  %v1050 = vadd.f32 0.0, %v1049
  %v1051 = vpop.f32.mrb[0].mxu0
  %v1052 = vadd.f32 0.0, %v1051
  %v1053 = vpop.f32.mrb[0].mxu0
  %v1054 = vadd.f32 0.0, %v1053
  %1055 = vdwg.mxu0
  %1056 = vmatprep.subr.bf16.mxu0 %v960
  %1057 = vmatpush1.bf16.msra.mxu0 %v959
  %1058 = vmatprep.subr.bf16.mxu0 0
  %1059 = vmatpush1.bf16.msra.mxu0 0
  %1060 = vmatprep.subr.bf16.mxu0 0
  %1061 = vmatpush1.bf16.msra.mxu0 0
  %1062 = vmatprep.subr.bf16.mxu0 0
  %1063 = vmatpush1.bf16.msra.mxu0 0
  %1064 = vmatprep.subr.bf16.mxu0 0
  %1065 = vmatpush1.bf16.msra.mxu0 0
  %1066 = vmatprep.subr.bf16.mxu0 0
  %1067 = vmatpush1.bf16.msra.mxu0 0
  %1068 = vmatprep.subr.bf16.mxu0 0
  %1069 = vmatpush1.bf16.msra.mxu0 0
  %1070 = vmatprep.subr.bf16.mxu0 0
  %1071 = vmatpush1.bf16.msra.mxu0 0
  %1072 = vmatprep.subr.bf16.mxu0 0
  %1073 = vmatpush1.bf16.msra.mxu0 0
  %1074 = vmatprep.subr.bf16.mxu0 0
  %1075 = vmatpush1.bf16.msra.mxu0 0
  %1076 = vmatprep.subr.bf16.mxu0 0
  %1077 = vmatpush1.bf16.msra.mxu0 0
  %1078 = vmatprep.subr.bf16.mxu0 0
  %1079 = vmatpush1.bf16.msra.mxu0 0
  %1080 = vmatprep.subr.bf16.mxu0 0
  %1081 = vmatpush1.bf16.msra.mxu0 0
  %1082 = vmatprep.subr.bf16.mxu0 0
  %1083 = vmatpush1.bf16.msra.mxu0 0
  %1084 = vmatprep.subr.bf16.mxu0 0
  %1085 = vmatpush1.bf16.msra.mxu0 0
  %1086 = vmatprep.subr.bf16.mxu0 0
  %1087 = vmatpush1.bf16.msra.mxu0 0
  %1088 = vmatprep.mubr.bf16.mxu0 0
  %1089 = vmatmul.mubr.bf16.gmra.mrb[0].mxu0 %v968
  %v1090 = vpop.f32.mrb[0].mxu0
  %v1091 = vadd.f32 0.0, %v1090
  %v1092 = vpop.f32.mrb[0].mxu0
  %v1093 = vadd.f32 0.0, %v1092
  %v1094 = vpop.f32.mrb[0].mxu0
  %v1095 = vadd.f32 0.0, %v1094
  %v1096 = vpop.f32.mrb[0].mxu0
  %v1097 = vadd.f32 0.0, %v1096
  %1098 = vdwg.mxu0
  %v1099 = vadd.f32 %v920, %v1005
  %v1100 = vadd.f32 %v921, %v1007
  %v1101 = vadd.f32 %v922, %v1048
  %v1102 = vadd.f32 %v923, %v1050
  %v1103 = vadd.f32 %v924, %v1091
  %v1104 = vadd.f32 %v925, %v1093
  %v1105 = vadd.f32 %v926, %v1009
  %v1106 = vadd.f32 %v927, %v1011
  %v1107 = vadd.f32 %v928, %v1052
  %v1108 = vadd.f32 %v929, %v1054
  %v1109 = vadd.f32 %v930, %v1095
  %v1110 = vadd.f32 %v931, %v1097
  %s1111 = scalar_lea.vmem %s1, 48
  %v1112 = vld [vmem:[%s1111] sm:$0xf]
  %v1113 = vld [vmem:[%s1111 + $0x4] sm:$0xf]
  %v1116 = vunpack.c.l.b16 %v1112
  %v1117 = vunpack.c.l.b16 %v1113
  %v1118 = vpack.c.b16 %v1117, %v1116
  %1119 = vrot.lane.b32.xlu0 %v61, 92
  %v1120 = vpop.permute.xlu0 %1119
  %1121 = vrot.lane.b32.xlu0 %v62, 92
  %v1122 = vpop.permute.xlu0 %1121
  %1123 = vrot.lane.b32.xlu0 %v63, 92
  %v1124 = vpop.permute.xlu0 %1123
  %1125 = vrot.lane.b32.xlu0 %v64, 92
  %v1126 = vpop.permute.xlu0 %1125
  %1127 = vrot.lane.b32.xlu0 %v65, 92
  %v1128 = vpop.permute.xlu0 %1127
  %1129 = vrot.lane.b32.xlu0 %v66, 92
  %v1130 = vpop.permute.xlu0 %1129
  %1131 = vrot.lane.b32.xlu0 %v67, 92
  %v1132 = vpop.permute.xlu0 %1131
  %vm1133 = vcmask 752640
  %v1134 = vsel %vm1133, %v1120, %v1122
  %v1135 = vsel %vm1133, %v1122, %v1124
  %v1136 = vsel %vm1133, %v1124, %v1126
  %v1137 = vsel %vm1133, %v1126, %v1128
  %v1138 = vsel %vm1133, %v1128, %v1130
  %v1139 = vsel %vm1133, %v1130, %v1132
  %v1147 = vsel %vm95, %v1118, 0
  %1149 = vmatprep.subr.bf16.mxu0 %v1135
  %1150 = vmatpush1.bf16.msra.mxu0 %v1134
  %1151 = vmatprep.subr.bf16.mxu0 0
  %1152 = vmatpush1.bf16.msra.mxu0 0
  %1153 = vmatprep.subr.bf16.mxu0 0
  %1154 = vmatpush1.bf16.msra.mxu0 0
  %1155 = vmatprep.subr.bf16.mxu0 0
  %1156 = vmatpush1.bf16.msra.mxu0 0
  %1157 = vmatprep.subr.bf16.mxu0 0
  %1158 = vmatpush1.bf16.msra.mxu0 0
  %1159 = vmatprep.subr.bf16.mxu0 0
  %1160 = vmatpush1.bf16.msra.mxu0 0
  %1161 = vmatprep.subr.bf16.mxu0 0
  %1162 = vmatpush1.bf16.msra.mxu0 0
  %1163 = vmatprep.subr.bf16.mxu0 0
  %1164 = vmatpush1.bf16.msra.mxu0 0
  %1165 = vmatprep.subr.bf16.mxu0 0
  %1166 = vmatpush1.bf16.msra.mxu0 0
  %1167 = vmatprep.subr.bf16.mxu0 0
  %1168 = vmatpush1.bf16.msra.mxu0 0
  %1169 = vmatprep.subr.bf16.mxu0 0
  %1170 = vmatpush1.bf16.msra.mxu0 0
  %1171 = vmatprep.subr.bf16.mxu0 0
  %1172 = vmatpush1.bf16.msra.mxu0 0
  %1173 = vmatprep.subr.bf16.mxu0 0
  %1174 = vmatpush1.bf16.msra.mxu0 0
  %1175 = vmatprep.subr.bf16.mxu0 0
  %1176 = vmatpush1.bf16.msra.mxu0 0
  %1177 = vmatprep.subr.bf16.mxu0 0
  %1178 = vmatpush1.bf16.msra.mxu0 0
  %1179 = vmatprep.subr.bf16.mxu0 0
  %1180 = vmatpush1.bf16.msra.mxu0 0
  %1181 = vmatprep.mubr.bf16.mxu0 0
  %1182 = vmatmul.mubr.bf16.gmra.mrb[0].mxu0 %v1147
  %v1183 = vpop.f32.mrb[0].mxu0
  %v1184 = vadd.f32 0.0, %v1183
  %v1185 = vpop.f32.mrb[0].mxu0
  %v1186 = vadd.f32 0.0, %v1185
  %v1187 = vpop.f32.mrb[0].mxu0
  %v1188 = vadd.f32 0.0, %v1187
  %v1189 = vpop.f32.mrb[0].mxu0
  %v1190 = vadd.f32 0.0, %v1189
  %1191 = vdwg.mxu0
  %1192 = vmatprep.subr.bf16.mxu0 %v1137
  %1193 = vmatpush1.bf16.msra.mxu0 %v1136
  %1194 = vmatprep.subr.bf16.mxu0 0
  %1195 = vmatpush1.bf16.msra.mxu0 0
  %1196 = vmatprep.subr.bf16.mxu0 0
  %1197 = vmatpush1.bf16.msra.mxu0 0
  %1198 = vmatprep.subr.bf16.mxu0 0
  %1199 = vmatpush1.bf16.msra.mxu0 0
  %1200 = vmatprep.subr.bf16.mxu0 0
  %1201 = vmatpush1.bf16.msra.mxu0 0
  %1202 = vmatprep.subr.bf16.mxu0 0
  %1203 = vmatpush1.bf16.msra.mxu0 0
  %1204 = vmatprep.subr.bf16.mxu0 0
  %1205 = vmatpush1.bf16.msra.mxu0 0
  %1206 = vmatprep.subr.bf16.mxu0 0
  %1207 = vmatpush1.bf16.msra.mxu0 0
  %1208 = vmatprep.subr.bf16.mxu0 0
  %1209 = vmatpush1.bf16.msra.mxu0 0
  %1210 = vmatprep.subr.bf16.mxu0 0
  %1211 = vmatpush1.bf16.msra.mxu0 0
  %1212 = vmatprep.subr.bf16.mxu0 0
  %1213 = vmatpush1.bf16.msra.mxu0 0
  %1214 = vmatprep.subr.bf16.mxu0 0
  %1215 = vmatpush1.bf16.msra.mxu0 0
  %1216 = vmatprep.subr.bf16.mxu0 0
  %1217 = vmatpush1.bf16.msra.mxu0 0
  %1218 = vmatprep.subr.bf16.mxu0 0
  %1219 = vmatpush1.bf16.msra.mxu0 0
  %1220 = vmatprep.subr.bf16.mxu0 0
  %1221 = vmatpush1.bf16.msra.mxu0 0
  %1222 = vmatprep.subr.bf16.mxu0 0
  %1223 = vmatpush1.bf16.msra.mxu0 0
  %1224 = vmatprep.mubr.bf16.mxu0 0
  %1225 = vmatmul.mubr.bf16.gmra.mrb[0].mxu0 %v1147
  %v1226 = vpop.f32.mrb[0].mxu0
  %v1227 = vadd.f32 0.0, %v1226
  %v1228 = vpop.f32.mrb[0].mxu0
  %v1229 = vadd.f32 0.0, %v1228
  %v1230 = vpop.f32.mrb[0].mxu0
  %v1231 = vadd.f32 0.0, %v1230
  %v1232 = vpop.f32.mrb[0].mxu0
  %v1233 = vadd.f32 0.0, %v1232
  %1234 = vdwg.mxu0
  %1235 = vmatprep.subr.bf16.mxu0 %v1139
  %1236 = vmatpush1.bf16.msra.mxu0 %v1138
  %1237 = vmatprep.subr.bf16.mxu0 0
  %1238 = vmatpush1.bf16.msra.mxu0 0
  %1239 = vmatprep.subr.bf16.mxu0 0
  %1240 = vmatpush1.bf16.msra.mxu0 0
  %1241 = vmatprep.subr.bf16.mxu0 0
  %1242 = vmatpush1.bf16.msra.mxu0 0
  %1243 = vmatprep.subr.bf16.mxu0 0
  %1244 = vmatpush1.bf16.msra.mxu0 0
  %1245 = vmatprep.subr.bf16.mxu0 0
  %1246 = vmatpush1.bf16.msra.mxu0 0
  %1247 = vmatprep.subr.bf16.mxu0 0
  %1248 = vmatpush1.bf16.msra.mxu0 0
  %1249 = vmatprep.subr.bf16.mxu0 0
  %1250 = vmatpush1.bf16.msra.mxu0 0
  %1251 = vmatprep.subr.bf16.mxu0 0
  %1252 = vmatpush1.bf16.msra.mxu0 0
  %1253 = vmatprep.subr.bf16.mxu0 0
  %1254 = vmatpush1.bf16.msra.mxu0 0
  %1255 = vmatprep.subr.bf16.mxu0 0
  %1256 = vmatpush1.bf16.msra.mxu0 0
  %1257 = vmatprep.subr.bf16.mxu0 0
  %1258 = vmatpush1.bf16.msra.mxu0 0
  %1259 = vmatprep.subr.bf16.mxu0 0
  %1260 = vmatpush1.bf16.msra.mxu0 0
  %1261 = vmatprep.subr.bf16.mxu0 0
  %1262 = vmatpush1.bf16.msra.mxu0 0
  %1263 = vmatprep.subr.bf16.mxu0 0
  %1264 = vmatpush1.bf16.msra.mxu0 0
  %1265 = vmatprep.subr.bf16.mxu0 0
  %1266 = vmatpush1.bf16.msra.mxu0 0
  %1267 = vmatprep.mubr.bf16.mxu0 0
  %1268 = vmatmul.mubr.bf16.gmra.mrb[0].mxu0 %v1147
  %v1269 = vpop.f32.mrb[0].mxu0
  %v1270 = vadd.f32 0.0, %v1269
  %v1271 = vpop.f32.mrb[0].mxu0
  %v1272 = vadd.f32 0.0, %v1271
  %v1273 = vpop.f32.mrb[0].mxu0
  %v1274 = vadd.f32 0.0, %v1273
  %v1275 = vpop.f32.mrb[0].mxu0
  %v1276 = vadd.f32 0.0, %v1275
  %1277 = vdwg.mxu0
  %v1278 = vadd.f32 %v1099, %v1184
  %v1279 = vadd.f32 %v1100, %v1186
  %v1280 = vadd.f32 %v1101, %v1227
  %v1281 = vadd.f32 %v1102, %v1229
  %v1282 = vadd.f32 %v1103, %v1270
  %v1283 = vadd.f32 %v1104, %v1272
  %v1284 = vadd.f32 %v1105, %v1188
  %v1285 = vadd.f32 %v1106, %v1190
  %v1286 = vadd.f32 %v1107, %v1231
  %v1287 = vadd.f32 %v1108, %v1233
  %v1288 = vadd.f32 %v1109, %v1274
  %v1289 = vadd.f32 %v1110, %v1276
  %s1290 = scalar_lea.vmem %s1, 56
  %v1291 = vld [vmem:[%s1290] sm:$0xf]
  %v1292 = vld [vmem:[%s1290 + $0x4] sm:$0xf]
  %v1295 = vunpack.c.l.b16 %v1291
  %v1296 = vunpack.c.l.b16 %v1292
  %v1297 = vpack.c.b16 %v1296, %v1295
  %1298 = vrot.lane.b32.xlu0 %v61, 91
  %v1299 = vpop.permute.xlu0 %1298
  %1300 = vrot.lane.b32.xlu0 %v62, 91
  %v1301 = vpop.permute.xlu0 %1300
  %1302 = vrot.lane.b32.xlu0 %v63, 91
  %v1303 = vpop.permute.xlu0 %1302
  %1304 = vrot.lane.b32.xlu0 %v64, 91
  %v1305 = vpop.permute.xlu0 %1304
  %1306 = vrot.lane.b32.xlu0 %v65, 91
  %v1307 = vpop.permute.xlu0 %1306
  %1308 = vrot.lane.b32.xlu0 %v66, 91
  %v1309 = vpop.permute.xlu0 %1308
  %1310 = vrot.lane.b32.xlu0 %v67, 91
  %v1311 = vpop.permute.xlu0 %1310
  %vm1312 = vcmask 744448
  %v1313 = vsel %vm1312, %v1299, %v1301
  %v1314 = vsel %vm1312, %v1301, %v1303
  %v1315 = vsel %vm1312, %v1303, %v1305
  %v1316 = vsel %vm1312, %v1305, %v1307
  %v1317 = vsel %vm1312, %v1307, %v1309
  %v1318 = vsel %vm1312, %v1309, %v1311
  %v1326 = vsel %vm95, %v1297, 0
  %1328 = vmatprep.subr.bf16.mxu0 %v1314
  %1329 = vmatpush1.bf16.msra.mxu0 %v1313
  %1330 = vmatprep.subr.bf16.mxu0 0
  %1331 = vmatpush1.bf16.msra.mxu0 0
  %1332 = vmatprep.subr.bf16.mxu0 0
  %1333 = vmatpush1.bf16.msra.mxu0 0
  %1334 = vmatprep.subr.bf16.mxu0 0
  %1335 = vmatpush1.bf16.msra.mxu0 0
  %1336 = vmatprep.subr.bf16.mxu0 0
  %1337 = vmatpush1.bf16.msra.mxu0 0
  %1338 = vmatprep.subr.bf16.mxu0 0
  %1339 = vmatpush1.bf16.msra.mxu0 0
  %1340 = vmatprep.subr.bf16.mxu0 0
  %1341 = vmatpush1.bf16.msra.mxu0 0
  %1342 = vmatprep.subr.bf16.mxu0 0
  %1343 = vmatpush1.bf16.msra.mxu0 0
  %1344 = vmatprep.subr.bf16.mxu0 0
  %1345 = vmatpush1.bf16.msra.mxu0 0
  %1346 = vmatprep.subr.bf16.mxu0 0
  %1347 = vmatpush1.bf16.msra.mxu0 0
  %1348 = vmatprep.subr.bf16.mxu0 0
  %1349 = vmatpush1.bf16.msra.mxu0 0
  %1350 = vmatprep.subr.bf16.mxu0 0
  %1351 = vmatpush1.bf16.msra.mxu0 0
  %1352 = vmatprep.subr.bf16.mxu0 0
  %1353 = vmatpush1.bf16.msra.mxu0 0
  %1354 = vmatprep.subr.bf16.mxu0 0
  %1355 = vmatpush1.bf16.msra.mxu0 0
  %1356 = vmatprep.subr.bf16.mxu0 0
  %1357 = vmatpush1.bf16.msra.mxu0 0
  %1358 = vmatprep.subr.bf16.mxu0 0
  %1359 = vmatpush1.bf16.msra.mxu0 0
  %1360 = vmatprep.mubr.bf16.mxu0 0
  %1361 = vmatmul.mubr.bf16.gmra.mrb[0].mxu0 %v1326
  %v1362 = vpop.f32.mrb[0].mxu0
  %v1363 = vadd.f32 0.0, %v1362
  %v1364 = vpop.f32.mrb[0].mxu0
  %v1365 = vadd.f32 0.0, %v1364
  %v1366 = vpop.f32.mrb[0].mxu0
  %v1367 = vadd.f32 0.0, %v1366
  %v1368 = vpop.f32.mrb[0].mxu0
  %v1369 = vadd.f32 0.0, %v1368
  %1370 = vdwg.mxu0
  %1371 = vmatprep.subr.bf16.mxu0 %v1316
  %1372 = vmatpush1.bf16.msra.mxu0 %v1315
  %1373 = vmatprep.subr.bf16.mxu0 0
  %1374 = vmatpush1.bf16.msra.mxu0 0
  %1375 = vmatprep.subr.bf16.mxu0 0
  %1376 = vmatpush1.bf16.msra.mxu0 0
  %1377 = vmatprep.subr.bf16.mxu0 0
  %1378 = vmatpush1.bf16.msra.mxu0 0
  %1379 = vmatprep.subr.bf16.mxu0 0
  %1380 = vmatpush1.bf16.msra.mxu0 0
  %1381 = vmatprep.subr.bf16.mxu0 0
  %1382 = vmatpush1.bf16.msra.mxu0 0
  %1383 = vmatprep.subr.bf16.mxu0 0
  %1384 = vmatpush1.bf16.msra.mxu0 0
  %1385 = vmatprep.subr.bf16.mxu0 0
  %1386 = vmatpush1.bf16.msra.mxu0 0
  %1387 = vmatprep.subr.bf16.mxu0 0
  %1388 = vmatpush1.bf16.msra.mxu0 0
  %1389 = vmatprep.subr.bf16.mxu0 0
  %1390 = vmatpush1.bf16.msra.mxu0 0
  %1391 = vmatprep.subr.bf16.mxu0 0
  %1392 = vmatpush1.bf16.msra.mxu0 0
  %1393 = vmatprep.subr.bf16.mxu0 0
  %1394 = vmatpush1.bf16.msra.mxu0 0
  %1395 = vmatprep.subr.bf16.mxu0 0
  %1396 = vmatpush1.bf16.msra.mxu0 0
  %1397 = vmatprep.subr.bf16.mxu0 0
  %1398 = vmatpush1.bf16.msra.mxu0 0
  %1399 = vmatprep.subr.bf16.mxu0 0
  %1400 = vmatpush1.bf16.msra.mxu0 0
  %1401 = vmatprep.subr.bf16.mxu0 0
  %1402 = vmatpush1.bf16.msra.mxu0 0
  %1403 = vmatprep.mubr.bf16.mxu0 0
  %1404 = vmatmul.mubr.bf16.gmra.mrb[0].mxu0 %v1326
  %v1405 = vpop.f32.mrb[0].mxu0
  %v1406 = vadd.f32 0.0, %v1405
  %v1407 = vpop.f32.mrb[0].mxu0
  %v1408 = vadd.f32 0.0, %v1407
  %v1409 = vpop.f32.mrb[0].mxu0
  %v1410 = vadd.f32 0.0, %v1409
  %v1411 = vpop.f32.mrb[0].mxu0
  %v1412 = vadd.f32 0.0, %v1411
  %1413 = vdwg.mxu0
  %1414 = vmatprep.subr.bf16.mxu0 %v1318
  %1415 = vmatpush1.bf16.msra.mxu0 %v1317
  %1416 = vmatprep.subr.bf16.mxu0 0
  %1417 = vmatpush1.bf16.msra.mxu0 0
  %1418 = vmatprep.subr.bf16.mxu0 0
  %1419 = vmatpush1.bf16.msra.mxu0 0
  %1420 = vmatprep.subr.bf16.mxu0 0
  %1421 = vmatpush1.bf16.msra.mxu0 0
  %1422 = vmatprep.subr.bf16.mxu0 0
  %1423 = vmatpush1.bf16.msra.mxu0 0
  %1424 = vmatprep.subr.bf16.mxu0 0
  %1425 = vmatpush1.bf16.msra.mxu0 0
  %1426 = vmatprep.subr.bf16.mxu0 0
  %1427 = vmatpush1.bf16.msra.mxu0 0
  %1428 = vmatprep.subr.bf16.mxu0 0
  %1429 = vmatpush1.bf16.msra.mxu0 0
  %1430 = vmatprep.subr.bf16.mxu0 0
  %1431 = vmatpush1.bf16.msra.mxu0 0
  %1432 = vmatprep.subr.bf16.mxu0 0
  %1433 = vmatpush1.bf16.msra.mxu0 0
  %1434 = vmatprep.subr.bf16.mxu0 0
  %1435 = vmatpush1.bf16.msra.mxu0 0
  %1436 = vmatprep.subr.bf16.mxu0 0
  %1437 = vmatpush1.bf16.msra.mxu0 0
  %1438 = vmatprep.subr.bf16.mxu0 0
  %1439 = vmatpush1.bf16.msra.mxu0 0
  %1440 = vmatprep.subr.bf16.mxu0 0
  %1441 = vmatpush1.bf16.msra.mxu0 0
  %1442 = vmatprep.subr.bf16.mxu0 0
  %1443 = vmatpush1.bf16.msra.mxu0 0
  %1444 = vmatprep.subr.bf16.mxu0 0
  %1445 = vmatpush1.bf16.msra.mxu0 0
  %1446 = vmatprep.mubr.bf16.mxu0 0
  %1447 = vmatmul.mubr.bf16.gmra.mrb[0].mxu0 %v1326
  %v1448 = vpop.f32.mrb[0].mxu0
  %v1449 = vadd.f32 0.0, %v1448
  %v1450 = vpop.f32.mrb[0].mxu0
  %v1451 = vadd.f32 0.0, %v1450
  %v1452 = vpop.f32.mrb[0].mxu0
  %v1453 = vadd.f32 0.0, %v1452
  %v1454 = vpop.f32.mrb[0].mxu0
  %v1455 = vadd.f32 0.0, %v1454
  %1456 = vdwg.mxu0
  %v1457 = vadd.f32 %v1278, %v1363
  %v1458 = vadd.f32 %v1279, %v1365
  %v1459 = vadd.f32 %v1280, %v1406
  %v1460 = vadd.f32 %v1281, %v1408
  %v1461 = vadd.f32 %v1282, %v1449
  %v1462 = vadd.f32 %v1283, %v1451
  %v1463 = vadd.f32 %v1284, %v1367
  %v1464 = vadd.f32 %v1285, %v1369
  %v1465 = vadd.f32 %v1286, %v1410
  %v1466 = vadd.f32 %v1287, %v1412
  %v1467 = vadd.f32 %v1288, %v1453
  %v1468 = vadd.f32 %v1289, %v1455
  %s1469 = scalar_lea.vmem %s1, 64
  %v1470 = vld [vmem:[%s1469] sm:$0xf]
  %v1471 = vld [vmem:[%s1469 + $0x4] sm:$0xf]
  %v1474 = vunpack.c.l.b16 %v1470
  %v1475 = vunpack.c.l.b16 %v1471
  %v1476 = vpack.c.b16 %v1475, %v1474
  %1477 = vrot.lane.b32.xlu0 %v61, 90
  %v1478 = vpop.permute.xlu0 %1477
  %1479 = vrot.lane.b32.xlu0 %v62, 90
  %v1480 = vpop.permute.xlu0 %1479
  %1481 = vrot.lane.b32.xlu0 %v63, 90
  %v1482 = vpop.permute.xlu0 %1481
  %1483 = vrot.lane.b32.xlu0 %v64, 90
  %v1484 = vpop.permute.xlu0 %1483
  %1485 = vrot.lane.b32.xlu0 %v65, 90
  %v1486 = vpop.permute.xlu0 %1485
  %1487 = vrot.lane.b32.xlu0 %v66, 90
  %v1488 = vpop.permute.xlu0 %1487
  %1489 = vrot.lane.b32.xlu0 %v67, 90
  %v1490 = vpop.permute.xlu0 %1489
  %vm1491 = vcmask 736256
  %v1492 = vsel %vm1491, %v1478, %v1480
  %v1493 = vsel %vm1491, %v1480, %v1482
  %v1494 = vsel %vm1491, %v1482, %v1484
  %v1495 = vsel %vm1491, %v1484, %v1486
  %v1496 = vsel %vm1491, %v1486, %v1488
  %v1497 = vsel %vm1491, %v1488, %v1490
  %v1505 = vsel %vm95, %v1476, 0
  %1507 = vmatprep.subr.bf16.mxu0 %v1493
  %1508 = vmatpush1.bf16.msra.mxu0 %v1492
  %1509 = vmatprep.subr.bf16.mxu0 0
  %1510 = vmatpush1.bf16.msra.mxu0 0
  %1511 = vmatprep.subr.bf16.mxu0 0
  %1512 = vmatpush1.bf16.msra.mxu0 0
  %1513 = vmatprep.subr.bf16.mxu0 0
  %1514 = vmatpush1.bf16.msra.mxu0 0
  %1515 = vmatprep.subr.bf16.mxu0 0
  %1516 = vmatpush1.bf16.msra.mxu0 0
  %1517 = vmatprep.subr.bf16.mxu0 0
  %1518 = vmatpush1.bf16.msra.mxu0 0
  %1519 = vmatprep.subr.bf16.mxu0 0
  %1520 = vmatpush1.bf16.msra.mxu0 0
  %1521 = vmatprep.subr.bf16.mxu0 0
  %1522 = vmatpush1.bf16.msra.mxu0 0
  %1523 = vmatprep.subr.bf16.mxu0 0
  %1524 = vmatpush1.bf16.msra.mxu0 0
  %1525 = vmatprep.subr.bf16.mxu0 0
  %1526 = vmatpush1.bf16.msra.mxu0 0
  %1527 = vmatprep.subr.bf16.mxu0 0
  %1528 = vmatpush1.bf16.msra.mxu0 0
  %1529 = vmatprep.subr.bf16.mxu0 0
  %1530 = vmatpush1.bf16.msra.mxu0 0
  %1531 = vmatprep.subr.bf16.mxu0 0
  %1532 = vmatpush1.bf16.msra.mxu0 0
  %1533 = vmatprep.subr.bf16.mxu0 0
  %1534 = vmatpush1.bf16.msra.mxu0 0
  %1535 = vmatprep.subr.bf16.mxu0 0
  %1536 = vmatpush1.bf16.msra.mxu0 0
  %1537 = vmatprep.subr.bf16.mxu0 0
  %1538 = vmatpush1.bf16.msra.mxu0 0
  %1539 = vmatprep.mubr.bf16.mxu0 0
  %1540 = vmatmul.mubr.bf16.gmra.mrb[0].mxu0 %v1505
  %v1541 = vpop.f32.mrb[0].mxu0
  %v1542 = vadd.f32 0.0, %v1541
  %v1543 = vpop.f32.mrb[0].mxu0
  %v1544 = vadd.f32 0.0, %v1543
  %v1545 = vpop.f32.mrb[0].mxu0
  %v1546 = vadd.f32 0.0, %v1545
  %v1547 = vpop.f32.mrb[0].mxu0
  %v1548 = vadd.f32 0.0, %v1547
  %1549 = vdwg.mxu0
  %1550 = vmatprep.subr.bf16.mxu0 %v1495
  %1551 = vmatpush1.bf16.msra.mxu0 %v1494
  %1552 = vmatprep.subr.bf16.mxu0 0
  %1553 = vmatpush1.bf16.msra.mxu0 0
  %1554 = vmatprep.subr.bf16.mxu0 0
  %1555 = vmatpush1.bf16.msra.mxu0 0
  %1556 = vmatprep.subr.bf16.mxu0 0
  %1557 = vmatpush1.bf16.msra.mxu0 0
  %1558 = vmatprep.subr.bf16.mxu0 0
  %1559 = vmatpush1.bf16.msra.mxu0 0
  %1560 = vmatprep.subr.bf16.mxu0 0
  %1561 = vmatpush1.bf16.msra.mxu0 0
  %1562 = vmatprep.subr.bf16.mxu0 0
  %1563 = vmatpush1.bf16.msra.mxu0 0
  %1564 = vmatprep.subr.bf16.mxu0 0
  %1565 = vmatpush1.bf16.msra.mxu0 0
  %1566 = vmatprep.subr.bf16.mxu0 0
  %1567 = vmatpush1.bf16.msra.mxu0 0
  %1568 = vmatprep.subr.bf16.mxu0 0
  %1569 = vmatpush1.bf16.msra.mxu0 0
  %1570 = vmatprep.subr.bf16.mxu0 0
  %1571 = vmatpush1.bf16.msra.mxu0 0
  %1572 = vmatprep.subr.bf16.mxu0 0
  %1573 = vmatpush1.bf16.msra.mxu0 0
  %1574 = vmatprep.subr.bf16.mxu0 0
  %1575 = vmatpush1.bf16.msra.mxu0 0
  %1576 = vmatprep.subr.bf16.mxu0 0
  %1577 = vmatpush1.bf16.msra.mxu0 0
  %1578 = vmatprep.subr.bf16.mxu0 0
  %1579 = vmatpush1.bf16.msra.mxu0 0
  %1580 = vmatprep.subr.bf16.mxu0 0
  %1581 = vmatpush1.bf16.msra.mxu0 0
  %1582 = vmatprep.mubr.bf16.mxu0 0
  %1583 = vmatmul.mubr.bf16.gmra.mrb[0].mxu0 %v1505
  %v1584 = vpop.f32.mrb[0].mxu0
  %v1585 = vadd.f32 0.0, %v1584
  %v1586 = vpop.f32.mrb[0].mxu0
  %v1587 = vadd.f32 0.0, %v1586
  %v1588 = vpop.f32.mrb[0].mxu0
  %v1589 = vadd.f32 0.0, %v1588
  %v1590 = vpop.f32.mrb[0].mxu0
  %v1591 = vadd.f32 0.0, %v1590
  %1592 = vdwg.mxu0
  %1593 = vmatprep.subr.bf16.mxu0 %v1497
  %1594 = vmatpush1.bf16.msra.mxu0 %v1496
  %1595 = vmatprep.subr.bf16.mxu0 0
  %1596 = vmatpush1.bf16.msra.mxu0 0
  %1597 = vmatprep.subr.bf16.mxu0 0
  %1598 = vmatpush1.bf16.msra.mxu0 0
  %1599 = vmatprep.subr.bf16.mxu0 0
  %1600 = vmatpush1.bf16.msra.mxu0 0
  %1601 = vmatprep.subr.bf16.mxu0 0
  %1602 = vmatpush1.bf16.msra.mxu0 0
  %1603 = vmatprep.subr.bf16.mxu0 0
  %1604 = vmatpush1.bf16.msra.mxu0 0
  %1605 = vmatprep.subr.bf16.mxu0 0
  %1606 = vmatpush1.bf16.msra.mxu0 0
  %1607 = vmatprep.subr.bf16.mxu0 0
  %1608 = vmatpush1.bf16.msra.mxu0 0
  %1609 = vmatprep.subr.bf16.mxu0 0
  %1610 = vmatpush1.bf16.msra.mxu0 0
  %1611 = vmatprep.subr.bf16.mxu0 0
  %1612 = vmatpush1.bf16.msra.mxu0 0
  %1613 = vmatprep.subr.bf16.mxu0 0
  %1614 = vmatpush1.bf16.msra.mxu0 0
  %1615 = vmatprep.subr.bf16.mxu0 0
  %1616 = vmatpush1.bf16.msra.mxu0 0
  %1617 = vmatprep.subr.bf16.mxu0 0
  %1618 = vmatpush1.bf16.msra.mxu0 0
  %1619 = vmatprep.subr.bf16.mxu0 0
  %1620 = vmatpush1.bf16.msra.mxu0 0
  %1621 = vmatprep.subr.bf16.mxu0 0
  %1622 = vmatpush1.bf16.msra.mxu0 0
  %1623 = vmatprep.subr.bf16.mxu0 0
  %1624 = vmatpush1.bf16.msra.mxu0 0
  %1625 = vmatprep.mubr.bf16.mxu0 0
  %1626 = vmatmul.mubr.bf16.gmra.mrb[0].mxu0 %v1505
  %v1627 = vpop.f32.mrb[0].mxu0
  %v1628 = vadd.f32 0.0, %v1627
  %v1629 = vpop.f32.mrb[0].mxu0
  %v1630 = vadd.f32 0.0, %v1629
  %v1631 = vpop.f32.mrb[0].mxu0
  %v1632 = vadd.f32 0.0, %v1631
  %v1633 = vpop.f32.mrb[0].mxu0
  %v1634 = vadd.f32 0.0, %v1633
  %1635 = vdwg.mxu0
  %v1636 = vadd.f32 %v1457, %v1542
  %v1637 = vadd.f32 %v1458, %v1544
  %v1638 = vadd.f32 %v1459, %v1585
  %v1639 = vadd.f32 %v1460, %v1587
  %v1640 = vadd.f32 %v1461, %v1628
  %v1641 = vadd.f32 %v1462, %v1630
  %v1642 = vadd.f32 %v1463, %v1546
  %v1643 = vadd.f32 %v1464, %v1548
  %v1644 = vadd.f32 %v1465, %v1589
  %v1645 = vadd.f32 %v1466, %v1591
  %v1646 = vadd.f32 %v1467, %v1632
  %v1647 = vadd.f32 %v1468, %v1634
  %v1648 = vld [vmem:[%s2] sm:$0xff]
  %v1649 = vld [vmem:[%s2 + $0x8] sm:$0xff]
  %1651 = vset.pattern.permute.xlu0 0
  %1652 = vperm.xlu0 %1651, %v1648
  %v1653 = vpop.permute.xlu0 %1652
  %1656 = vset.pattern.permute.xlu0 0
  %1657 = vperm.xlu0 %1656, %v1649
  %v1658 = vpop.permute.xlu0 %1657
  %v1660 = vadd.f32 %v1636, %v1653
  %v1661 = vadd.f32 %v1637, %v1653
  %v1662 = vadd.f32 %v1638, %v1653
  %v1663 = vadd.f32 %v1639, %v1653
  %v1664 = vadd.f32 %v1640, %v1653
  %v1665 = vadd.f32 %v1641, %v1653
  %v1666 = vadd.f32 %v1642, %v1658
  %v1667 = vadd.f32 %v1643, %v1658
  %v1668 = vadd.f32 %v1644, %v1658
  %v1669 = vadd.f32 %v1645, %v1658
  %v1670 = vadd.f32 %v1646, %v1658
  %v1671 = vadd.f32 %v1647, %v1658
  %v1672 = vmax.f32 %v1660, 0.0
  %v1673 = vmax.f32 %v1661, 0.0
  %v1674 = vmax.f32 %v1662, 0.0
  %v1675 = vmax.f32 %v1663, 0.0
  %v1676 = vmax.f32 %v1664, 0.0
  %v1677 = vmax.f32 %v1665, 0.0
  %v1678 = vmax.f32 %v1666, 0.0
  %v1679 = vmax.f32 %v1667, 0.0
  %v1680 = vmax.f32 %v1668, 0.0
  %v1681 = vmax.f32 %v1669, 0.0
  %v1682 = vmax.f32 %v1670, 0.0
  %v1683 = vmax.f32 %v1671, 0.0
  %1684 = vst [vmem:[%s3] sm:$0xff] %v1672
  %1685 = vst [vmem:[%s3 + $0x8] sm:$0xff] %v1673
  %1686 = vst [vmem:[%s3 + $0x10] sm:$0xff] %v1674
  %1687 = vst [vmem:[%s3 + $0x18] sm:$0xff] %v1675
  %1688 = vst [vmem:[%s3 + $0x20] sm:$0xff] %v1676
  %1689 = vst [vmem:[%s3 + $0x28] sm:$0xff] %v1677
  %1690 = vst [vmem:[%s3 + $0x30] sm:$0xff] %v1678
  %1691 = vst [vmem:[%s3 + $0x38] sm:$0xff] %v1679
  %1692 = vst [vmem:[%s3 + $0x40] sm:$0xff] %v1680
  %1693 = vst [vmem:[%s3 + $0x48] sm:$0xff] %v1681
  %1694 = vst [vmem:[%s3 + $0x50] sm:$0xff] %v1682
  %1695 = vst [vmem:[%s3 + $0x58] sm:$0xff] %v1683
  // Predicated region
  $region14: #{_lambda_.5} parent=0 // pred_check
    _
  $region15: #{_lambda_.5} parent=0 // pred_check_branch
    %1697 = sbr.rel (0) target = $region17
  $region16: #{_lambda_.5} parent=0 // pred_region
    _
  $region17: #{_lambda_.5} parent=0 // pred_fallthru
    _
  // Predicated region
  $region18: #{_lambda_.5} parent=0 // pred_check
    _
  $region19: #{_lambda_.5} parent=0 // pred_check_branch
    %1699 = sbr.rel (0) target = $region21
  $region20: #{_lambda_.5} parent=0 // pred_region
    _
  $region21: #{_lambda_.5} parent=0 // pred_fallthru
    _

// kernel: _lambda_.6
$region0: #{_lambda_.6}
  #allocation0 [shape = 'u32[]', space=smem, size = 0x4, offset = 0x4, fixed_abs, tag = 'smem constant byte address 0x4 - core index']
  #allocation1 [shape = 'u32[144,128]{1,0:T(1,128)}', space=vmem, size = 0x12000, scoped, tag = 'internal scratch']
  %s0 = inlined_call_operand.vmem [shape: bf16[16,896], index: 0, kind: input, shape index: {}]
  %s1 = inlined_call_operand.vmem [shape: bf16[9,32,16], index: 1, kind: input, shape index: {}]
  %s2 = inlined_call_operand.vmem [shape: f32[32,1], index: 2, kind: input, shape index: {}]
  %s3 = inlined_call_operand.vmem [shape: f32[32,768], index: 3, kind: output, shape index: {}]
  %s4 = sld [smem:[#allocation0]]
  $region22: #{_lambda_.6} parent=0
    _
  %s6 = ssub.s32 1, %s4
  %s7 = scalar_select 0, %s6, %s4
  // Predicated region
  $region2: #{_lambda_.6} parent=0 // pred_check
    _
  $region3: #{_lambda_.6} parent=0 // pred_check_branch
    %9 = sbr.rel (0) target = $region5
  $region4: #{_lambda_.6} parent=0 // pred_region
    _
  $region5: #{_lambda_.6} parent=0 // pred_fallthru
    _
  // Predicated region
  $region6: #{_lambda_.6} parent=0 // pred_check
    _
  $region7: #{_lambda_.6} parent=0 // pred_check_branch
    %11 = sbr.rel (0) target = $region9
  $region8: #{_lambda_.6} parent=0 // pred_region
    _
  $region9: #{_lambda_.6} parent=0 // pred_fallthru
    _
  // Predicated region
  $region10: #{_lambda_.6} parent=0 // pred_check
    _
  $region11: #{_lambda_.6} parent=0 // pred_check_branch
    %13 = sbr.rel (0) target = $region13
  $region12: #{_lambda_.6} parent=0 // pred_region
    _
  $region13: #{_lambda_.6} parent=0 // pred_fallthru
    _
  %v15 = vld [vmem:[%s1] sm:$0xf]
  %v16 = vld [vmem:[%s1 + $0x4] sm:$0xf]
  %v17 = vld [vmem:[%s1 + $0x8] sm:$0xf]
  %v18 = vld [vmem:[%s1 + $0xc] sm:$0xf]
  %v19 = vld [vmem:[%s0] sm:$0xff]
  %v20 = vld [vmem:[%s0 + $0x8] sm:$0xff]
  %v21 = vld [vmem:[%s0 + $0x10] sm:$0xff]
  %v22 = vld [vmem:[%s0 + $0x1c] sm:$0xff]
  %v23 = vld [vmem:[%s0 + $0x24] sm:$0xff]
  %v24 = vld [vmem:[%s0 + $0x2c] sm:$0xff]
  %s25 = scalar_lea.vmem %s1, 16
  %v26 = vld [vmem:[%s25] sm:$0xf]
  %v27 = vld [vmem:[%s25 + $0x4] sm:$0xf]
  %v28 = vld [vmem:[%s25 + $0x8] sm:$0xf]
  %v29 = vld [vmem:[%s25 + $0xc] sm:$0xf]
  %v30 = vld [vmem:[%s0] sm:$0xff]
  %v31 = vld [vmem:[%s0 + $0x8] sm:$0xff]
  %v32 = vld [vmem:[%s0 + $0x10] sm:$0xff]
  %v33 = vld [vmem:[%s0 + $0x18] sm:$0xf]
  %v34 = vld [vmem:[%s0 + $0x1c] sm:$0xff]
  %v35 = vld [vmem:[%s0 + $0x24] sm:$0xff]
  %v36 = vld [vmem:[%s0 + $0x2c] sm:$0xff]
  %v37 = vld [vmem:[%s0 + $0x34] sm:$0xf]
  %v42 = vunpack.c.l.b16 %v26
  %v43 = vunpack.c.l.b16 %v27
  %v44 = vunpack.c.l.b16 %v28
  %v45 = vunpack.c.l.b16 %v29
  %v46 = vpack.c.b16 %v43, %v42
  %v47 = vpack.c.b16 %v45, %v44
  %v56 = vunpack.c.l.b16 %v30
  %v57 = vunpack.c.h.b16 %v30
  %v58 = vunpack.c.l.b16 %v31
  %v59 = vunpack.c.h.b16 %v31
  %v60 = vunpack.c.l.b16 %v32
  %v61 = vunpack.c.h.b16 %v32
  %v62 = vunpack.c.l.b16 %v33
  %v63 = vunpack.c.l.b16 %v34
  %v64 = vunpack.c.h.b16 %v34
  %v65 = vunpack.c.l.b16 %v35
  %v66 = vunpack.c.h.b16 %v35
  %v67 = vunpack.c.l.b16 %v36
  %v68 = vunpack.c.h.b16 %v36
  %v69 = vunpack.c.l.b16 %v37
  %v70 = vpack.c.b16 %v63, %v56
  %v71 = vpack.c.b16 %v64, %v57
  %v72 = vpack.c.b16 %v65, %v58
  %v73 = vpack.c.b16 %v66, %v59
  %v74 = vpack.c.b16 %v67, %v60
  %v75 = vpack.c.b16 %v68, %v61
  %v76 = vpack.c.b16 %v69, %v62
  %77 = vrot.lane.b32.xlu0 %v70, 127
  %v78 = vpop.permute.xlu0 %77
  %79 = vrot.lane.b32.xlu0 %v71, 127
  %v80 = vpop.permute.xlu0 %79
  %81 = vrot.lane.b32.xlu0 %v72, 127
  %v82 = vpop.permute.xlu0 %81
  %83 = vrot.lane.b32.xlu0 %v73, 127
  %v84 = vpop.permute.xlu0 %83
  %85 = vrot.lane.b32.xlu0 %v74, 127
  %v86 = vpop.permute.xlu0 %85
  %87 = vrot.lane.b32.xlu0 %v75, 127
  %v88 = vpop.permute.xlu0 %87
  %89 = vrot.lane.b32.xlu0 %v76, 127
  %v90 = vpop.permute.xlu0 %89
  %vm91 = vcmask 1039360
  %v92 = vsel %vm91, %v78, %v80
  %v93 = vsel %vm91, %v80, %v82
  %v94 = vsel %vm91, %v82, %v84
  %v95 = vsel %vm91, %v84, %v86
  %v96 = vsel %vm91, %v86, %v88
  %v97 = vsel %vm91, %v88, %v90
  %vm104 = vcmask 130048
  %v106 = vsel %vm104, %v46, 0
  %v109 = vsel %vm104, %v47, 0
  %111 = vmatprep.subr.bf16.mxu0 %v93
  %112 = vmatpush1.bf16.msra.mxu0 %v92
  %113 = vmatprep.subr.bf16.mxu0 0
  %114 = vmatpush1.bf16.msra.mxu0 0
  %115 = vmatprep.subr.bf16.mxu0 0
  %116 = vmatpush1.bf16.msra.mxu0 0
  %117 = vmatprep.subr.bf16.mxu0 0
  %118 = vmatpush1.bf16.msra.mxu0 0
  %119 = vmatprep.subr.bf16.mxu0 0
  %120 = vmatpush1.bf16.msra.mxu0 0
  %121 = vmatprep.subr.bf16.mxu0 0
  %122 = vmatpush1.bf16.msra.mxu0 0
  %123 = vmatprep.subr.bf16.mxu0 0
  %124 = vmatpush1.bf16.msra.mxu0 0
  %125 = vmatprep.subr.bf16.mxu0 0
  %126 = vmatpush1.bf16.msra.mxu0 0
  %127 = vmatprep.subr.bf16.mxu0 0
  %128 = vmatpush1.bf16.msra.mxu0 0
  %129 = vmatprep.subr.bf16.mxu0 0
  %130 = vmatpush1.bf16.msra.mxu0 0
  %131 = vmatprep.subr.bf16.mxu0 0
  %132 = vmatpush1.bf16.msra.mxu0 0
  %133 = vmatprep.subr.bf16.mxu0 0
  %134 = vmatpush1.bf16.msra.mxu0 0
  %135 = vmatprep.subr.bf16.mxu0 0
  %136 = vmatpush1.bf16.msra.mxu0 0
  %137 = vmatprep.subr.bf16.mxu0 0
  %138 = vmatpush1.bf16.msra.mxu0 0
  %139 = vmatprep.subr.bf16.mxu0 0
  %140 = vmatpush1.bf16.msra.mxu0 0
  %141 = vmatprep.subr.bf16.mxu0 0
  %142 = vmatpush1.bf16.msra.mxu0 0
  %143 = vmatprep.mubr.bf16.mxu0 0
  %144 = vmatmul.mubr.bf16.gmra.mrb[0].mxu0 %v106
  %v145 = vpop.f32.mrb[0].mxu0
  %v146 = vadd.f32 0.0, %v145
  %v147 = vpop.f32.mrb[0].mxu0
  %v148 = vadd.f32 0.0, %v147
  %v149 = vpop.f32.mrb[0].mxu0
  %v150 = vadd.f32 0.0, %v149
  %v151 = vpop.f32.mrb[0].mxu0
  %v152 = vadd.f32 0.0, %v151
  %153 = vmatprep.mubr.bf16.mxu0 0
  %154 = vmatmul.mubr.bf16.gmra.mrb[0].mxu0 %v109
  %v155 = vpop.f32.mrb[0].mxu0
  %v156 = vadd.f32 0.0, %v155
  %v157 = vpop.f32.mrb[0].mxu0
  %v158 = vadd.f32 0.0, %v157
  %v159 = vpop.f32.mrb[0].mxu0
  %v160 = vadd.f32 0.0, %v159
  %v161 = vpop.f32.mrb[0].mxu0
  %v162 = vadd.f32 0.0, %v161
  %163 = vdwg.mxu0
  %164 = vmatprep.subr.bf16.mxu0 %v95
  %165 = vmatpush1.bf16.msra.mxu0 %v94
  %166 = vmatprep.subr.bf16.mxu0 0
  %167 = vmatpush1.bf16.msra.mxu0 0
  %168 = vmatprep.subr.bf16.mxu0 0
  %169 = vmatpush1.bf16.msra.mxu0 0
  %170 = vmatprep.subr.bf16.mxu0 0
  %171 = vmatpush1.bf16.msra.mxu0 0
  %172 = vmatprep.subr.bf16.mxu0 0
  %173 = vmatpush1.bf16.msra.mxu0 0
  %174 = vmatprep.subr.bf16.mxu0 0
  %175 = vmatpush1.bf16.msra.mxu0 0
  %176 = vmatprep.subr.bf16.mxu0 0
  %177 = vmatpush1.bf16.msra.mxu0 0
  %178 = vmatprep.subr.bf16.mxu0 0
  %179 = vmatpush1.bf16.msra.mxu0 0
  %180 = vmatprep.subr.bf16.mxu0 0
  %181 = vmatpush1.bf16.msra.mxu0 0
  %182 = vmatprep.subr.bf16.mxu0 0
  %183 = vmatpush1.bf16.msra.mxu0 0
  %184 = vmatprep.subr.bf16.mxu0 0
  %185 = vmatpush1.bf16.msra.mxu0 0
  %186 = vmatprep.subr.bf16.mxu0 0
  %187 = vmatpush1.bf16.msra.mxu0 0
  %188 = vmatprep.subr.bf16.mxu0 0
  %189 = vmatpush1.bf16.msra.mxu0 0
  %190 = vmatprep.subr.bf16.mxu0 0
  %191 = vmatpush1.bf16.msra.mxu0 0
  %192 = vmatprep.subr.bf16.mxu0 0
  %193 = vmatpush1.bf16.msra.mxu0 0
  %194 = vmatprep.subr.bf16.mxu0 0
  %195 = vmatpush1.bf16.msra.mxu0 0
  %196 = vmatprep.mubr.bf16.mxu0 0
  %197 = vmatmul.mubr.bf16.gmra.mrb[0].mxu0 %v106
  %v198 = vpop.f32.mrb[0].mxu0
  %v199 = vadd.f32 0.0, %v198
  %v200 = vpop.f32.mrb[0].mxu0
  %v201 = vadd.f32 0.0, %v200
  %v202 = vpop.f32.mrb[0].mxu0
  %v203 = vadd.f32 0.0, %v202
  %v204 = vpop.f32.mrb[0].mxu0
  %v205 = vadd.f32 0.0, %v204
  %206 = vmatprep.mubr.bf16.mxu0 0
  %207 = vmatmul.mubr.bf16.gmra.mrb[0].mxu0 %v109
  %v208 = vpop.f32.mrb[0].mxu0
  %v209 = vadd.f32 0.0, %v208
  %v210 = vpop.f32.mrb[0].mxu0
  %v211 = vadd.f32 0.0, %v210
  %v212 = vpop.f32.mrb[0].mxu0
  %v213 = vadd.f32 0.0, %v212
  %v214 = vpop.f32.mrb[0].mxu0
  %v215 = vadd.f32 0.0, %v214
  %216 = vdwg.mxu0
  %217 = vmatprep.subr.bf16.mxu0 %v97
  %218 = vmatpush1.bf16.msra.mxu0 %v96
  %219 = vmatprep.subr.bf16.mxu0 0
  %220 = vmatpush1.bf16.msra.mxu0 0
  %221 = vmatprep.subr.bf16.mxu0 0
  %222 = vmatpush1.bf16.msra.mxu0 0
  %223 = vmatprep.subr.bf16.mxu0 0
  %224 = vmatpush1.bf16.msra.mxu0 0
  %225 = vmatprep.subr.bf16.mxu0 0
  %226 = vmatpush1.bf16.msra.mxu0 0
  %227 = vmatprep.subr.bf16.mxu0 0
  %228 = vmatpush1.bf16.msra.mxu0 0
  %229 = vmatprep.subr.bf16.mxu0 0
  %230 = vmatpush1.bf16.msra.mxu0 0
  %231 = vmatprep.subr.bf16.mxu0 0
  %232 = vmatpush1.bf16.msra.mxu0 0
  %233 = vmatprep.subr.bf16.mxu0 0
  %234 = vmatpush1.bf16.msra.mxu0 0
  %235 = vmatprep.subr.bf16.mxu0 0
  %236 = vmatpush1.bf16.msra.mxu0 0
  %237 = vmatprep.subr.bf16.mxu0 0
  %238 = vmatpush1.bf16.msra.mxu0 0
  %239 = vmatprep.subr.bf16.mxu0 0
  %240 = vmatpush1.bf16.msra.mxu0 0
  %241 = vmatprep.subr.bf16.mxu0 0
  %242 = vmatpush1.bf16.msra.mxu0 0
  %243 = vmatprep.subr.bf16.mxu0 0
  %244 = vmatpush1.bf16.msra.mxu0 0
  %245 = vmatprep.subr.bf16.mxu0 0
  %246 = vmatpush1.bf16.msra.mxu0 0
  %247 = vmatprep.subr.bf16.mxu0 0
  %248 = vmatpush1.bf16.msra.mxu0 0
  %249 = vmatprep.mubr.bf16.mxu0 0
  %250 = vmatmul.mubr.bf16.gmra.mrb[0].mxu0 %v106
  %v251 = vpop.f32.mrb[0].mxu0
  %v252 = vadd.f32 0.0, %v251
  %v253 = vpop.f32.mrb[0].mxu0
  %v254 = vadd.f32 0.0, %v253
  %v255 = vpop.f32.mrb[0].mxu0
  %v256 = vadd.f32 0.0, %v255
  %v257 = vpop.f32.mrb[0].mxu0
  %v258 = vadd.f32 0.0, %v257
  %259 = vmatprep.mubr.bf16.mxu0 0
  %260 = vmatmul.mubr.bf16.gmra.mrb[0].mxu0 %v109
  %v261 = vpop.f32.mrb[0].mxu0
  %v262 = vadd.f32 0.0, %v261
  %v263 = vpop.f32.mrb[0].mxu0
  %v264 = vadd.f32 0.0, %v263
  %v265 = vpop.f32.mrb[0].mxu0
  %v266 = vadd.f32 0.0, %v265
  %v267 = vpop.f32.mrb[0].mxu0
  %v268 = vadd.f32 0.0, %v267
  %269 = vdwg.mxu0
  %v274 = vunpack.c.l.b16 %v15
  %v275 = vunpack.c.l.b16 %v16
  %v276 = vunpack.c.l.b16 %v17
  %v277 = vunpack.c.l.b16 %v18
  %v278 = vpack.c.b16 %v275, %v274
  %v279 = vpack.c.b16 %v277, %v276
  %v286 = vunpack.c.l.b16 %v19
  %v287 = vunpack.c.h.b16 %v19
  %v288 = vunpack.c.l.b16 %v20
  %v289 = vunpack.c.h.b16 %v20
  %v290 = vunpack.c.l.b16 %v21
  %v291 = vunpack.c.h.b16 %v21
  %v292 = vunpack.c.l.b16 %v22
  %v293 = vunpack.c.h.b16 %v22
  %v294 = vunpack.c.l.b16 %v23
  %v295 = vunpack.c.h.b16 %v23
  %v296 = vunpack.c.l.b16 %v24
  %v297 = vunpack.c.h.b16 %v24
  %v298 = vpack.c.b16 %v292, %v286
  %v299 = vpack.c.b16 %v293, %v287
  %v300 = vpack.c.b16 %v294, %v288
  %v301 = vpack.c.b16 %v295, %v289
  %v302 = vpack.c.b16 %v296, %v290
  %v303 = vpack.c.b16 %v297, %v291
  %v311 = vsel %vm104, %v278, 0
  %v314 = vsel %vm104, %v279, 0
  %316 = vmatprep.subr.bf16.mxu0 %v299
  %317 = vmatpush1.bf16.msra.mxu0 %v298
  %318 = vmatprep.subr.bf16.mxu0 0
  %319 = vmatpush1.bf16.msra.mxu0 0
  %320 = vmatprep.subr.bf16.mxu0 0
  %321 = vmatpush1.bf16.msra.mxu0 0
  %322 = vmatprep.subr.bf16.mxu0 0
  %323 = vmatpush1.bf16.msra.mxu0 0
  %324 = vmatprep.subr.bf16.mxu0 0
  %325 = vmatpush1.bf16.msra.mxu0 0
  %326 = vmatprep.subr.bf16.mxu0 0
  %327 = vmatpush1.bf16.msra.mxu0 0
  %328 = vmatprep.subr.bf16.mxu0 0
  %329 = vmatpush1.bf16.msra.mxu0 0
  %330 = vmatprep.subr.bf16.mxu0 0
  %331 = vmatpush1.bf16.msra.mxu0 0
  %332 = vmatprep.subr.bf16.mxu0 0
  %333 = vmatpush1.bf16.msra.mxu0 0
  %334 = vmatprep.subr.bf16.mxu0 0
  %335 = vmatpush1.bf16.msra.mxu0 0
  %336 = vmatprep.subr.bf16.mxu0 0
  %337 = vmatpush1.bf16.msra.mxu0 0
  %338 = vmatprep.subr.bf16.mxu0 0
  %339 = vmatpush1.bf16.msra.mxu0 0
  %340 = vmatprep.subr.bf16.mxu0 0
  %341 = vmatpush1.bf16.msra.mxu0 0
  %342 = vmatprep.subr.bf16.mxu0 0
  %343 = vmatpush1.bf16.msra.mxu0 0
  %344 = vmatprep.subr.bf16.mxu0 0
  %345 = vmatpush1.bf16.msra.mxu0 0
  %346 = vmatprep.subr.bf16.mxu0 0
  %347 = vmatpush1.bf16.msra.mxu0 0
  %348 = vmatprep.mubr.bf16.mxu0 0
  %349 = vmatmul.mubr.bf16.gmra.mrb[0].mxu0 %v311
  %v350 = vpop.f32.mrb[0].mxu0
  %v351 = vadd.f32 %v146, %v350
  %v352 = vpop.f32.mrb[0].mxu0
  %v353 = vadd.f32 %v148, %v352
  %v354 = vpop.f32.mrb[0].mxu0
  %v355 = vadd.f32 %v150, %v354
  %v356 = vpop.f32.mrb[0].mxu0
  %v357 = vadd.f32 %v152, %v356
  %358 = vmatprep.mubr.bf16.mxu0 0
  %359 = vmatmul.mubr.bf16.gmra.mrb[0].mxu0 %v314
  %v360 = vpop.f32.mrb[0].mxu0
  %v361 = vadd.f32 %v156, %v360
  %v362 = vpop.f32.mrb[0].mxu0
  %v363 = vadd.f32 %v158, %v362
  %v364 = vpop.f32.mrb[0].mxu0
  %v365 = vadd.f32 %v160, %v364
  %v366 = vpop.f32.mrb[0].mxu0
  %v367 = vadd.f32 %v162, %v366
  %368 = vdwg.mxu0
  %369 = vmatprep.subr.bf16.mxu0 %v301
  %370 = vmatpush1.bf16.msra.mxu0 %v300
  %371 = vmatprep.subr.bf16.mxu0 0
  %372 = vmatpush1.bf16.msra.mxu0 0
  %373 = vmatprep.subr.bf16.mxu0 0
  %374 = vmatpush1.bf16.msra.mxu0 0
  %375 = vmatprep.subr.bf16.mxu0 0
  %376 = vmatpush1.bf16.msra.mxu0 0
  %377 = vmatprep.subr.bf16.mxu0 0
  %378 = vmatpush1.bf16.msra.mxu0 0
  %379 = vmatprep.subr.bf16.mxu0 0
  %380 = vmatpush1.bf16.msra.mxu0 0
  %381 = vmatprep.subr.bf16.mxu0 0
  %382 = vmatpush1.bf16.msra.mxu0 0
  %383 = vmatprep.subr.bf16.mxu0 0
  %384 = vmatpush1.bf16.msra.mxu0 0
  %385 = vmatprep.subr.bf16.mxu0 0
  %386 = vmatpush1.bf16.msra.mxu0 0
  %387 = vmatprep.subr.bf16.mxu0 0
  %388 = vmatpush1.bf16.msra.mxu0 0
  %389 = vmatprep.subr.bf16.mxu0 0
  %390 = vmatpush1.bf16.msra.mxu0 0
  %391 = vmatprep.subr.bf16.mxu0 0
  %392 = vmatpush1.bf16.msra.mxu0 0
  %393 = vmatprep.subr.bf16.mxu0 0
  %394 = vmatpush1.bf16.msra.mxu0 0
  %395 = vmatprep.subr.bf16.mxu0 0
  %396 = vmatpush1.bf16.msra.mxu0 0
  %397 = vmatprep.subr.bf16.mxu0 0
  %398 = vmatpush1.bf16.msra.mxu0 0
  %399 = vmatprep.subr.bf16.mxu0 0
  %400 = vmatpush1.bf16.msra.mxu0 0
  %401 = vmatprep.mubr.bf16.mxu0 0
  %402 = vmatmul.mubr.bf16.gmra.mrb[0].mxu0 %v311
  %v403 = vpop.f32.mrb[0].mxu0
  %v404 = vadd.f32 %v199, %v403
  %v405 = vpop.f32.mrb[0].mxu0
  %v406 = vadd.f32 %v201, %v405
  %v407 = vpop.f32.mrb[0].mxu0
  %v408 = vadd.f32 %v203, %v407
  %v409 = vpop.f32.mrb[0].mxu0
  %v410 = vadd.f32 %v205, %v409
  %411 = vmatprep.mubr.bf16.mxu0 0
  %412 = vmatmul.mubr.bf16.gmra.mrb[0].mxu0 %v314
  %v413 = vpop.f32.mrb[0].mxu0
  %v414 = vadd.f32 %v209, %v413
  %v415 = vpop.f32.mrb[0].mxu0
  %v416 = vadd.f32 %v211, %v415
  %v417 = vpop.f32.mrb[0].mxu0
  %v418 = vadd.f32 %v213, %v417
  %v419 = vpop.f32.mrb[0].mxu0
  %v420 = vadd.f32 %v215, %v419
  %421 = vdwg.mxu0
  %422 = vmatprep.subr.bf16.mxu0 %v303
  %423 = vmatpush1.bf16.msra.mxu0 %v302
  %424 = vmatprep.subr.bf16.mxu0 0
  %425 = vmatpush1.bf16.msra.mxu0 0
  %426 = vmatprep.subr.bf16.mxu0 0
  %427 = vmatpush1.bf16.msra.mxu0 0
  %428 = vmatprep.subr.bf16.mxu0 0
  %429 = vmatpush1.bf16.msra.mxu0 0
  %430 = vmatprep.subr.bf16.mxu0 0
  %431 = vmatpush1.bf16.msra.mxu0 0
  %432 = vmatprep.subr.bf16.mxu0 0
  %433 = vmatpush1.bf16.msra.mxu0 0
  %434 = vmatprep.subr.bf16.mxu0 0
  %435 = vmatpush1.bf16.msra.mxu0 0
  %436 = vmatprep.subr.bf16.mxu0 0
  %437 = vmatpush1.bf16.msra.mxu0 0
  %438 = vmatprep.subr.bf16.mxu0 0
  %439 = vmatpush1.bf16.msra.mxu0 0
  %440 = vmatprep.subr.bf16.mxu0 0
  %441 = vmatpush1.bf16.msra.mxu0 0
  %442 = vmatprep.subr.bf16.mxu0 0
  %443 = vmatpush1.bf16.msra.mxu0 0
  %444 = vmatprep.subr.bf16.mxu0 0
  %445 = vmatpush1.bf16.msra.mxu0 0
  %446 = vmatprep.subr.bf16.mxu0 0
  %447 = vmatpush1.bf16.msra.mxu0 0
  %448 = vmatprep.subr.bf16.mxu0 0
  %449 = vmatpush1.bf16.msra.mxu0 0
  %450 = vmatprep.subr.bf16.mxu0 0
  %451 = vmatpush1.bf16.msra.mxu0 0
  %452 = vmatprep.subr.bf16.mxu0 0
  %453 = vmatpush1.bf16.msra.mxu0 0
  %454 = vmatprep.mubr.bf16.mxu0 0
  %455 = vmatmul.mubr.bf16.gmra.mrb[0].mxu0 %v311
  %v456 = vpop.f32.mrb[0].mxu0
  %v457 = vadd.f32 %v252, %v456
  %v458 = vpop.f32.mrb[0].mxu0
  %v459 = vadd.f32 %v254, %v458
  %v460 = vpop.f32.mrb[0].mxu0
  %v461 = vadd.f32 %v256, %v460
  %v462 = vpop.f32.mrb[0].mxu0
  %v463 = vadd.f32 %v258, %v462
  %464 = vmatprep.mubr.bf16.mxu0 0
  %465 = vmatmul.mubr.bf16.gmra.mrb[0].mxu0 %v314
  %v466 = vpop.f32.mrb[0].mxu0
  %v467 = vadd.f32 %v262, %v466
  %v468 = vpop.f32.mrb[0].mxu0
  %v469 = vadd.f32 %v264, %v468
  %v470 = vpop.f32.mrb[0].mxu0
  %v471 = vadd.f32 %v266, %v470
  %v472 = vpop.f32.mrb[0].mxu0
  %v473 = vadd.f32 %v268, %v472
  %474 = vdwg.mxu0
  %s475 = scalar_lea.vmem %s1, 32
  %v476 = vld [vmem:[%s475] sm:$0xf]
  %v477 = vld [vmem:[%s475 + $0x4] sm:$0xf]
  %v478 = vld [vmem:[%s475 + $0x8] sm:$0xf]
  %v479 = vld [vmem:[%s475 + $0xc] sm:$0xf]
  %v484 = vunpack.c.l.b16 %v476
  %v485 = vunpack.c.l.b16 %v477
  %v486 = vunpack.c.l.b16 %v478
  %v487 = vunpack.c.l.b16 %v479
  %v488 = vpack.c.b16 %v485, %v484
  %v489 = vpack.c.b16 %v487, %v486
  %490 = vrot.lane.b32.xlu0 %v70, 126
  %v491 = vpop.permute.xlu0 %490
  %492 = vrot.lane.b32.xlu0 %v71, 126
  %v493 = vpop.permute.xlu0 %492
  %494 = vrot.lane.b32.xlu0 %v72, 126
  %v495 = vpop.permute.xlu0 %494
  %496 = vrot.lane.b32.xlu0 %v73, 126
  %v497 = vpop.permute.xlu0 %496
  %498 = vrot.lane.b32.xlu0 %v74, 126
  %v499 = vpop.permute.xlu0 %498
  %500 = vrot.lane.b32.xlu0 %v75, 126
  %v501 = vpop.permute.xlu0 %500
  %502 = vrot.lane.b32.xlu0 %v76, 126
  %v503 = vpop.permute.xlu0 %502
  %vm504 = vcmask 1031168
  %v505 = vsel %vm504, %v491, %v493
  %v506 = vsel %vm504, %v493, %v495
  %v507 = vsel %vm504, %v495, %v497
  %v508 = vsel %vm504, %v497, %v499
  %v509 = vsel %vm504, %v499, %v501
  %v510 = vsel %vm504, %v501, %v503
  %v518 = vsel %vm104, %v488, 0
  %v521 = vsel %vm104, %v489, 0
  %523 = vmatprep.subr.bf16.mxu0 %v506
  %524 = vmatpush1.bf16.msra.mxu0 %v505
  %525 = vmatprep.subr.bf16.mxu0 0
  %526 = vmatpush1.bf16.msra.mxu0 0
  %527 = vmatprep.subr.bf16.mxu0 0
  %528 = vmatpush1.bf16.msra.mxu0 0
  %529 = vmatprep.subr.bf16.mxu0 0
  %530 = vmatpush1.bf16.msra.mxu0 0
  %531 = vmatprep.subr.bf16.mxu0 0
  %532 = vmatpush1.bf16.msra.mxu0 0
  %533 = vmatprep.subr.bf16.mxu0 0
  %534 = vmatpush1.bf16.msra.mxu0 0
  %535 = vmatprep.subr.bf16.mxu0 0
  %536 = vmatpush1.bf16.msra.mxu0 0
  %537 = vmatprep.subr.bf16.mxu0 0
  %538 = vmatpush1.bf16.msra.mxu0 0
  %539 = vmatprep.subr.bf16.mxu0 0
  %540 = vmatpush1.bf16.msra.mxu0 0
  %541 = vmatprep.subr.bf16.mxu0 0
  %542 = vmatpush1.bf16.msra.mxu0 0
  %543 = vmatprep.subr.bf16.mxu0 0
  %544 = vmatpush1.bf16.msra.mxu0 0
  %545 = vmatprep.subr.bf16.mxu0 0
  %546 = vmatpush1.bf16.msra.mxu0 0
  %547 = vmatprep.subr.bf16.mxu0 0
  %548 = vmatpush1.bf16.msra.mxu0 0
  %549 = vmatprep.subr.bf16.mxu0 0
  %550 = vmatpush1.bf16.msra.mxu0 0
  %551 = vmatprep.subr.bf16.mxu0 0
  %552 = vmatpush1.bf16.msra.mxu0 0
  %553 = vmatprep.subr.bf16.mxu0 0
  %554 = vmatpush1.bf16.msra.mxu0 0
  %555 = vmatprep.mubr.bf16.mxu0 0
  %556 = vmatmul.mubr.bf16.gmra.mrb[0].mxu0 %v518
  %v557 = vpop.f32.mrb[0].mxu0
  %v558 = vadd.f32 0.0, %v557
  %v559 = vpop.f32.mrb[0].mxu0
  %v560 = vadd.f32 0.0, %v559
  %v561 = vpop.f32.mrb[0].mxu0
  %v562 = vadd.f32 0.0, %v561
  %v563 = vpop.f32.mrb[0].mxu0
  %v564 = vadd.f32 0.0, %v563
  %565 = vmatprep.mubr.bf16.mxu0 0
  %566 = vmatmul.mubr.bf16.gmra.mrb[0].mxu0 %v521
  %v567 = vpop.f32.mrb[0].mxu0
  %v568 = vadd.f32 0.0, %v567
  %v569 = vpop.f32.mrb[0].mxu0
  %v570 = vadd.f32 0.0, %v569
  %v571 = vpop.f32.mrb[0].mxu0
  %v572 = vadd.f32 0.0, %v571
  %v573 = vpop.f32.mrb[0].mxu0
  %v574 = vadd.f32 0.0, %v573
  %575 = vdwg.mxu0
  %576 = vmatprep.subr.bf16.mxu0 %v508
  %577 = vmatpush1.bf16.msra.mxu0 %v507
  %578 = vmatprep.subr.bf16.mxu0 0
  %579 = vmatpush1.bf16.msra.mxu0 0
  %580 = vmatprep.subr.bf16.mxu0 0
  %581 = vmatpush1.bf16.msra.mxu0 0
  %582 = vmatprep.subr.bf16.mxu0 0
  %583 = vmatpush1.bf16.msra.mxu0 0
  %584 = vmatprep.subr.bf16.mxu0 0
  %585 = vmatpush1.bf16.msra.mxu0 0
  %586 = vmatprep.subr.bf16.mxu0 0
  %587 = vmatpush1.bf16.msra.mxu0 0
  %588 = vmatprep.subr.bf16.mxu0 0
  %589 = vmatpush1.bf16.msra.mxu0 0
  %590 = vmatprep.subr.bf16.mxu0 0
  %591 = vmatpush1.bf16.msra.mxu0 0
  %592 = vmatprep.subr.bf16.mxu0 0
  %593 = vmatpush1.bf16.msra.mxu0 0
  %594 = vmatprep.subr.bf16.mxu0 0
  %595 = vmatpush1.bf16.msra.mxu0 0
  %596 = vmatprep.subr.bf16.mxu0 0
  %597 = vmatpush1.bf16.msra.mxu0 0
  %598 = vmatprep.subr.bf16.mxu0 0
  %599 = vmatpush1.bf16.msra.mxu0 0
  %600 = vmatprep.subr.bf16.mxu0 0
  %601 = vmatpush1.bf16.msra.mxu0 0
  %602 = vmatprep.subr.bf16.mxu0 0
  %603 = vmatpush1.bf16.msra.mxu0 0
  %604 = vmatprep.subr.bf16.mxu0 0
  %605 = vmatpush1.bf16.msra.mxu0 0
  %606 = vmatprep.subr.bf16.mxu0 0
  %607 = vmatpush1.bf16.msra.mxu0 0
  %608 = vmatprep.mubr.bf16.mxu0 0
  %609 = vmatmul.mubr.bf16.gmra.mrb[0].mxu0 %v518
  %v610 = vpop.f32.mrb[0].mxu0
  %v611 = vadd.f32 0.0, %v610
  %v612 = vpop.f32.mrb[0].mxu0
  %v613 = vadd.f32 0.0, %v612
  %v614 = vpop.f32.mrb[0].mxu0
  %v615 = vadd.f32 0.0, %v614
  %v616 = vpop.f32.mrb[0].mxu0
  %v617 = vadd.f32 0.0, %v616
  %618 = vmatprep.mubr.bf16.mxu0 0
  %619 = vmatmul.mubr.bf16.gmra.mrb[0].mxu0 %v521
  %v620 = vpop.f32.mrb[0].mxu0
  %v621 = vadd.f32 0.0, %v620
  %v622 = vpop.f32.mrb[0].mxu0
  %v623 = vadd.f32 0.0, %v622
  %v624 = vpop.f32.mrb[0].mxu0
  %v625 = vadd.f32 0.0, %v624
  %v626 = vpop.f32.mrb[0].mxu0
  %v627 = vadd.f32 0.0, %v626
  %628 = vdwg.mxu0
  %629 = vmatprep.subr.bf16.mxu0 %v510
  %630 = vmatpush1.bf16.msra.mxu0 %v509
  %631 = vmatprep.subr.bf16.mxu0 0
  %632 = vmatpush1.bf16.msra.mxu0 0
  %633 = vmatprep.subr.bf16.mxu0 0
  %634 = vmatpush1.bf16.msra.mxu0 0
  %635 = vmatprep.subr.bf16.mxu0 0
  %636 = vmatpush1.bf16.msra.mxu0 0
  %637 = vmatprep.subr.bf16.mxu0 0
  %638 = vmatpush1.bf16.msra.mxu0 0
  %639 = vmatprep.subr.bf16.mxu0 0
  %640 = vmatpush1.bf16.msra.mxu0 0
  %641 = vmatprep.subr.bf16.mxu0 0
  %642 = vmatpush1.bf16.msra.mxu0 0
  %643 = vmatprep.subr.bf16.mxu0 0
  %644 = vmatpush1.bf16.msra.mxu0 0
  %645 = vmatprep.subr.bf16.mxu0 0
  %646 = vmatpush1.bf16.msra.mxu0 0
  %647 = vmatprep.subr.bf16.mxu0 0
  %648 = vmatpush1.bf16.msra.mxu0 0
  %649 = vmatprep.subr.bf16.mxu0 0
  %650 = vmatpush1.bf16.msra.mxu0 0
  %651 = vmatprep.subr.bf16.mxu0 0
  %652 = vmatpush1.bf16.msra.mxu0 0
  %653 = vmatprep.subr.bf16.mxu0 0
  %654 = vmatpush1.bf16.msra.mxu0 0
  %655 = vmatprep.subr.bf16.mxu0 0
  %656 = vmatpush1.bf16.msra.mxu0 0
  %657 = vmatprep.subr.bf16.mxu0 0
  %658 = vmatpush1.bf16.msra.mxu0 0
  %659 = vmatprep.subr.bf16.mxu0 0
  %660 = vmatpush1.bf16.msra.mxu0 0
  %661 = vmatprep.mubr.bf16.mxu0 0
  %662 = vmatmul.mubr.bf16.gmra.mrb[0].mxu0 %v518
  %v663 = vpop.f32.mrb[0].mxu0
  %v664 = vadd.f32 0.0, %v663
  %v665 = vpop.f32.mrb[0].mxu0
  %v666 = vadd.f32 0.0, %v665
  %v667 = vpop.f32.mrb[0].mxu0
  %v668 = vadd.f32 0.0, %v667
  %v669 = vpop.f32.mrb[0].mxu0
  %v670 = vadd.f32 0.0, %v669
  %671 = vmatprep.mubr.bf16.mxu0 0
  %672 = vmatmul.mubr.bf16.gmra.mrb[0].mxu0 %v521
  %v673 = vpop.f32.mrb[0].mxu0
  %v674 = vadd.f32 0.0, %v673
  %v675 = vpop.f32.mrb[0].mxu0
  %v676 = vadd.f32 0.0, %v675
  %v677 = vpop.f32.mrb[0].mxu0
  %v678 = vadd.f32 0.0, %v677
  %v679 = vpop.f32.mrb[0].mxu0
  %v680 = vadd.f32 0.0, %v679
  %681 = vdwg.mxu0
  %v682 = vadd.f32 %v351, %v558
  %v683 = vadd.f32 %v353, %v560
  %v684 = vadd.f32 %v404, %v611
  %v685 = vadd.f32 %v406, %v613
  %v686 = vadd.f32 %v457, %v664
  %v687 = vadd.f32 %v459, %v666
  %v688 = vadd.f32 %v355, %v562
  %v689 = vadd.f32 %v357, %v564
  %v690 = vadd.f32 %v408, %v615
  %v691 = vadd.f32 %v410, %v617
  %v692 = vadd.f32 %v461, %v668
  %v693 = vadd.f32 %v463, %v670
  %v694 = vadd.f32 %v361, %v568
  %v695 = vadd.f32 %v363, %v570
  %v696 = vadd.f32 %v414, %v621
  %v697 = vadd.f32 %v416, %v623
  %v698 = vadd.f32 %v467, %v674
  %v699 = vadd.f32 %v469, %v676
  %v700 = vadd.f32 %v365, %v572
  %v701 = vadd.f32 %v367, %v574
  %v702 = vadd.f32 %v418, %v625
  %v703 = vadd.f32 %v420, %v627
  %v704 = vadd.f32 %v471, %v678
  %v705 = vadd.f32 %v473, %v680
  %s706 = scalar_lea.vmem %s1, 48
  %v707 = vld [vmem:[%s706] sm:$0xf]
  %v708 = vld [vmem:[%s706 + $0x4] sm:$0xf]
  %v709 = vld [vmem:[%s706 + $0x8] sm:$0xf]
  %v710 = vld [vmem:[%s706 + $0xc] sm:$0xf]
  %v715 = vunpack.c.l.b16 %v707
  %v716 = vunpack.c.l.b16 %v708
  %v717 = vunpack.c.l.b16 %v709
  %v718 = vunpack.c.l.b16 %v710
  %v719 = vpack.c.b16 %v716, %v715
  %v720 = vpack.c.b16 %v718, %v717
  %721 = vrot.lane.b32.xlu0 %v70, 110
  %v722 = vpop.permute.xlu0 %721
  %723 = vrot.lane.b32.xlu0 %v71, 110
  %v724 = vpop.permute.xlu0 %723
  %725 = vrot.lane.b32.xlu0 %v72, 110
  %v726 = vpop.permute.xlu0 %725
  %727 = vrot.lane.b32.xlu0 %v73, 110
  %v728 = vpop.permute.xlu0 %727
  %729 = vrot.lane.b32.xlu0 %v74, 110
  %v730 = vpop.permute.xlu0 %729
  %731 = vrot.lane.b32.xlu0 %v75, 110
  %v732 = vpop.permute.xlu0 %731
  %733 = vrot.lane.b32.xlu0 %v76, 110
  %v734 = vpop.permute.xlu0 %733
  %vm735 = vcmask 900096
  %v736 = vsel %vm735, %v722, %v724
  %v737 = vsel %vm735, %v724, %v726
  %v738 = vsel %vm735, %v726, %v728
  %v739 = vsel %vm735, %v728, %v730
  %v740 = vsel %vm735, %v730, %v732
  %v741 = vsel %vm735, %v732, %v734
  %v749 = vsel %vm104, %v719, 0
  %v752 = vsel %vm104, %v720, 0
  %754 = vmatprep.subr.bf16.mxu0 %v737
  %755 = vmatpush1.bf16.msra.mxu0 %v736
  %756 = vmatprep.subr.bf16.mxu0 0
  %757 = vmatpush1.bf16.msra.mxu0 0
  %758 = vmatprep.subr.bf16.mxu0 0
  %759 = vmatpush1.bf16.msra.mxu0 0
  %760 = vmatprep.subr.bf16.mxu0 0
  %761 = vmatpush1.bf16.msra.mxu0 0
  %762 = vmatprep.subr.bf16.mxu0 0
  %763 = vmatpush1.bf16.msra.mxu0 0
  %764 = vmatprep.subr.bf16.mxu0 0
  %765 = vmatpush1.bf16.msra.mxu0 0
  %766 = vmatprep.subr.bf16.mxu0 0
  %767 = vmatpush1.bf16.msra.mxu0 0
  %768 = vmatprep.subr.bf16.mxu0 0
  %769 = vmatpush1.bf16.msra.mxu0 0
  %770 = vmatprep.subr.bf16.mxu0 0
  %771 = vmatpush1.bf16.msra.mxu0 0
  %772 = vmatprep.subr.bf16.mxu0 0
  %773 = vmatpush1.bf16.msra.mxu0 0
  %774 = vmatprep.subr.bf16.mxu0 0
  %775 = vmatpush1.bf16.msra.mxu0 0
  %776 = vmatprep.subr.bf16.mxu0 0
  %777 = vmatpush1.bf16.msra.mxu0 0
  %778 = vmatprep.subr.bf16.mxu0 0
  %779 = vmatpush1.bf16.msra.mxu0 0
  %780 = vmatprep.subr.bf16.mxu0 0
  %781 = vmatpush1.bf16.msra.mxu0 0
  %782 = vmatprep.subr.bf16.mxu0 0
  %783 = vmatpush1.bf16.msra.mxu0 0
  %784 = vmatprep.subr.bf16.mxu0 0
  %785 = vmatpush1.bf16.msra.mxu0 0
  %786 = vmatprep.mubr.bf16.mxu0 0
  %787 = vmatmul.mubr.bf16.gmra.mrb[0].mxu0 %v749
  %v788 = vpop.f32.mrb[0].mxu0
  %v789 = vadd.f32 0.0, %v788
  %v790 = vpop.f32.mrb[0].mxu0
  %v791 = vadd.f32 0.0, %v790
  %v792 = vpop.f32.mrb[0].mxu0
  %v793 = vadd.f32 0.0, %v792
  %v794 = vpop.f32.mrb[0].mxu0
  %v795 = vadd.f32 0.0, %v794
  %796 = vmatprep.mubr.bf16.mxu0 0
  %797 = vmatmul.mubr.bf16.gmra.mrb[0].mxu0 %v752
  %v798 = vpop.f32.mrb[0].mxu0
  %v799 = vadd.f32 0.0, %v798
  %v800 = vpop.f32.mrb[0].mxu0
  %v801 = vadd.f32 0.0, %v800
  %v802 = vpop.f32.mrb[0].mxu0
  %v803 = vadd.f32 0.0, %v802
  %v804 = vpop.f32.mrb[0].mxu0
  %v805 = vadd.f32 0.0, %v804
  %806 = vdwg.mxu0
  %807 = vmatprep.subr.bf16.mxu0 %v739
  %808 = vmatpush1.bf16.msra.mxu0 %v738
  %809 = vmatprep.subr.bf16.mxu0 0
  %810 = vmatpush1.bf16.msra.mxu0 0
  %811 = vmatprep.subr.bf16.mxu0 0
  %812 = vmatpush1.bf16.msra.mxu0 0
  %813 = vmatprep.subr.bf16.mxu0 0
  %814 = vmatpush1.bf16.msra.mxu0 0
  %815 = vmatprep.subr.bf16.mxu0 0
  %816 = vmatpush1.bf16.msra.mxu0 0
  %817 = vmatprep.subr.bf16.mxu0 0
  %818 = vmatpush1.bf16.msra.mxu0 0
  %819 = vmatprep.subr.bf16.mxu0 0
  %820 = vmatpush1.bf16.msra.mxu0 0
  %821 = vmatprep.subr.bf16.mxu0 0
  %822 = vmatpush1.bf16.msra.mxu0 0
  %823 = vmatprep.subr.bf16.mxu0 0
  %824 = vmatpush1.bf16.msra.mxu0 0
  %825 = vmatprep.subr.bf16.mxu0 0
  %826 = vmatpush1.bf16.msra.mxu0 0
  %827 = vmatprep.subr.bf16.mxu0 0
  %828 = vmatpush1.bf16.msra.mxu0 0
  %829 = vmatprep.subr.bf16.mxu0 0
  %830 = vmatpush1.bf16.msra.mxu0 0
  %831 = vmatprep.subr.bf16.mxu0 0
  %832 = vmatpush1.bf16.msra.mxu0 0
  %833 = vmatprep.subr.bf16.mxu0 0
  %834 = vmatpush1.bf16.msra.mxu0 0
  %835 = vmatprep.subr.bf16.mxu0 0
  %836 = vmatpush1.bf16.msra.mxu0 0
  %837 = vmatprep.subr.bf16.mxu0 0
  %838 = vmatpush1.bf16.msra.mxu0 0
  %839 = vmatprep.mubr.bf16.mxu0 0
  %840 = vmatmul.mubr.bf16.gmra.mrb[0].mxu0 %v749
  %v841 = vpop.f32.mrb[0].mxu0
  %v842 = vadd.f32 0.0, %v841
  %v843 = vpop.f32.mrb[0].mxu0
  %v844 = vadd.f32 0.0, %v843
  %v845 = vpop.f32.mrb[0].mxu0
  %v846 = vadd.f32 0.0, %v845
  %v847 = vpop.f32.mrb[0].mxu0
  %v848 = vadd.f32 0.0, %v847
  %849 = vmatprep.mubr.bf16.mxu0 0
  %850 = vmatmul.mubr.bf16.gmra.mrb[0].mxu0 %v752
  %v851 = vpop.f32.mrb[0].mxu0
  %v852 = vadd.f32 0.0, %v851
  %v853 = vpop.f32.mrb[0].mxu0
  %v854 = vadd.f32 0.0, %v853
  %v855 = vpop.f32.mrb[0].mxu0
  %v856 = vadd.f32 0.0, %v855
  %v857 = vpop.f32.mrb[0].mxu0
  %v858 = vadd.f32 0.0, %v857
  %859 = vdwg.mxu0
  %860 = vmatprep.subr.bf16.mxu0 %v741
  %861 = vmatpush1.bf16.msra.mxu0 %v740
  %862 = vmatprep.subr.bf16.mxu0 0
  %863 = vmatpush1.bf16.msra.mxu0 0
  %864 = vmatprep.subr.bf16.mxu0 0
  %865 = vmatpush1.bf16.msra.mxu0 0
  %866 = vmatprep.subr.bf16.mxu0 0
  %867 = vmatpush1.bf16.msra.mxu0 0
  %868 = vmatprep.subr.bf16.mxu0 0
  %869 = vmatpush1.bf16.msra.mxu0 0
  %870 = vmatprep.subr.bf16.mxu0 0
  %871 = vmatpush1.bf16.msra.mxu0 0
  %872 = vmatprep.subr.bf16.mxu0 0
  %873 = vmatpush1.bf16.msra.mxu0 0
  %874 = vmatprep.subr.bf16.mxu0 0
  %875 = vmatpush1.bf16.msra.mxu0 0
  %876 = vmatprep.subr.bf16.mxu0 0
  %877 = vmatpush1.bf16.msra.mxu0 0
  %878 = vmatprep.subr.bf16.mxu0 0
  %879 = vmatpush1.bf16.msra.mxu0 0
  %880 = vmatprep.subr.bf16.mxu0 0
  %881 = vmatpush1.bf16.msra.mxu0 0
  %882 = vmatprep.subr.bf16.mxu0 0
  %883 = vmatpush1.bf16.msra.mxu0 0
  %884 = vmatprep.subr.bf16.mxu0 0
  %885 = vmatpush1.bf16.msra.mxu0 0
  %886 = vmatprep.subr.bf16.mxu0 0
  %887 = vmatpush1.bf16.msra.mxu0 0
  %888 = vmatprep.subr.bf16.mxu0 0
  %889 = vmatpush1.bf16.msra.mxu0 0
  %890 = vmatprep.subr.bf16.mxu0 0
  %891 = vmatpush1.bf16.msra.mxu0 0
  %892 = vmatprep.mubr.bf16.mxu0 0
  %893 = vmatmul.mubr.bf16.gmra.mrb[0].mxu0 %v749
  %v894 = vpop.f32.mrb[0].mxu0
  %v895 = vadd.f32 0.0, %v894
  %v896 = vpop.f32.mrb[0].mxu0
  %v897 = vadd.f32 0.0, %v896
  %v898 = vpop.f32.mrb[0].mxu0
  %v899 = vadd.f32 0.0, %v898
  %v900 = vpop.f32.mrb[0].mxu0
  %v901 = vadd.f32 0.0, %v900
  %902 = vmatprep.mubr.bf16.mxu0 0
  %903 = vmatmul.mubr.bf16.gmra.mrb[0].mxu0 %v752
  %v904 = vpop.f32.mrb[0].mxu0
  %v905 = vadd.f32 0.0, %v904
  %v906 = vpop.f32.mrb[0].mxu0
  %v907 = vadd.f32 0.0, %v906
  %v908 = vpop.f32.mrb[0].mxu0
  %v909 = vadd.f32 0.0, %v908
  %v910 = vpop.f32.mrb[0].mxu0
  %v911 = vadd.f32 0.0, %v910
  %912 = vdwg.mxu0
  %v913 = vadd.f32 %v682, %v789
  %v914 = vadd.f32 %v683, %v791
  %v915 = vadd.f32 %v684, %v842
  %v916 = vadd.f32 %v685, %v844
  %v917 = vadd.f32 %v686, %v895
  %v918 = vadd.f32 %v687, %v897
  %v919 = vadd.f32 %v688, %v793
  %v920 = vadd.f32 %v689, %v795
  %v921 = vadd.f32 %v690, %v846
  %v922 = vadd.f32 %v691, %v848
  %v923 = vadd.f32 %v692, %v899
  %v924 = vadd.f32 %v693, %v901
  %v925 = vadd.f32 %v694, %v799
  %v926 = vadd.f32 %v695, %v801
  %v927 = vadd.f32 %v696, %v852
  %v928 = vadd.f32 %v697, %v854
  %v929 = vadd.f32 %v698, %v905
  %v930 = vadd.f32 %v699, %v907
  %v931 = vadd.f32 %v700, %v803
  %v932 = vadd.f32 %v701, %v805
  %v933 = vadd.f32 %v702, %v856
  %v934 = vadd.f32 %v703, %v858
  %v935 = vadd.f32 %v704, %v909
  %v936 = vadd.f32 %v705, %v911
  %s937 = scalar_lea.vmem %s1, 64
  %v938 = vld [vmem:[%s937] sm:$0xf]
  %v939 = vld [vmem:[%s937 + $0x4] sm:$0xf]
  %v940 = vld [vmem:[%s937 + $0x8] sm:$0xf]
  %v941 = vld [vmem:[%s937 + $0xc] sm:$0xf]
  %v946 = vunpack.c.l.b16 %v938
  %v947 = vunpack.c.l.b16 %v939
  %v948 = vunpack.c.l.b16 %v940
  %v949 = vunpack.c.l.b16 %v941
  %v950 = vpack.c.b16 %v947, %v946
  %v951 = vpack.c.b16 %v949, %v948
  %952 = vrot.lane.b32.xlu0 %v70, 109
  %v953 = vpop.permute.xlu0 %952
  %954 = vrot.lane.b32.xlu0 %v71, 109
  %v955 = vpop.permute.xlu0 %954
  %956 = vrot.lane.b32.xlu0 %v72, 109
  %v957 = vpop.permute.xlu0 %956
  %958 = vrot.lane.b32.xlu0 %v73, 109
  %v959 = vpop.permute.xlu0 %958
  %960 = vrot.lane.b32.xlu0 %v74, 109
  %v961 = vpop.permute.xlu0 %960
  %962 = vrot.lane.b32.xlu0 %v75, 109
  %v963 = vpop.permute.xlu0 %962
  %964 = vrot.lane.b32.xlu0 %v76, 109
  %v965 = vpop.permute.xlu0 %964
  %vm966 = vcmask 891904
  %v967 = vsel %vm966, %v953, %v955
  %v968 = vsel %vm966, %v955, %v957
  %v969 = vsel %vm966, %v957, %v959
  %v970 = vsel %vm966, %v959, %v961
  %v971 = vsel %vm966, %v961, %v963
  %v972 = vsel %vm966, %v963, %v965
  %v980 = vsel %vm104, %v950, 0
  %v983 = vsel %vm104, %v951, 0
  %985 = vmatprep.subr.bf16.mxu0 %v968
  %986 = vmatpush1.bf16.msra.mxu0 %v967
  %987 = vmatprep.subr.bf16.mxu0 0
  %988 = vmatpush1.bf16.msra.mxu0 0
  %989 = vmatprep.subr.bf16.mxu0 0
  %990 = vmatpush1.bf16.msra.mxu0 0
  %991 = vmatprep.subr.bf16.mxu0 0
  %992 = vmatpush1.bf16.msra.mxu0 0
  %993 = vmatprep.subr.bf16.mxu0 0
  %994 = vmatpush1.bf16.msra.mxu0 0
  %995 = vmatprep.subr.bf16.mxu0 0
  %996 = vmatpush1.bf16.msra.mxu0 0
  %997 = vmatprep.subr.bf16.mxu0 0
  %998 = vmatpush1.bf16.msra.mxu0 0
  %999 = vmatprep.subr.bf16.mxu0 0
  %1000 = vmatpush1.bf16.msra.mxu0 0
  %1001 = vmatprep.subr.bf16.mxu0 0
  %1002 = vmatpush1.bf16.msra.mxu0 0
  %1003 = vmatprep.subr.bf16.mxu0 0
  %1004 = vmatpush1.bf16.msra.mxu0 0
  %1005 = vmatprep.subr.bf16.mxu0 0
  %1006 = vmatpush1.bf16.msra.mxu0 0
  %1007 = vmatprep.subr.bf16.mxu0 0
  %1008 = vmatpush1.bf16.msra.mxu0 0
  %1009 = vmatprep.subr.bf16.mxu0 0
  %1010 = vmatpush1.bf16.msra.mxu0 0
  %1011 = vmatprep.subr.bf16.mxu0 0
  %1012 = vmatpush1.bf16.msra.mxu0 0
  %1013 = vmatprep.subr.bf16.mxu0 0
  %1014 = vmatpush1.bf16.msra.mxu0 0
  %1015 = vmatprep.subr.bf16.mxu0 0
  %1016 = vmatpush1.bf16.msra.mxu0 0
  %1017 = vmatprep.mubr.bf16.mxu0 0
  %1018 = vmatmul.mubr.bf16.gmra.mrb[0].mxu0 %v980
  %v1019 = vpop.f32.mrb[0].mxu0
  %v1020 = vadd.f32 0.0, %v1019
  %v1021 = vpop.f32.mrb[0].mxu0
  %v1022 = vadd.f32 0.0, %v1021
  %v1023 = vpop.f32.mrb[0].mxu0
  %v1024 = vadd.f32 0.0, %v1023
  %v1025 = vpop.f32.mrb[0].mxu0
  %v1026 = vadd.f32 0.0, %v1025
  %1027 = vmatprep.mubr.bf16.mxu0 0
  %1028 = vmatmul.mubr.bf16.gmra.mrb[0].mxu0 %v983
  %v1029 = vpop.f32.mrb[0].mxu0
  %v1030 = vadd.f32 0.0, %v1029
  %v1031 = vpop.f32.mrb[0].mxu0
  %v1032 = vadd.f32 0.0, %v1031
  %v1033 = vpop.f32.mrb[0].mxu0
  %v1034 = vadd.f32 0.0, %v1033
  %v1035 = vpop.f32.mrb[0].mxu0
  %v1036 = vadd.f32 0.0, %v1035
  %1037 = vdwg.mxu0
  %1038 = vmatprep.subr.bf16.mxu0 %v970
  %1039 = vmatpush1.bf16.msra.mxu0 %v969
  %1040 = vmatprep.subr.bf16.mxu0 0
  %1041 = vmatpush1.bf16.msra.mxu0 0
  %1042 = vmatprep.subr.bf16.mxu0 0
  %1043 = vmatpush1.bf16.msra.mxu0 0
  %1044 = vmatprep.subr.bf16.mxu0 0
  %1045 = vmatpush1.bf16.msra.mxu0 0
  %1046 = vmatprep.subr.bf16.mxu0 0
  %1047 = vmatpush1.bf16.msra.mxu0 0
  %1048 = vmatprep.subr.bf16.mxu0 0
  %1049 = vmatpush1.bf16.msra.mxu0 0
  %1050 = vmatprep.subr.bf16.mxu0 0
  %1051 = vmatpush1.bf16.msra.mxu0 0
  %1052 = vmatprep.subr.bf16.mxu0 0
  %1053 = vmatpush1.bf16.msra.mxu0 0
  %1054 = vmatprep.subr.bf16.mxu0 0
  %1055 = vmatpush1.bf16.msra.mxu0 0
  %1056 = vmatprep.subr.bf16.mxu0 0
  %1057 = vmatpush1.bf16.msra.mxu0 0
  %1058 = vmatprep.subr.bf16.mxu0 0
  %1059 = vmatpush1.bf16.msra.mxu0 0
  %1060 = vmatprep.subr.bf16.mxu0 0
  %1061 = vmatpush1.bf16.msra.mxu0 0
  %1062 = vmatprep.subr.bf16.mxu0 0
  %1063 = vmatpush1.bf16.msra.mxu0 0
  %1064 = vmatprep.subr.bf16.mxu0 0
  %1065 = vmatpush1.bf16.msra.mxu0 0
  %1066 = vmatprep.subr.bf16.mxu0 0
  %1067 = vmatpush1.bf16.msra.mxu0 0
  %1068 = vmatprep.subr.bf16.mxu0 0
  %1069 = vmatpush1.bf16.msra.mxu0 0
  %1070 = vmatprep.mubr.bf16.mxu0 0
  %1071 = vmatmul.mubr.bf16.gmra.mrb[0].mxu0 %v980
  %v1072 = vpop.f32.mrb[0].mxu0
  %v1073 = vadd.f32 0.0, %v1072
  %v1074 = vpop.f32.mrb[0].mxu0
  %v1075 = vadd.f32 0.0, %v1074
  %v1076 = vpop.f32.mrb[0].mxu0
  %v1077 = vadd.f32 0.0, %v1076
  %v1078 = vpop.f32.mrb[0].mxu0
  %v1079 = vadd.f32 0.0, %v1078
  %1080 = vmatprep.mubr.bf16.mxu0 0
  %1081 = vmatmul.mubr.bf16.gmra.mrb[0].mxu0 %v983
  %v1082 = vpop.f32.mrb[0].mxu0
  %v1083 = vadd.f32 0.0, %v1082
  %v1084 = vpop.f32.mrb[0].mxu0
  %v1085 = vadd.f32 0.0, %v1084
  %v1086 = vpop.f32.mrb[0].mxu0
  %v1087 = vadd.f32 0.0, %v1086
  %v1088 = vpop.f32.mrb[0].mxu0
  %v1089 = vadd.f32 0.0, %v1088
  %1090 = vdwg.mxu0
  %1091 = vmatprep.subr.bf16.mxu0 %v972
  %1092 = vmatpush1.bf16.msra.mxu0 %v971
  %1093 = vmatprep.subr.bf16.mxu0 0
  %1094 = vmatpush1.bf16.msra.mxu0 0
  %1095 = vmatprep.subr.bf16.mxu0 0
  %1096 = vmatpush1.bf16.msra.mxu0 0
  %1097 = vmatprep.subr.bf16.mxu0 0
  %1098 = vmatpush1.bf16.msra.mxu0 0
  %1099 = vmatprep.subr.bf16.mxu0 0
  %1100 = vmatpush1.bf16.msra.mxu0 0
  %1101 = vmatprep.subr.bf16.mxu0 0
  %1102 = vmatpush1.bf16.msra.mxu0 0
  %1103 = vmatprep.subr.bf16.mxu0 0
  %1104 = vmatpush1.bf16.msra.mxu0 0
  %1105 = vmatprep.subr.bf16.mxu0 0
  %1106 = vmatpush1.bf16.msra.mxu0 0
  %1107 = vmatprep.subr.bf16.mxu0 0
  %1108 = vmatpush1.bf16.msra.mxu0 0
  %1109 = vmatprep.subr.bf16.mxu0 0
  %1110 = vmatpush1.bf16.msra.mxu0 0
  %1111 = vmatprep.subr.bf16.mxu0 0
  %1112 = vmatpush1.bf16.msra.mxu0 0
  %1113 = vmatprep.subr.bf16.mxu0 0
  %1114 = vmatpush1.bf16.msra.mxu0 0
  %1115 = vmatprep.subr.bf16.mxu0 0
  %1116 = vmatpush1.bf16.msra.mxu0 0
  %1117 = vmatprep.subr.bf16.mxu0 0
  %1118 = vmatpush1.bf16.msra.mxu0 0
  %1119 = vmatprep.subr.bf16.mxu0 0
  %1120 = vmatpush1.bf16.msra.mxu0 0
  %1121 = vmatprep.subr.bf16.mxu0 0
  %1122 = vmatpush1.bf16.msra.mxu0 0
  %1123 = vmatprep.mubr.bf16.mxu0 0
  %1124 = vmatmul.mubr.bf16.gmra.mrb[0].mxu0 %v980
  %v1125 = vpop.f32.mrb[0].mxu0
  %v1126 = vadd.f32 0.0, %v1125
  %v1127 = vpop.f32.mrb[0].mxu0
  %v1128 = vadd.f32 0.0, %v1127
  %v1129 = vpop.f32.mrb[0].mxu0
  %v1130 = vadd.f32 0.0, %v1129
  %v1131 = vpop.f32.mrb[0].mxu0
  %v1132 = vadd.f32 0.0, %v1131
  %1133 = vmatprep.mubr.bf16.mxu0 0
  %1134 = vmatmul.mubr.bf16.gmra.mrb[0].mxu0 %v983
  %v1135 = vpop.f32.mrb[0].mxu0
  %v1136 = vadd.f32 0.0, %v1135
  %v1137 = vpop.f32.mrb[0].mxu0
  %v1138 = vadd.f32 0.0, %v1137
  %v1139 = vpop.f32.mrb[0].mxu0
  %v1140 = vadd.f32 0.0, %v1139
  %v1141 = vpop.f32.mrb[0].mxu0
  %v1142 = vadd.f32 0.0, %v1141
  %1143 = vdwg.mxu0
  %v1144 = vadd.f32 %v913, %v1020
  %v1145 = vadd.f32 %v914, %v1022
  %v1146 = vadd.f32 %v915, %v1073
  %v1147 = vadd.f32 %v916, %v1075
  %v1148 = vadd.f32 %v917, %v1126
  %v1149 = vadd.f32 %v918, %v1128
  %v1150 = vadd.f32 %v919, %v1024
  %v1151 = vadd.f32 %v920, %v1026
  %v1152 = vadd.f32 %v921, %v1077
  %v1153 = vadd.f32 %v922, %v1079
  %v1154 = vadd.f32 %v923, %v1130
  %v1155 = vadd.f32 %v924, %v1132
  %v1156 = vadd.f32 %v925, %v1030
  %v1157 = vadd.f32 %v926, %v1032
  %v1158 = vadd.f32 %v927, %v1083
  %v1159 = vadd.f32 %v928, %v1085
  %v1160 = vadd.f32 %v929, %v1136
  %v1161 = vadd.f32 %v930, %v1138
  %v1162 = vadd.f32 %v931, %v1034
  %v1163 = vadd.f32 %v932, %v1036
  %v1164 = vadd.f32 %v933, %v1087
  %v1165 = vadd.f32 %v934, %v1089
  %v1166 = vadd.f32 %v935, %v1140
  %v1167 = vadd.f32 %v936, %v1142
  %s1168 = scalar_lea.vmem %s1, 80
  %v1169 = vld [vmem:[%s1168] sm:$0xf]
  %v1170 = vld [vmem:[%s1168 + $0x4] sm:$0xf]
  %v1171 = vld [vmem:[%s1168 + $0x8] sm:$0xf]
  %v1172 = vld [vmem:[%s1168 + $0xc] sm:$0xf]
  %v1177 = vunpack.c.l.b16 %v1169
  %v1178 = vunpack.c.l.b16 %v1170
  %v1179 = vunpack.c.l.b16 %v1171
  %v1180 = vunpack.c.l.b16 %v1172
  %v1181 = vpack.c.b16 %v1178, %v1177
  %v1182 = vpack.c.b16 %v1180, %v1179
  %1183 = vrot.lane.b32.xlu0 %v70, 108
  %v1184 = vpop.permute.xlu0 %1183
  %1185 = vrot.lane.b32.xlu0 %v71, 108
  %v1186 = vpop.permute.xlu0 %1185
  %1187 = vrot.lane.b32.xlu0 %v72, 108
  %v1188 = vpop.permute.xlu0 %1187
  %1189 = vrot.lane.b32.xlu0 %v73, 108
  %v1190 = vpop.permute.xlu0 %1189
  %1191 = vrot.lane.b32.xlu0 %v74, 108
  %v1192 = vpop.permute.xlu0 %1191
  %1193 = vrot.lane.b32.xlu0 %v75, 108
  %v1194 = vpop.permute.xlu0 %1193
  %1195 = vrot.lane.b32.xlu0 %v76, 108
  %v1196 = vpop.permute.xlu0 %1195
  %vm1197 = vcmask 883712
  %v1198 = vsel %vm1197, %v1184, %v1186
  %v1199 = vsel %vm1197, %v1186, %v1188
  %v1200 = vsel %vm1197, %v1188, %v1190
  %v1201 = vsel %vm1197, %v1190, %v1192
  %v1202 = vsel %vm1197, %v1192, %v1194
  %v1203 = vsel %vm1197, %v1194, %v1196
  %v1211 = vsel %vm104, %v1181, 0
  %v1214 = vsel %vm104, %v1182, 0
  %1216 = vmatprep.subr.bf16.mxu0 %v1199
  %1217 = vmatpush1.bf16.msra.mxu0 %v1198
  %1218 = vmatprep.subr.bf16.mxu0 0
  %1219 = vmatpush1.bf16.msra.mxu0 0
  %1220 = vmatprep.subr.bf16.mxu0 0
  %1221 = vmatpush1.bf16.msra.mxu0 0
  %1222 = vmatprep.subr.bf16.mxu0 0
  %1223 = vmatpush1.bf16.msra.mxu0 0
  %1224 = vmatprep.subr.bf16.mxu0 0
  %1225 = vmatpush1.bf16.msra.mxu0 0
  %1226 = vmatprep.subr.bf16.mxu0 0
  %1227 = vmatpush1.bf16.msra.mxu0 0
  %1228 = vmatprep.subr.bf16.mxu0 0
  %1229 = vmatpush1.bf16.msra.mxu0 0
  %1230 = vmatprep.subr.bf16.mxu0 0
  %1231 = vmatpush1.bf16.msra.mxu0 0
  %1232 = vmatprep.subr.bf16.mxu0 0
  %1233 = vmatpush1.bf16.msra.mxu0 0
  %1234 = vmatprep.subr.bf16.mxu0 0
  %1235 = vmatpush1.bf16.msra.mxu0 0
  %1236 = vmatprep.subr.bf16.mxu0 0
  %1237 = vmatpush1.bf16.msra.mxu0 0
  %1238 = vmatprep.subr.bf16.mxu0 0
  %1239 = vmatpush1.bf16.msra.mxu0 0
  %1240 = vmatprep.subr.bf16.mxu0 0
  %1241 = vmatpush1.bf16.msra.mxu0 0
  %1242 = vmatprep.subr.bf16.mxu0 0
  %1243 = vmatpush1.bf16.msra.mxu0 0
  %1244 = vmatprep.subr.bf16.mxu0 0
  %1245 = vmatpush1.bf16.msra.mxu0 0
  %1246 = vmatprep.subr.bf16.mxu0 0
  %1247 = vmatpush1.bf16.msra.mxu0 0
  %1248 = vmatprep.mubr.bf16.mxu0 0
  %1249 = vmatmul.mubr.bf16.gmra.mrb[0].mxu0 %v1211
  %v1250 = vpop.f32.mrb[0].mxu0
  %v1251 = vadd.f32 0.0, %v1250
  %v1252 = vpop.f32.mrb[0].mxu0
  %v1253 = vadd.f32 0.0, %v1252
  %v1254 = vpop.f32.mrb[0].mxu0
  %v1255 = vadd.f32 0.0, %v1254
  %v1256 = vpop.f32.mrb[0].mxu0
  %v1257 = vadd.f32 0.0, %v1256
  %1258 = vmatprep.mubr.bf16.mxu0 0
  %1259 = vmatmul.mubr.bf16.gmra.mrb[0].mxu0 %v1214
  %v1260 = vpop.f32.mrb[0].mxu0
  %v1261 = vadd.f32 0.0, %v1260
  %v1262 = vpop.f32.mrb[0].mxu0
  %v1263 = vadd.f32 0.0, %v1262
  %v1264 = vpop.f32.mrb[0].mxu0
  %v1265 = vadd.f32 0.0, %v1264
  %v1266 = vpop.f32.mrb[0].mxu0
  %v1267 = vadd.f32 0.0, %v1266
  %1268 = vdwg.mxu0
  %1269 = vmatprep.subr.bf16.mxu0 %v1201
  %1270 = vmatpush1.bf16.msra.mxu0 %v1200
  %1271 = vmatprep.subr.bf16.mxu0 0
  %1272 = vmatpush1.bf16.msra.mxu0 0
  %1273 = vmatprep.subr.bf16.mxu0 0
  %1274 = vmatpush1.bf16.msra.mxu0 0
  %1275 = vmatprep.subr.bf16.mxu0 0
  %1276 = vmatpush1.bf16.msra.mxu0 0
  %1277 = vmatprep.subr.bf16.mxu0 0
  %1278 = vmatpush1.bf16.msra.mxu0 0
  %1279 = vmatprep.subr.bf16.mxu0 0
  %1280 = vmatpush1.bf16.msra.mxu0 0
  %1281 = vmatprep.subr.bf16.mxu0 0
  %1282 = vmatpush1.bf16.msra.mxu0 0
  %1283 = vmatprep.subr.bf16.mxu0 0
  %1284 = vmatpush1.bf16.msra.mxu0 0
  %1285 = vmatprep.subr.bf16.mxu0 0
  %1286 = vmatpush1.bf16.msra.mxu0 0
  %1287 = vmatprep.subr.bf16.mxu0 0
  %1288 = vmatpush1.bf16.msra.mxu0 0
  %1289 = vmatprep.subr.bf16.mxu0 0
  %1290 = vmatpush1.bf16.msra.mxu0 0
  %1291 = vmatprep.subr.bf16.mxu0 0
  %1292 = vmatpush1.bf16.msra.mxu0 0
  %1293 = vmatprep.subr.bf16.mxu0 0
  %1294 = vmatpush1.bf16.msra.mxu0 0
  %1295 = vmatprep.subr.bf16.mxu0 0
  %1296 = vmatpush1.bf16.msra.mxu0 0
  %1297 = vmatprep.subr.bf16.mxu0 0
  %1298 = vmatpush1.bf16.msra.mxu0 0
  %1299 = vmatprep.subr.bf16.mxu0 0
  %1300 = vmatpush1.bf16.msra.mxu0 0
  %1301 = vmatprep.mubr.bf16.mxu0 0
  %1302 = vmatmul.mubr.bf16.gmra.mrb[0].mxu0 %v1211
  %v1303 = vpop.f32.mrb[0].mxu0
  %v1304 = vadd.f32 0.0, %v1303
  %v1305 = vpop.f32.mrb[0].mxu0
  %v1306 = vadd.f32 0.0, %v1305
  %v1307 = vpop.f32.mrb[0].mxu0
  %v1308 = vadd.f32 0.0, %v1307
  %v1309 = vpop.f32.mrb[0].mxu0
  %v1310 = vadd.f32 0.0, %v1309
  %1311 = vmatprep.mubr.bf16.mxu0 0
  %1312 = vmatmul.mubr.bf16.gmra.mrb[0].mxu0 %v1214
  %v1313 = vpop.f32.mrb[0].mxu0
  %v1314 = vadd.f32 0.0, %v1313
  %v1315 = vpop.f32.mrb[0].mxu0
  %v1316 = vadd.f32 0.0, %v1315
  %v1317 = vpop.f32.mrb[0].mxu0
  %v1318 = vadd.f32 0.0, %v1317
  %v1319 = vpop.f32.mrb[0].mxu0
  %v1320 = vadd.f32 0.0, %v1319
  %1321 = vdwg.mxu0
  %1322 = vmatprep.subr.bf16.mxu0 %v1203
  %1323 = vmatpush1.bf16.msra.mxu0 %v1202
  %1324 = vmatprep.subr.bf16.mxu0 0
  %1325 = vmatpush1.bf16.msra.mxu0 0
  %1326 = vmatprep.subr.bf16.mxu0 0
  %1327 = vmatpush1.bf16.msra.mxu0 0
  %1328 = vmatprep.subr.bf16.mxu0 0
  %1329 = vmatpush1.bf16.msra.mxu0 0
  %1330 = vmatprep.subr.bf16.mxu0 0
  %1331 = vmatpush1.bf16.msra.mxu0 0
  %1332 = vmatprep.subr.bf16.mxu0 0
  %1333 = vmatpush1.bf16.msra.mxu0 0
  %1334 = vmatprep.subr.bf16.mxu0 0
  %1335 = vmatpush1.bf16.msra.mxu0 0
  %1336 = vmatprep.subr.bf16.mxu0 0
  %1337 = vmatpush1.bf16.msra.mxu0 0
  %1338 = vmatprep.subr.bf16.mxu0 0
  %1339 = vmatpush1.bf16.msra.mxu0 0
  %1340 = vmatprep.subr.bf16.mxu0 0
  %1341 = vmatpush1.bf16.msra.mxu0 0
  %1342 = vmatprep.subr.bf16.mxu0 0
  %1343 = vmatpush1.bf16.msra.mxu0 0
  %1344 = vmatprep.subr.bf16.mxu0 0
  %1345 = vmatpush1.bf16.msra.mxu0 0
  %1346 = vmatprep.subr.bf16.mxu0 0
  %1347 = vmatpush1.bf16.msra.mxu0 0
  %1348 = vmatprep.subr.bf16.mxu0 0
  %1349 = vmatpush1.bf16.msra.mxu0 0
  %1350 = vmatprep.subr.bf16.mxu0 0
  %1351 = vmatpush1.bf16.msra.mxu0 0
  %1352 = vmatprep.subr.bf16.mxu0 0
  %1353 = vmatpush1.bf16.msra.mxu0 0
  %1354 = vmatprep.mubr.bf16.mxu0 0
  %1355 = vmatmul.mubr.bf16.gmra.mrb[0].mxu0 %v1211
  %v1356 = vpop.f32.mrb[0].mxu0
  %v1357 = vadd.f32 0.0, %v1356
  %v1358 = vpop.f32.mrb[0].mxu0
  %v1359 = vadd.f32 0.0, %v1358
  %v1360 = vpop.f32.mrb[0].mxu0
  %v1361 = vadd.f32 0.0, %v1360
  %v1362 = vpop.f32.mrb[0].mxu0
  %v1363 = vadd.f32 0.0, %v1362
  %1364 = vmatprep.mubr.bf16.mxu0 0
  %1365 = vmatmul.mubr.bf16.gmra.mrb[0].mxu0 %v1214
  %v1366 = vpop.f32.mrb[0].mxu0
  %v1367 = vadd.f32 0.0, %v1366
  %v1368 = vpop.f32.mrb[0].mxu0
  %v1369 = vadd.f32 0.0, %v1368
  %v1370 = vpop.f32.mrb[0].mxu0
  %v1371 = vadd.f32 0.0, %v1370
  %v1372 = vpop.f32.mrb[0].mxu0
  %v1373 = vadd.f32 0.0, %v1372
  %1374 = vdwg.mxu0
  %v1375 = vadd.f32 %v1144, %v1251
  %v1376 = vadd.f32 %v1145, %v1253
  %v1377 = vadd.f32 %v1146, %v1304
  %v1378 = vadd.f32 %v1147, %v1306
  %v1379 = vadd.f32 %v1148, %v1357
  %v1380 = vadd.f32 %v1149, %v1359
  %v1381 = vadd.f32 %v1150, %v1255
  %v1382 = vadd.f32 %v1151, %v1257
  %v1383 = vadd.f32 %v1152, %v1308
  %v1384 = vadd.f32 %v1153, %v1310
  %v1385 = vadd.f32 %v1154, %v1361
  %v1386 = vadd.f32 %v1155, %v1363
  %v1387 = vadd.f32 %v1156, %v1261
  %v1388 = vadd.f32 %v1157, %v1263
  %v1389 = vadd.f32 %v1158, %v1314
  %v1390 = vadd.f32 %v1159, %v1316
  %v1391 = vadd.f32 %v1160, %v1367
  %v1392 = vadd.f32 %v1161, %v1369
  %v1393 = vadd.f32 %v1162, %v1265
  %v1394 = vadd.f32 %v1163, %v1267
  %v1395 = vadd.f32 %v1164, %v1318
  %v1396 = vadd.f32 %v1165, %v1320
  %v1397 = vadd.f32 %v1166, %v1371
  %v1398 = vadd.f32 %v1167, %v1373
  %s1399 = scalar_lea.vmem %s1, 96
  %v1400 = vld [vmem:[%s1399] sm:$0xf]
  %v1401 = vld [vmem:[%s1399 + $0x4] sm:$0xf]
  %v1402 = vld [vmem:[%s1399 + $0x8] sm:$0xf]
  %v1403 = vld [vmem:[%s1399 + $0xc] sm:$0xf]
  %v1408 = vunpack.c.l.b16 %v1400
  %v1409 = vunpack.c.l.b16 %v1401
  %v1410 = vunpack.c.l.b16 %v1402
  %v1411 = vunpack.c.l.b16 %v1403
  %v1412 = vpack.c.b16 %v1409, %v1408
  %v1413 = vpack.c.b16 %v1411, %v1410
  %1414 = vrot.lane.b32.xlu0 %v70, 92
  %v1415 = vpop.permute.xlu0 %1414
  %1416 = vrot.lane.b32.xlu0 %v71, 92
  %v1417 = vpop.permute.xlu0 %1416
  %1418 = vrot.lane.b32.xlu0 %v72, 92
  %v1419 = vpop.permute.xlu0 %1418
  %1420 = vrot.lane.b32.xlu0 %v73, 92
  %v1421 = vpop.permute.xlu0 %1420
  %1422 = vrot.lane.b32.xlu0 %v74, 92
  %v1423 = vpop.permute.xlu0 %1422
  %1424 = vrot.lane.b32.xlu0 %v75, 92
  %v1425 = vpop.permute.xlu0 %1424
  %1426 = vrot.lane.b32.xlu0 %v76, 92
  %v1427 = vpop.permute.xlu0 %1426
  %vm1428 = vcmask 752640
  %v1429 = vsel %vm1428, %v1415, %v1417
  %v1430 = vsel %vm1428, %v1417, %v1419
  %v1431 = vsel %vm1428, %v1419, %v1421
  %v1432 = vsel %vm1428, %v1421, %v1423
  %v1433 = vsel %vm1428, %v1423, %v1425
  %v1434 = vsel %vm1428, %v1425, %v1427
  %v1442 = vsel %vm104, %v1412, 0
  %v1445 = vsel %vm104, %v1413, 0
  %1447 = vmatprep.subr.bf16.mxu0 %v1430
  %1448 = vmatpush1.bf16.msra.mxu0 %v1429
  %1449 = vmatprep.subr.bf16.mxu0 0
  %1450 = vmatpush1.bf16.msra.mxu0 0
  %1451 = vmatprep.subr.bf16.mxu0 0
  %1452 = vmatpush1.bf16.msra.mxu0 0
  %1453 = vmatprep.subr.bf16.mxu0 0
  %1454 = vmatpush1.bf16.msra.mxu0 0
  %1455 = vmatprep.subr.bf16.mxu0 0
  %1456 = vmatpush1.bf16.msra.mxu0 0
  %1457 = vmatprep.subr.bf16.mxu0 0
  %1458 = vmatpush1.bf16.msra.mxu0 0
  %1459 = vmatprep.subr.bf16.mxu0 0
  %1460 = vmatpush1.bf16.msra.mxu0 0
  %1461 = vmatprep.subr.bf16.mxu0 0
  %1462 = vmatpush1.bf16.msra.mxu0 0
  %1463 = vmatprep.subr.bf16.mxu0 0
  %1464 = vmatpush1.bf16.msra.mxu0 0
  %1465 = vmatprep.subr.bf16.mxu0 0
  %1466 = vmatpush1.bf16.msra.mxu0 0
  %1467 = vmatprep.subr.bf16.mxu0 0
  %1468 = vmatpush1.bf16.msra.mxu0 0
  %1469 = vmatprep.subr.bf16.mxu0 0
  %1470 = vmatpush1.bf16.msra.mxu0 0
  %1471 = vmatprep.subr.bf16.mxu0 0
  %1472 = vmatpush1.bf16.msra.mxu0 0
  %1473 = vmatprep.subr.bf16.mxu0 0
  %1474 = vmatpush1.bf16.msra.mxu0 0
  %1475 = vmatprep.subr.bf16.mxu0 0
  %1476 = vmatpush1.bf16.msra.mxu0 0
  %1477 = vmatprep.subr.bf16.mxu0 0
  %1478 = vmatpush1.bf16.msra.mxu0 0
  %1479 = vmatprep.mubr.bf16.mxu0 0
  %1480 = vmatmul.mubr.bf16.gmra.mrb[0].mxu0 %v1442
  %v1481 = vpop.f32.mrb[0].mxu0
  %v1482 = vadd.f32 0.0, %v1481
  %v1483 = vpop.f32.mrb[0].mxu0
  %v1484 = vadd.f32 0.0, %v1483
  %v1485 = vpop.f32.mrb[0].mxu0
  %v1486 = vadd.f32 0.0, %v1485
  %v1487 = vpop.f32.mrb[0].mxu0
  %v1488 = vadd.f32 0.0, %v1487
  %1489 = vmatprep.mubr.bf16.mxu0 0
  %1490 = vmatmul.mubr.bf16.gmra.mrb[0].mxu0 %v1445
  %v1491 = vpop.f32.mrb[0].mxu0
  %v1492 = vadd.f32 0.0, %v1491
  %v1493 = vpop.f32.mrb[0].mxu0
  %v1494 = vadd.f32 0.0, %v1493
  %v1495 = vpop.f32.mrb[0].mxu0
  %v1496 = vadd.f32 0.0, %v1495
  %v1497 = vpop.f32.mrb[0].mxu0
  %v1498 = vadd.f32 0.0, %v1497
  %1499 = vdwg.mxu0
  %1500 = vmatprep.subr.bf16.mxu0 %v1432
  %1501 = vmatpush1.bf16.msra.mxu0 %v1431
  %1502 = vmatprep.subr.bf16.mxu0 0
  %1503 = vmatpush1.bf16.msra.mxu0 0
  %1504 = vmatprep.subr.bf16.mxu0 0
  %1505 = vmatpush1.bf16.msra.mxu0 0
  %1506 = vmatprep.subr.bf16.mxu0 0
  %1507 = vmatpush1.bf16.msra.mxu0 0
  %1508 = vmatprep.subr.bf16.mxu0 0
  %1509 = vmatpush1.bf16.msra.mxu0 0
  %1510 = vmatprep.subr.bf16.mxu0 0
  %1511 = vmatpush1.bf16.msra.mxu0 0
  %1512 = vmatprep.subr.bf16.mxu0 0
  %1513 = vmatpush1.bf16.msra.mxu0 0
  %1514 = vmatprep.subr.bf16.mxu0 0
  %1515 = vmatpush1.bf16.msra.mxu0 0
  %1516 = vmatprep.subr.bf16.mxu0 0
  %1517 = vmatpush1.bf16.msra.mxu0 0
  %1518 = vmatprep.subr.bf16.mxu0 0
  %1519 = vmatpush1.bf16.msra.mxu0 0
  %1520 = vmatprep.subr.bf16.mxu0 0
  %1521 = vmatpush1.bf16.msra.mxu0 0
  %1522 = vmatprep.subr.bf16.mxu0 0
  %1523 = vmatpush1.bf16.msra.mxu0 0
  %1524 = vmatprep.subr.bf16.mxu0 0
  %1525 = vmatpush1.bf16.msra.mxu0 0
  %1526 = vmatprep.subr.bf16.mxu0 0
  %1527 = vmatpush1.bf16.msra.mxu0 0
  %1528 = vmatprep.subr.bf16.mxu0 0
  %1529 = vmatpush1.bf16.msra.mxu0 0
  %1530 = vmatprep.subr.bf16.mxu0 0
  %1531 = vmatpush1.bf16.msra.mxu0 0
  %1532 = vmatprep.mubr.bf16.mxu0 0
  %1533 = vmatmul.mubr.bf16.gmra.mrb[0].mxu0 %v1442
  %v1534 = vpop.f32.mrb[0].mxu0
  %v1535 = vadd.f32 0.0, %v1534
  %v1536 = vpop.f32.mrb[0].mxu0
  %v1537 = vadd.f32 0.0, %v1536
  %v1538 = vpop.f32.mrb[0].mxu0
  %v1539 = vadd.f32 0.0, %v1538
  %v1540 = vpop.f32.mrb[0].mxu0
  %v1541 = vadd.f32 0.0, %v1540
  %1542 = vmatprep.mubr.bf16.mxu0 0
  %1543 = vmatmul.mubr.bf16.gmra.mrb[0].mxu0 %v1445
  %v1544 = vpop.f32.mrb[0].mxu0
  %v1545 = vadd.f32 0.0, %v1544
  %v1546 = vpop.f32.mrb[0].mxu0
  %v1547 = vadd.f32 0.0, %v1546
  %v1548 = vpop.f32.mrb[0].mxu0
  %v1549 = vadd.f32 0.0, %v1548
  %v1550 = vpop.f32.mrb[0].mxu0
  %v1551 = vadd.f32 0.0, %v1550
  %1552 = vdwg.mxu0
  %1553 = vmatprep.subr.bf16.mxu0 %v1434
  %1554 = vmatpush1.bf16.msra.mxu0 %v1433
  %1555 = vmatprep.subr.bf16.mxu0 0
  %1556 = vmatpush1.bf16.msra.mxu0 0
  %1557 = vmatprep.subr.bf16.mxu0 0
  %1558 = vmatpush1.bf16.msra.mxu0 0
  %1559 = vmatprep.subr.bf16.mxu0 0
  %1560 = vmatpush1.bf16.msra.mxu0 0
  %1561 = vmatprep.subr.bf16.mxu0 0
  %1562 = vmatpush1.bf16.msra.mxu0 0
  %1563 = vmatprep.subr.bf16.mxu0 0
  %1564 = vmatpush1.bf16.msra.mxu0 0
  %1565 = vmatprep.subr.bf16.mxu0 0
  %1566 = vmatpush1.bf16.msra.mxu0 0
  %1567 = vmatprep.subr.bf16.mxu0 0
  %1568 = vmatpush1.bf16.msra.mxu0 0
  %1569 = vmatprep.subr.bf16.mxu0 0
  %1570 = vmatpush1.bf16.msra.mxu0 0
  %1571 = vmatprep.subr.bf16.mxu0 0
  %1572 = vmatpush1.bf16.msra.mxu0 0
  %1573 = vmatprep.subr.bf16.mxu0 0
  %1574 = vmatpush1.bf16.msra.mxu0 0
  %1575 = vmatprep.subr.bf16.mxu0 0
  %1576 = vmatpush1.bf16.msra.mxu0 0
  %1577 = vmatprep.subr.bf16.mxu0 0
  %1578 = vmatpush1.bf16.msra.mxu0 0
  %1579 = vmatprep.subr.bf16.mxu0 0
  %1580 = vmatpush1.bf16.msra.mxu0 0
  %1581 = vmatprep.subr.bf16.mxu0 0
  %1582 = vmatpush1.bf16.msra.mxu0 0
  %1583 = vmatprep.subr.bf16.mxu0 0
  %1584 = vmatpush1.bf16.msra.mxu0 0
  %1585 = vmatprep.mubr.bf16.mxu0 0
  %1586 = vmatmul.mubr.bf16.gmra.mrb[0].mxu0 %v1442
  %v1587 = vpop.f32.mrb[0].mxu0
  %v1588 = vadd.f32 0.0, %v1587
  %v1589 = vpop.f32.mrb[0].mxu0
  %v1590 = vadd.f32 0.0, %v1589
  %v1591 = vpop.f32.mrb[0].mxu0
  %v1592 = vadd.f32 0.0, %v1591
  %v1593 = vpop.f32.mrb[0].mxu0
  %v1594 = vadd.f32 0.0, %v1593
  %1595 = vmatprep.mubr.bf16.mxu0 0
  %1596 = vmatmul.mubr.bf16.gmra.mrb[0].mxu0 %v1445
  %v1597 = vpop.f32.mrb[0].mxu0
  %v1598 = vadd.f32 0.0, %v1597
  %v1599 = vpop.f32.mrb[0].mxu0
  %v1600 = vadd.f32 0.0, %v1599
  %v1601 = vpop.f32.mrb[0].mxu0
  %v1602 = vadd.f32 0.0, %v1601
  %v1603 = vpop.f32.mrb[0].mxu0
  %v1604 = vadd.f32 0.0, %v1603
  %1605 = vdwg.mxu0
  %v1606 = vadd.f32 %v1375, %v1482
  %v1607 = vadd.f32 %v1376, %v1484
  %v1608 = vadd.f32 %v1377, %v1535
  %v1609 = vadd.f32 %v1378, %v1537
  %v1610 = vadd.f32 %v1379, %v1588
  %v1611 = vadd.f32 %v1380, %v1590
  %v1612 = vadd.f32 %v1381, %v1486
  %v1613 = vadd.f32 %v1382, %v1488
  %v1614 = vadd.f32 %v1383, %v1539
  %v1615 = vadd.f32 %v1384, %v1541
  %v1616 = vadd.f32 %v1385, %v1592
  %v1617 = vadd.f32 %v1386, %v1594
  %v1618 = vadd.f32 %v1387, %v1492
  %v1619 = vadd.f32 %v1388, %v1494
  %v1620 = vadd.f32 %v1389, %v1545
  %v1621 = vadd.f32 %v1390, %v1547
  %v1622 = vadd.f32 %v1391, %v1598
  %v1623 = vadd.f32 %v1392, %v1600
  %v1624 = vadd.f32 %v1393, %v1496
  %v1625 = vadd.f32 %v1394, %v1498
  %v1626 = vadd.f32 %v1395, %v1549
  %v1627 = vadd.f32 %v1396, %v1551
  %v1628 = vadd.f32 %v1397, %v1602
  %v1629 = vadd.f32 %v1398, %v1604
  %s1630 = scalar_lea.vmem %s1, 112
  %v1631 = vld [vmem:[%s1630] sm:$0xf]
  %v1632 = vld [vmem:[%s1630 + $0x4] sm:$0xf]
  %v1633 = vld [vmem:[%s1630 + $0x8] sm:$0xf]
  %v1634 = vld [vmem:[%s1630 + $0xc] sm:$0xf]
  %v1639 = vunpack.c.l.b16 %v1631
  %v1640 = vunpack.c.l.b16 %v1632
  %v1641 = vunpack.c.l.b16 %v1633
  %v1642 = vunpack.c.l.b16 %v1634
  %v1643 = vpack.c.b16 %v1640, %v1639
  %v1644 = vpack.c.b16 %v1642, %v1641
  %1645 = vrot.lane.b32.xlu0 %v70, 91
  %v1646 = vpop.permute.xlu0 %1645
  %1647 = vrot.lane.b32.xlu0 %v71, 91
  %v1648 = vpop.permute.xlu0 %1647
  %1649 = vrot.lane.b32.xlu0 %v72, 91
  %v1650 = vpop.permute.xlu0 %1649
  %1651 = vrot.lane.b32.xlu0 %v73, 91
  %v1652 = vpop.permute.xlu0 %1651
  %1653 = vrot.lane.b32.xlu0 %v74, 91
  %v1654 = vpop.permute.xlu0 %1653
  %1655 = vrot.lane.b32.xlu0 %v75, 91
  %v1656 = vpop.permute.xlu0 %1655
  %1657 = vrot.lane.b32.xlu0 %v76, 91
  %v1658 = vpop.permute.xlu0 %1657
  %vm1659 = vcmask 744448
  %v1660 = vsel %vm1659, %v1646, %v1648
  %v1661 = vsel %vm1659, %v1648, %v1650
  %v1662 = vsel %vm1659, %v1650, %v1652
  %v1663 = vsel %vm1659, %v1652, %v1654
  %v1664 = vsel %vm1659, %v1654, %v1656
  %v1665 = vsel %vm1659, %v1656, %v1658
  %v1673 = vsel %vm104, %v1643, 0
  %v1676 = vsel %vm104, %v1644, 0
  %1678 = vmatprep.subr.bf16.mxu0 %v1661
  %1679 = vmatpush1.bf16.msra.mxu0 %v1660
  %1680 = vmatprep.subr.bf16.mxu0 0
  %1681 = vmatpush1.bf16.msra.mxu0 0
  %1682 = vmatprep.subr.bf16.mxu0 0
  %1683 = vmatpush1.bf16.msra.mxu0 0
  %1684 = vmatprep.subr.bf16.mxu0 0
  %1685 = vmatpush1.bf16.msra.mxu0 0
  %1686 = vmatprep.subr.bf16.mxu0 0
  %1687 = vmatpush1.bf16.msra.mxu0 0
  %1688 = vmatprep.subr.bf16.mxu0 0
  %1689 = vmatpush1.bf16.msra.mxu0 0
  %1690 = vmatprep.subr.bf16.mxu0 0
  %1691 = vmatpush1.bf16.msra.mxu0 0
  %1692 = vmatprep.subr.bf16.mxu0 0
  %1693 = vmatpush1.bf16.msra.mxu0 0
  %1694 = vmatprep.subr.bf16.mxu0 0
  %1695 = vmatpush1.bf16.msra.mxu0 0
  %1696 = vmatprep.subr.bf16.mxu0 0
  %1697 = vmatpush1.bf16.msra.mxu0 0
  %1698 = vmatprep.subr.bf16.mxu0 0
  %1699 = vmatpush1.bf16.msra.mxu0 0
  %1700 = vmatprep.subr.bf16.mxu0 0
  %1701 = vmatpush1.bf16.msra.mxu0 0
  %1702 = vmatprep.subr.bf16.mxu0 0
  %1703 = vmatpush1.bf16.msra.mxu0 0
  %1704 = vmatprep.subr.bf16.mxu0 0
  %1705 = vmatpush1.bf16.msra.mxu0 0
  %1706 = vmatprep.subr.bf16.mxu0 0
  %1707 = vmatpush1.bf16.msra.mxu0 0
  %1708 = vmatprep.subr.bf16.mxu0 0
  %1709 = vmatpush1.bf16.msra.mxu0 0
  %1710 = vmatprep.mubr.bf16.mxu0 0
  %1711 = vmatmul.mubr.bf16.gmra.mrb[0].mxu0 %v1673
  %v1712 = vpop.f32.mrb[0].mxu0
  %v1713 = vadd.f32 0.0, %v1712
  %v1714 = vpop.f32.mrb[0].mxu0
  %v1715 = vadd.f32 0.0, %v1714
  %v1716 = vpop.f32.mrb[0].mxu0
  %v1717 = vadd.f32 0.0, %v1716
  %v1718 = vpop.f32.mrb[0].mxu0
  %v1719 = vadd.f32 0.0, %v1718
  %1720 = vmatprep.mubr.bf16.mxu0 0
  %1721 = vmatmul.mubr.bf16.gmra.mrb[0].mxu0 %v1676
  %v1722 = vpop.f32.mrb[0].mxu0
  %v1723 = vadd.f32 0.0, %v1722
  %v1724 = vpop.f32.mrb[0].mxu0
  %v1725 = vadd.f32 0.0, %v1724
  %v1726 = vpop.f32.mrb[0].mxu0
  %v1727 = vadd.f32 0.0, %v1726
  %v1728 = vpop.f32.mrb[0].mxu0
  %v1729 = vadd.f32 0.0, %v1728
  %1730 = vdwg.mxu0
  %1731 = vmatprep.subr.bf16.mxu0 %v1663
  %1732 = vmatpush1.bf16.msra.mxu0 %v1662
  %1733 = vmatprep.subr.bf16.mxu0 0
  %1734 = vmatpush1.bf16.msra.mxu0 0
  %1735 = vmatprep.subr.bf16.mxu0 0
  %1736 = vmatpush1.bf16.msra.mxu0 0
  %1737 = vmatprep.subr.bf16.mxu0 0
  %1738 = vmatpush1.bf16.msra.mxu0 0
  %1739 = vmatprep.subr.bf16.mxu0 0
  %1740 = vmatpush1.bf16.msra.mxu0 0
  %1741 = vmatprep.subr.bf16.mxu0 0
  %1742 = vmatpush1.bf16.msra.mxu0 0
  %1743 = vmatprep.subr.bf16.mxu0 0
  %1744 = vmatpush1.bf16.msra.mxu0 0
  %1745 = vmatprep.subr.bf16.mxu0 0
  %1746 = vmatpush1.bf16.msra.mxu0 0
  %1747 = vmatprep.subr.bf16.mxu0 0
  %1748 = vmatpush1.bf16.msra.mxu0 0
  %1749 = vmatprep.subr.bf16.mxu0 0
  %1750 = vmatpush1.bf16.msra.mxu0 0
  %1751 = vmatprep.subr.bf16.mxu0 0
  %1752 = vmatpush1.bf16.msra.mxu0 0
  %1753 = vmatprep.subr.bf16.mxu0 0
  %1754 = vmatpush1.bf16.msra.mxu0 0
  %1755 = vmatprep.subr.bf16.mxu0 0
  %1756 = vmatpush1.bf16.msra.mxu0 0
  %1757 = vmatprep.subr.bf16.mxu0 0
  %1758 = vmatpush1.bf16.msra.mxu0 0
  %1759 = vmatprep.subr.bf16.mxu0 0
  %1760 = vmatpush1.bf16.msra.mxu0 0
  %1761 = vmatprep.subr.bf16.mxu0 0
  %1762 = vmatpush1.bf16.msra.mxu0 0
  %1763 = vmatprep.mubr.bf16.mxu0 0
  %1764 = vmatmul.mubr.bf16.gmra.mrb[0].mxu0 %v1673
  %v1765 = vpop.f32.mrb[0].mxu0
  %v1766 = vadd.f32 0.0, %v1765
  %v1767 = vpop.f32.mrb[0].mxu0
  %v1768 = vadd.f32 0.0, %v1767
  %v1769 = vpop.f32.mrb[0].mxu0
  %v1770 = vadd.f32 0.0, %v1769
  %v1771 = vpop.f32.mrb[0].mxu0
  %v1772 = vadd.f32 0.0, %v1771
  %1773 = vmatprep.mubr.bf16.mxu0 0
  %1774 = vmatmul.mubr.bf16.gmra.mrb[0].mxu0 %v1676
  %v1775 = vpop.f32.mrb[0].mxu0
  %v1776 = vadd.f32 0.0, %v1775
  %v1777 = vpop.f32.mrb[0].mxu0
  %v1778 = vadd.f32 0.0, %v1777
  %v1779 = vpop.f32.mrb[0].mxu0
  %v1780 = vadd.f32 0.0, %v1779
  %v1781 = vpop.f32.mrb[0].mxu0
  %v1782 = vadd.f32 0.0, %v1781
  %1783 = vdwg.mxu0
  %1784 = vmatprep.subr.bf16.mxu0 %v1665
  %1785 = vmatpush1.bf16.msra.mxu0 %v1664
  %1786 = vmatprep.subr.bf16.mxu0 0
  %1787 = vmatpush1.bf16.msra.mxu0 0
  %1788 = vmatprep.subr.bf16.mxu0 0
  %1789 = vmatpush1.bf16.msra.mxu0 0
  %1790 = vmatprep.subr.bf16.mxu0 0
  %1791 = vmatpush1.bf16.msra.mxu0 0
  %1792 = vmatprep.subr.bf16.mxu0 0
  %1793 = vmatpush1.bf16.msra.mxu0 0
  %1794 = vmatprep.subr.bf16.mxu0 0
  %1795 = vmatpush1.bf16.msra.mxu0 0
  %1796 = vmatprep.subr.bf16.mxu0 0
  %1797 = vmatpush1.bf16.msra.mxu0 0
  %1798 = vmatprep.subr.bf16.mxu0 0
  %1799 = vmatpush1.bf16.msra.mxu0 0
  %1800 = vmatprep.subr.bf16.mxu0 0
  %1801 = vmatpush1.bf16.msra.mxu0 0
  %1802 = vmatprep.subr.bf16.mxu0 0
  %1803 = vmatpush1.bf16.msra.mxu0 0
  %1804 = vmatprep.subr.bf16.mxu0 0
  %1805 = vmatpush1.bf16.msra.mxu0 0
  %1806 = vmatprep.subr.bf16.mxu0 0
  %1807 = vmatpush1.bf16.msra.mxu0 0
  %1808 = vmatprep.subr.bf16.mxu0 0
  %1809 = vmatpush1.bf16.msra.mxu0 0
  %1810 = vmatprep.subr.bf16.mxu0 0
  %1811 = vmatpush1.bf16.msra.mxu0 0
  %1812 = vmatprep.subr.bf16.mxu0 0
  %1813 = vmatpush1.bf16.msra.mxu0 0
  %1814 = vmatprep.subr.bf16.mxu0 0
  %1815 = vmatpush1.bf16.msra.mxu0 0
  %1816 = vmatprep.mubr.bf16.mxu0 0
  %1817 = vmatmul.mubr.bf16.gmra.mrb[0].mxu0 %v1673
  %v1818 = vpop.f32.mrb[0].mxu0
  %v1819 = vadd.f32 0.0, %v1818
  %v1820 = vpop.f32.mrb[0].mxu0
  %v1821 = vadd.f32 0.0, %v1820
  %v1822 = vpop.f32.mrb[0].mxu0
  %v1823 = vadd.f32 0.0, %v1822
  %v1824 = vpop.f32.mrb[0].mxu0
  %v1825 = vadd.f32 0.0, %v1824
  %1826 = vmatprep.mubr.bf16.mxu0 0
  %1827 = vmatmul.mubr.bf16.gmra.mrb[0].mxu0 %v1676
  %v1828 = vpop.f32.mrb[0].mxu0
  %v1829 = vadd.f32 0.0, %v1828
  %v1830 = vpop.f32.mrb[0].mxu0
  %v1831 = vadd.f32 0.0, %v1830
  %v1832 = vpop.f32.mrb[0].mxu0
  %v1833 = vadd.f32 0.0, %v1832
  %v1834 = vpop.f32.mrb[0].mxu0
  %v1835 = vadd.f32 0.0, %v1834
  %1836 = vdwg.mxu0
  %v1837 = vadd.f32 %v1606, %v1713
  %v1838 = vadd.f32 %v1607, %v1715
  %v1839 = vadd.f32 %v1608, %v1766
  %v1840 = vadd.f32 %v1609, %v1768
  %v1841 = vadd.f32 %v1610, %v1819
  %v1842 = vadd.f32 %v1611, %v1821
  %v1843 = vadd.f32 %v1612, %v1717
  %v1844 = vadd.f32 %v1613, %v1719
  %v1845 = vadd.f32 %v1614, %v1770
  %v1846 = vadd.f32 %v1615, %v1772
  %v1847 = vadd.f32 %v1616, %v1823
  %v1848 = vadd.f32 %v1617, %v1825
  %v1849 = vadd.f32 %v1618, %v1723
  %v1850 = vadd.f32 %v1619, %v1725
  %v1851 = vadd.f32 %v1620, %v1776
  %v1852 = vadd.f32 %v1621, %v1778
  %v1853 = vadd.f32 %v1622, %v1829
  %v1854 = vadd.f32 %v1623, %v1831
  %v1855 = vadd.f32 %v1624, %v1727
  %v1856 = vadd.f32 %v1625, %v1729
  %v1857 = vadd.f32 %v1626, %v1780
  %v1858 = vadd.f32 %v1627, %v1782
  %v1859 = vadd.f32 %v1628, %v1833
  %v1860 = vadd.f32 %v1629, %v1835
  %s1861 = scalar_lea.vmem %s1, 128
  %v1862 = vld [vmem:[%s1861] sm:$0xf]
  %v1863 = vld [vmem:[%s1861 + $0x4] sm:$0xf]
  %v1864 = vld [vmem:[%s1861 + $0x8] sm:$0xf]
  %v1865 = vld [vmem:[%s1861 + $0xc] sm:$0xf]
  %v1870 = vunpack.c.l.b16 %v1862
  %v1871 = vunpack.c.l.b16 %v1863
  %v1872 = vunpack.c.l.b16 %v1864
  %v1873 = vunpack.c.l.b16 %v1865
  %v1874 = vpack.c.b16 %v1871, %v1870
  %v1875 = vpack.c.b16 %v1873, %v1872
  %1876 = vrot.lane.b32.xlu0 %v70, 90
  %v1877 = vpop.permute.xlu0 %1876
  %1878 = vrot.lane.b32.xlu0 %v71, 90
  %v1879 = vpop.permute.xlu0 %1878
  %1880 = vrot.lane.b32.xlu0 %v72, 90
  %v1881 = vpop.permute.xlu0 %1880
  %1882 = vrot.lane.b32.xlu0 %v73, 90
  %v1883 = vpop.permute.xlu0 %1882
  %1884 = vrot.lane.b32.xlu0 %v74, 90
  %v1885 = vpop.permute.xlu0 %1884
  %1886 = vrot.lane.b32.xlu0 %v75, 90
  %v1887 = vpop.permute.xlu0 %1886
  %1888 = vrot.lane.b32.xlu0 %v76, 90
  %v1889 = vpop.permute.xlu0 %1888
  %vm1890 = vcmask 736256
  %v1891 = vsel %vm1890, %v1877, %v1879
  %v1892 = vsel %vm1890, %v1879, %v1881
  %v1893 = vsel %vm1890, %v1881, %v1883
  %v1894 = vsel %vm1890, %v1883, %v1885
  %v1895 = vsel %vm1890, %v1885, %v1887
  %v1896 = vsel %vm1890, %v1887, %v1889
  %v1904 = vsel %vm104, %v1874, 0
  %v1907 = vsel %vm104, %v1875, 0
  %1909 = vmatprep.subr.bf16.mxu0 %v1892
  %1910 = vmatpush1.bf16.msra.mxu0 %v1891
  %1911 = vmatprep.subr.bf16.mxu0 0
  %1912 = vmatpush1.bf16.msra.mxu0 0
  %1913 = vmatprep.subr.bf16.mxu0 0
  %1914 = vmatpush1.bf16.msra.mxu0 0
  %1915 = vmatprep.subr.bf16.mxu0 0
  %1916 = vmatpush1.bf16.msra.mxu0 0
  %1917 = vmatprep.subr.bf16.mxu0 0
  %1918 = vmatpush1.bf16.msra.mxu0 0
  %1919 = vmatprep.subr.bf16.mxu0 0
  %1920 = vmatpush1.bf16.msra.mxu0 0
  %1921 = vmatprep.subr.bf16.mxu0 0
  %1922 = vmatpush1.bf16.msra.mxu0 0
  %1923 = vmatprep.subr.bf16.mxu0 0
  %1924 = vmatpush1.bf16.msra.mxu0 0
  %1925 = vmatprep.subr.bf16.mxu0 0
  %1926 = vmatpush1.bf16.msra.mxu0 0
  %1927 = vmatprep.subr.bf16.mxu0 0
  %1928 = vmatpush1.bf16.msra.mxu0 0
  %1929 = vmatprep.subr.bf16.mxu0 0
  %1930 = vmatpush1.bf16.msra.mxu0 0
  %1931 = vmatprep.subr.bf16.mxu0 0
  %1932 = vmatpush1.bf16.msra.mxu0 0
  %1933 = vmatprep.subr.bf16.mxu0 0
  %1934 = vmatpush1.bf16.msra.mxu0 0
  %1935 = vmatprep.subr.bf16.mxu0 0
  %1936 = vmatpush1.bf16.msra.mxu0 0
  %1937 = vmatprep.subr.bf16.mxu0 0
  %1938 = vmatpush1.bf16.msra.mxu0 0
  %1939 = vmatprep.subr.bf16.mxu0 0
  %1940 = vmatpush1.bf16.msra.mxu0 0
  %1941 = vmatprep.mubr.bf16.mxu0 0
  %1942 = vmatmul.mubr.bf16.gmra.mrb[0].mxu0 %v1904
  %v1943 = vpop.f32.mrb[0].mxu0
  %v1944 = vadd.f32 0.0, %v1943
  %v1945 = vpop.f32.mrb[0].mxu0
  %v1946 = vadd.f32 0.0, %v1945
  %v1947 = vpop.f32.mrb[0].mxu0
  %v1948 = vadd.f32 0.0, %v1947
  %v1949 = vpop.f32.mrb[0].mxu0
  %v1950 = vadd.f32 0.0, %v1949
  %1951 = vmatprep.mubr.bf16.mxu0 0
  %1952 = vmatmul.mubr.bf16.gmra.mrb[0].mxu0 %v1907
  %v1953 = vpop.f32.mrb[0].mxu0
  %v1954 = vadd.f32 0.0, %v1953
  %v1955 = vpop.f32.mrb[0].mxu0
  %v1956 = vadd.f32 0.0, %v1955
  %v1957 = vpop.f32.mrb[0].mxu0
  %v1958 = vadd.f32 0.0, %v1957
  %v1959 = vpop.f32.mrb[0].mxu0
  %v1960 = vadd.f32 0.0, %v1959
  %1961 = vdwg.mxu0
  %1962 = vmatprep.subr.bf16.mxu0 %v1894
  %1963 = vmatpush1.bf16.msra.mxu0 %v1893
  %1964 = vmatprep.subr.bf16.mxu0 0
  %1965 = vmatpush1.bf16.msra.mxu0 0
  %1966 = vmatprep.subr.bf16.mxu0 0
  %1967 = vmatpush1.bf16.msra.mxu0 0
  %1968 = vmatprep.subr.bf16.mxu0 0
  %1969 = vmatpush1.bf16.msra.mxu0 0
  %1970 = vmatprep.subr.bf16.mxu0 0
  %1971 = vmatpush1.bf16.msra.mxu0 0
  %1972 = vmatprep.subr.bf16.mxu0 0
  %1973 = vmatpush1.bf16.msra.mxu0 0
  %1974 = vmatprep.subr.bf16.mxu0 0
  %1975 = vmatpush1.bf16.msra.mxu0 0
  %1976 = vmatprep.subr.bf16.mxu0 0
  %1977 = vmatpush1.bf16.msra.mxu0 0
  %1978 = vmatprep.subr.bf16.mxu0 0
  %1979 = vmatpush1.bf16.msra.mxu0 0
  %1980 = vmatprep.subr.bf16.mxu0 0
  %1981 = vmatpush1.bf16.msra.mxu0 0
  %1982 = vmatprep.subr.bf16.mxu0 0
  %1983 = vmatpush1.bf16.msra.mxu0 0
  %1984 = vmatprep.subr.bf16.mxu0 0
  %1985 = vmatpush1.bf16.msra.mxu0 0
  %1986 = vmatprep.subr.bf16.mxu0 0
  %1987 = vmatpush1.bf16.msra.mxu0 0
  %1988 = vmatprep.subr.bf16.mxu0 0
  %1989 = vmatpush1.bf16.msra.mxu0 0
  %1990 = vmatprep.subr.bf16.mxu0 0
  %1991 = vmatpush1.bf16.msra.mxu0 0
  %1992 = vmatprep.subr.bf16.mxu0 0
  %1993 = vmatpush1.bf16.msra.mxu0 0
  %1994 = vmatprep.mubr.bf16.mxu0 0
  %1995 = vmatmul.mubr.bf16.gmra.mrb[0].mxu0 %v1904
  %v1996 = vpop.f32.mrb[0].mxu0
  %v1997 = vadd.f32 0.0, %v1996
  %v1998 = vpop.f32.mrb[0].mxu0
  %v1999 = vadd.f32 0.0, %v1998
  %v2000 = vpop.f32.mrb[0].mxu0
  %v2001 = vadd.f32 0.0, %v2000
  %v2002 = vpop.f32.mrb[0].mxu0
  %v2003 = vadd.f32 0.0, %v2002
  %2004 = vmatprep.mubr.bf16.mxu0 0
  %2005 = vmatmul.mubr.bf16.gmra.mrb[0].mxu0 %v1907
  %v2006 = vpop.f32.mrb[0].mxu0
  %v2007 = vadd.f32 0.0, %v2006
  %v2008 = vpop.f32.mrb[0].mxu0
  %v2009 = vadd.f32 0.0, %v2008
  %v2010 = vpop.f32.mrb[0].mxu0
  %v2011 = vadd.f32 0.0, %v2010
  %v2012 = vpop.f32.mrb[0].mxu0
  %v2013 = vadd.f32 0.0, %v2012
  %2014 = vdwg.mxu0
  %2015 = vmatprep.subr.bf16.mxu0 %v1896
  %2016 = vmatpush1.bf16.msra.mxu0 %v1895
  %2017 = vmatprep.subr.bf16.mxu0 0
  %2018 = vmatpush1.bf16.msra.mxu0 0
  %2019 = vmatprep.subr.bf16.mxu0 0
  %2020 = vmatpush1.bf16.msra.mxu0 0
  %2021 = vmatprep.subr.bf16.mxu0 0
  %2022 = vmatpush1.bf16.msra.mxu0 0
  %2023 = vmatprep.subr.bf16.mxu0 0
  %2024 = vmatpush1.bf16.msra.mxu0 0
  %2025 = vmatprep.subr.bf16.mxu0 0
  %2026 = vmatpush1.bf16.msra.mxu0 0
  %2027 = vmatprep.subr.bf16.mxu0 0
  %2028 = vmatpush1.bf16.msra.mxu0 0
  %2029 = vmatprep.subr.bf16.mxu0 0
  %2030 = vmatpush1.bf16.msra.mxu0 0
  %2031 = vmatprep.subr.bf16.mxu0 0
  %2032 = vmatpush1.bf16.msra.mxu0 0
  %2033 = vmatprep.subr.bf16.mxu0 0
  %2034 = vmatpush1.bf16.msra.mxu0 0
  %2035 = vmatprep.subr.bf16.mxu0 0
  %2036 = vmatpush1.bf16.msra.mxu0 0
  %2037 = vmatprep.subr.bf16.mxu0 0
  %2038 = vmatpush1.bf16.msra.mxu0 0
  %2039 = vmatprep.subr.bf16.mxu0 0
  %2040 = vmatpush1.bf16.msra.mxu0 0
  %2041 = vmatprep.subr.bf16.mxu0 0
  %2042 = vmatpush1.bf16.msra.mxu0 0
  %2043 = vmatprep.subr.bf16.mxu0 0
  %2044 = vmatpush1.bf16.msra.mxu0 0
  %2045 = vmatprep.subr.bf16.mxu0 0
  %2046 = vmatpush1.bf16.msra.mxu0 0
  %2047 = vmatprep.mubr.bf16.mxu0 0
  %2048 = vmatmul.mubr.bf16.gmra.mrb[0].mxu0 %v1904
  %v2049 = vpop.f32.mrb[0].mxu0
  %v2050 = vadd.f32 0.0, %v2049
  %v2051 = vpop.f32.mrb[0].mxu0
  %v2052 = vadd.f32 0.0, %v2051
  %v2053 = vpop.f32.mrb[0].mxu0
  %v2054 = vadd.f32 0.0, %v2053
  %v2055 = vpop.f32.mrb[0].mxu0
  %v2056 = vadd.f32 0.0, %v2055
  %2057 = vmatprep.mubr.bf16.mxu0 0
  %2058 = vmatmul.mubr.bf16.gmra.mrb[0].mxu0 %v1907
  %v2059 = vpop.f32.mrb[0].mxu0
  %v2060 = vadd.f32 0.0, %v2059
  %v2061 = vpop.f32.mrb[0].mxu0
  %v2062 = vadd.f32 0.0, %v2061
  %v2063 = vpop.f32.mrb[0].mxu0
  %v2064 = vadd.f32 0.0, %v2063
  %v2065 = vpop.f32.mrb[0].mxu0
  %v2066 = vadd.f32 0.0, %v2065
  %2067 = vdwg.mxu0
  %v2068 = vadd.f32 %v1837, %v1944
  %v2069 = vadd.f32 %v1838, %v1946
  %v2070 = vadd.f32 %v1839, %v1997
  %v2071 = vadd.f32 %v1840, %v1999
  %v2072 = vadd.f32 %v1841, %v2050
  %v2073 = vadd.f32 %v1842, %v2052
  %v2074 = vadd.f32 %v1843, %v1948
  %v2075 = vadd.f32 %v1844, %v1950
  %v2076 = vadd.f32 %v1845, %v2001
  %v2077 = vadd.f32 %v1846, %v2003
  %v2078 = vadd.f32 %v1847, %v2054
  %v2079 = vadd.f32 %v1848, %v2056
  %v2080 = vadd.f32 %v1849, %v1954
  %v2081 = vadd.f32 %v1850, %v1956
  %v2082 = vadd.f32 %v1851, %v2007
  %v2083 = vadd.f32 %v1852, %v2009
  %v2084 = vadd.f32 %v1853, %v2060
  %v2085 = vadd.f32 %v1854, %v2062
  %v2086 = vadd.f32 %v1855, %v1958
  %v2087 = vadd.f32 %v1856, %v1960
  %v2088 = vadd.f32 %v1857, %v2011
  %v2089 = vadd.f32 %v1858, %v2013
  %v2090 = vadd.f32 %v1859, %v2064
  %v2091 = vadd.f32 %v1860, %v2066
  %v2092 = vld [vmem:[%s2] sm:$0xff]
  %v2093 = vld [vmem:[%s2 + $0x8] sm:$0xff]
  %v2094 = vld [vmem:[%s2 + $0x10] sm:$0xff]
  %v2095 = vld [vmem:[%s2 + $0x18] sm:$0xff]
  %2097 = vset.pattern.permute.xlu0 0
  %2098 = vperm.xlu0 %2097, %v2092
  %v2099 = vpop.permute.xlu0 %2098
  %2102 = vset.pattern.permute.xlu0 0
  %2103 = vperm.xlu0 %2102, %v2093
  %v2104 = vpop.permute.xlu0 %2103
  %2107 = vset.pattern.permute.xlu0 0
  %2108 = vperm.xlu0 %2107, %v2094
  %v2109 = vpop.permute.xlu0 %2108
  %2112 = vset.pattern.permute.xlu0 0
  %2113 = vperm.xlu0 %2112, %v2095
  %v2114 = vpop.permute.xlu0 %2113
  %v2116 = vadd.f32 %v2068, %v2099
  %v2117 = vadd.f32 %v2069, %v2099
  %v2118 = vadd.f32 %v2070, %v2099
  %v2119 = vadd.f32 %v2071, %v2099
  %v2120 = vadd.f32 %v2072, %v2099
  %v2121 = vadd.f32 %v2073, %v2099
  %v2122 = vadd.f32 %v2074, %v2104
  %v2123 = vadd.f32 %v2075, %v2104
  %v2124 = vadd.f32 %v2076, %v2104
  %v2125 = vadd.f32 %v2077, %v2104
  %v2126 = vadd.f32 %v2078, %v2104
  %v2127 = vadd.f32 %v2079, %v2104
  %v2128 = vadd.f32 %v2080, %v2109
  %v2129 = vadd.f32 %v2081, %v2109
  %v2130 = vadd.f32 %v2082, %v2109
  %v2131 = vadd.f32 %v2083, %v2109
  %v2132 = vadd.f32 %v2084, %v2109
  %v2133 = vadd.f32 %v2085, %v2109
  %v2134 = vadd.f32 %v2086, %v2114
  %v2135 = vadd.f32 %v2087, %v2114
  %v2136 = vadd.f32 %v2088, %v2114
  %v2137 = vadd.f32 %v2089, %v2114
  %v2138 = vadd.f32 %v2090, %v2114
  %v2139 = vadd.f32 %v2091, %v2114
  %2140 = vst [vmem:[%s3] sm:$0xff] %v2116
  %2141 = vst [vmem:[%s3 + $0x8] sm:$0xff] %v2117
  %2142 = vst [vmem:[%s3 + $0x10] sm:$0xff] %v2118
  %2143 = vst [vmem:[%s3 + $0x18] sm:$0xff] %v2119
  %2144 = vst [vmem:[%s3 + $0x20] sm:$0xff] %v2120
  %2145 = vst [vmem:[%s3 + $0x28] sm:$0xff] %v2121
  %2146 = vst [vmem:[%s3 + $0x30] sm:$0xff] %v2122
  %2147 = vst [vmem:[%s3 + $0x38] sm:$0xff] %v2123
  %2148 = vst [vmem:[%s3 + $0x40] sm:$0xff] %v2124
  %2149 = vst [vmem:[%s3 + $0x48] sm:$0xff] %v2125
  %2150 = vst [vmem:[%s3 + $0x50] sm:$0xff] %v2126
  %2151 = vst [vmem:[%s3 + $0x58] sm:$0xff] %v2127
  %2152 = vst [vmem:[%s3 + $0x60] sm:$0xff] %v2128
  %2153 = vst [vmem:[%s3 + $0x68] sm:$0xff] %v2129
  %2154 = vst [vmem:[%s3 + $0x70] sm:$0xff] %v2130
  %2155 = vst [vmem:[%s3 + $0x78] sm:$0xff] %v2131
  %2156 = vst [vmem:[%s3 + $0x80] sm:$0xff] %v2132
  %2157 = vst [vmem:[%s3 + $0x88] sm:$0xff] %v2133
  %2158 = vst [vmem:[%s3 + $0x90] sm:$0xff] %v2134
  %2159 = vst [vmem:[%s3 + $0x98] sm:$0xff] %v2135
  %2160 = vst [vmem:[%s3 + $0xa0] sm:$0xff] %v2136
  %2161 = vst [vmem:[%s3 + $0xa8] sm:$0xff] %v2137
  %2162 = vst [vmem:[%s3 + $0xb0] sm:$0xff] %v2138
  %2163 = vst [vmem:[%s3 + $0xb8] sm:$0xff] %v2139
  // Predicated region
  $region14: #{_lambda_.6} parent=0 // pred_check
    _
  $region15: #{_lambda_.6} parent=0 // pred_check_branch
    %2165 = sbr.rel (0) target = $region17
  $region16: #{_lambda_.6} parent=0 // pred_region
    _
  $region17: #{_lambda_.6} parent=0 // pred_fallthru
    _
  // Predicated region
  $region18: #{_lambda_.6} parent=0 // pred_check
    _
  $region19: #{_lambda_.6} parent=0 // pred_check_branch
    %2167 = sbr.rel (0) target = $region21
  $region20: #{_lambda_.6} parent=0 // pred_region
    _
  $region21: #{_lambda_.6} parent=0 // pred_fallthru
    _

// kernel: _lambda_.7
$region0: #{_lambda_.7}
  #allocation0 [shape = 'u32[]', space=smem, size = 0x4, offset = 0x4, fixed_abs, tag = 'smem constant byte address 0x4 - core index']
  #allocation1 [shape = 'u32[144,128]{1,0:T(1,128)}', space=vmem, size = 0x12000, scoped, tag = 'internal scratch']
  %s0 = inlined_call_operand.vmem [shape: bf16[16,2048], index: 0, kind: input, shape index: {}]
  %s1 = inlined_call_operand.vmem [shape: bf16[1,16,16], index: 1, kind: input, shape index: {}]
  %s2 = inlined_call_operand.vmem [shape: f32[16,1], index: 2, kind: input, shape index: {}]
  %s3 = inlined_call_operand.vmem [shape: f32[16,2048], index: 3, kind: input, shape index: {}]
  %s4 = inlined_call_operand.vmem [shape: f32[16,2048], index: 4, kind: output, shape index: {}]
  %s5 = sld [smem:[#allocation0]]
  $region26: #{_lambda_.7} parent=0
    _
  %s7 = ssub.s32 1, %s5
  %s8 = scalar_select 0, %s7, %s5
  // Predicated region
  $region2: #{_lambda_.7} parent=0 // pred_check
    _
  $region3: #{_lambda_.7} parent=0 // pred_check_branch
    %10 = sbr.rel (0) target = $region5
  $region4: #{_lambda_.7} parent=0 // pred_region
    _
  $region5: #{_lambda_.7} parent=0 // pred_fallthru
    _
  // Predicated region
  $region6: #{_lambda_.7} parent=0 // pred_check
    _
  $region7: #{_lambda_.7} parent=0 // pred_check_branch
    %12 = sbr.rel (0) target = $region9
  $region8: #{_lambda_.7} parent=0 // pred_region
    _
  $region9: #{_lambda_.7} parent=0 // pred_fallthru
    _
  // Predicated region
  $region10: #{_lambda_.7} parent=0 // pred_check
    _
  $region11: #{_lambda_.7} parent=0 // pred_check_branch
    %14 = sbr.rel (0) target = $region13
  $region12: #{_lambda_.7} parent=0 // pred_region
    _
  $region13: #{_lambda_.7} parent=0 // pred_fallthru
    _
  // Predicated region
  $region14: #{_lambda_.7} parent=0 // pred_check
    _
  $region15: #{_lambda_.7} parent=0 // pred_check_branch
    %16 = sbr.rel (0) target = $region17
  $region16: #{_lambda_.7} parent=0 // pred_region
    _
  $region17: #{_lambda_.7} parent=0 // pred_fallthru
    _
  %v18 = vld [vmem:[%s1] sm:$0xf]
  %v19 = vld [vmem:[%s1 + $0x4] sm:$0xf]
  %v20 = vld [vmem:[%s0] sm:$0xff]
  %v21 = vld [vmem:[%s0 + $0x8] sm:$0xff]
  %v22 = vld [vmem:[%s0 + $0x10] sm:$0xff]
  %v23 = vld [vmem:[%s0 + $0x18] sm:$0xff]
  %v24 = vld [vmem:[%s0 + $0x20] sm:$0xff]
  %v25 = vld [vmem:[%s0 + $0x28] sm:$0xff]
  %v26 = vld [vmem:[%s0 + $0x30] sm:$0xff]
  %v27 = vld [vmem:[%s0 + $0x38] sm:$0xff]
  %v28 = vld [vmem:[%s0 + $0x40] sm:$0xff]
  %v29 = vld [vmem:[%s0 + $0x48] sm:$0xff]
  %v30 = vld [vmem:[%s0 + $0x50] sm:$0xff]
  %v31 = vld [vmem:[%s0 + $0x58] sm:$0xff]
  %v32 = vld [vmem:[%s0 + $0x60] sm:$0xff]
  %v33 = vld [vmem:[%s0 + $0x68] sm:$0xff]
  %v34 = vld [vmem:[%s0 + $0x70] sm:$0xff]
  %v35 = vld [vmem:[%s0 + $0x78] sm:$0xff]
  %v36 = vld [vmem:[%s2] sm:$0xff]
  %v37 = vld [vmem:[%s2 + $0x8] sm:$0xff]
  %39 = vset.pattern.permute.xlu0 0
  %40 = vperm.xlu0 %39, %v36
  %v41 = vpop.permute.xlu0 %40
  %44 = vset.pattern.permute.xlu0 0
  %45 = vperm.xlu0 %44, %v37
  %v46 = vpop.permute.xlu0 %45
  %v50 = vunpack.c.l.b16 %v18
  %v51 = vunpack.c.l.b16 %v19
  %v52 = vpack.c.b16 %v51, %v50
  %v69 = vunpack.c.l.b16 %v20
  %v70 = vunpack.c.h.b16 %v20
  %v71 = vunpack.c.l.b16 %v21
  %v72 = vunpack.c.h.b16 %v21
  %v73 = vunpack.c.l.b16 %v22
  %v74 = vunpack.c.h.b16 %v22
  %v75 = vunpack.c.l.b16 %v23
  %v76 = vunpack.c.h.b16 %v23
  %v77 = vunpack.c.l.b16 %v24
  %v78 = vunpack.c.h.b16 %v24
  %v79 = vunpack.c.l.b16 %v25
  %v80 = vunpack.c.h.b16 %v25
  %v81 = vunpack.c.l.b16 %v26
  %v82 = vunpack.c.h.b16 %v26
  %v83 = vunpack.c.l.b16 %v27
  %v84 = vunpack.c.h.b16 %v27
  %v85 = vunpack.c.l.b16 %v28
  %v86 = vunpack.c.h.b16 %v28
  %v87 = vunpack.c.l.b16 %v29
  %v88 = vunpack.c.h.b16 %v29
  %v89 = vunpack.c.l.b16 %v30
  %v90 = vunpack.c.h.b16 %v30
  %v91 = vunpack.c.l.b16 %v31
  %v92 = vunpack.c.h.b16 %v31
  %v93 = vunpack.c.l.b16 %v32
  %v94 = vunpack.c.h.b16 %v32
  %v95 = vunpack.c.l.b16 %v33
  %v96 = vunpack.c.h.b16 %v33
  %v97 = vunpack.c.l.b16 %v34
  %v98 = vunpack.c.h.b16 %v34
  %v99 = vunpack.c.l.b16 %v35
  %v100 = vunpack.c.h.b16 %v35
  %v101 = vpack.c.b16 %v85, %v69
  %v102 = vpack.c.b16 %v86, %v70
  %v103 = vpack.c.b16 %v87, %v71
  %v104 = vpack.c.b16 %v88, %v72
  %v105 = vpack.c.b16 %v89, %v73
  %v106 = vpack.c.b16 %v90, %v74
  %v107 = vpack.c.b16 %v91, %v75
  %v108 = vpack.c.b16 %v92, %v76
  %v109 = vpack.c.b16 %v93, %v77
  %v110 = vpack.c.b16 %v94, %v78
  %v111 = vpack.c.b16 %v95, %v79
  %v112 = vpack.c.b16 %v96, %v80
  %v113 = vpack.c.b16 %v97, %v81
  %v114 = vpack.c.b16 %v98, %v82
  %v115 = vpack.c.b16 %v99, %v83
  %v116 = vpack.c.b16 %v100, %v84
  %vm133 = vcmask 130048
  %v135 = vsel %vm133, %v52, 0
  %137 = vmatprep.subr.bf16.mxu0 %v102
  %138 = vmatpush1.bf16.msra.mxu0 %v101
  %139 = vmatprep.subr.bf16.mxu0 0
  %140 = vmatpush1.bf16.msra.mxu0 0
  %141 = vmatprep.subr.bf16.mxu0 0
  %142 = vmatpush1.bf16.msra.mxu0 0
  %143 = vmatprep.subr.bf16.mxu0 0
  %144 = vmatpush1.bf16.msra.mxu0 0
  %145 = vmatprep.subr.bf16.mxu0 0
  %146 = vmatpush1.bf16.msra.mxu0 0
  %147 = vmatprep.subr.bf16.mxu0 0
  %148 = vmatpush1.bf16.msra.mxu0 0
  %149 = vmatprep.subr.bf16.mxu0 0
  %150 = vmatpush1.bf16.msra.mxu0 0
  %151 = vmatprep.subr.bf16.mxu0 0
  %152 = vmatpush1.bf16.msra.mxu0 0
  %153 = vmatprep.subr.bf16.mxu0 0
  %154 = vmatpush1.bf16.msra.mxu0 0
  %155 = vmatprep.subr.bf16.mxu0 0
  %156 = vmatpush1.bf16.msra.mxu0 0
  %157 = vmatprep.subr.bf16.mxu0 0
  %158 = vmatpush1.bf16.msra.mxu0 0
  %159 = vmatprep.subr.bf16.mxu0 0
  %160 = vmatpush1.bf16.msra.mxu0 0
  %161 = vmatprep.subr.bf16.mxu0 0
  %162 = vmatpush1.bf16.msra.mxu0 0
  %163 = vmatprep.subr.bf16.mxu0 0
  %164 = vmatpush1.bf16.msra.mxu0 0
  %165 = vmatprep.subr.bf16.mxu0 0
  %166 = vmatpush1.bf16.msra.mxu0 0
  %167 = vmatprep.subr.bf16.mxu0 0
  %168 = vmatpush1.bf16.msra.mxu0 0
  %169 = vmatprep.mubr.bf16.mxu0 0
  %170 = vmatmul.mubr.bf16.gmra.mrb[0].mxu0 %v135
  %v171 = vpop.f32.mrb[0].mxu0
  %v172 = vadd.f32 %v41, %v171
  %v173 = vpop.f32.mrb[0].mxu0
  %v174 = vadd.f32 %v41, %v173
  %v175 = vpop.f32.mrb[0].mxu0
  %v176 = vadd.f32 %v46, %v175
  %v177 = vpop.f32.mrb[0].mxu0
  %v178 = vadd.f32 %v46, %v177
  %179 = vdwg.mxu0
  %180 = vmatprep.subr.bf16.mxu0 %v104
  %181 = vmatpush1.bf16.msra.mxu0 %v103
  %182 = vmatprep.subr.bf16.mxu0 0
  %183 = vmatpush1.bf16.msra.mxu0 0
  %184 = vmatprep.subr.bf16.mxu0 0
  %185 = vmatpush1.bf16.msra.mxu0 0
  %186 = vmatprep.subr.bf16.mxu0 0
  %187 = vmatpush1.bf16.msra.mxu0 0
  %188 = vmatprep.subr.bf16.mxu0 0
  %189 = vmatpush1.bf16.msra.mxu0 0
  %190 = vmatprep.subr.bf16.mxu0 0
  %191 = vmatpush1.bf16.msra.mxu0 0
  %192 = vmatprep.subr.bf16.mxu0 0
  %193 = vmatpush1.bf16.msra.mxu0 0
  %194 = vmatprep.subr.bf16.mxu0 0
  %195 = vmatpush1.bf16.msra.mxu0 0
  %196 = vmatprep.subr.bf16.mxu0 0
  %197 = vmatpush1.bf16.msra.mxu0 0
  %198 = vmatprep.subr.bf16.mxu0 0
  %199 = vmatpush1.bf16.msra.mxu0 0
  %200 = vmatprep.subr.bf16.mxu0 0
  %201 = vmatpush1.bf16.msra.mxu0 0
  %202 = vmatprep.subr.bf16.mxu0 0
  %203 = vmatpush1.bf16.msra.mxu0 0
  %204 = vmatprep.subr.bf16.mxu0 0
  %205 = vmatpush1.bf16.msra.mxu0 0
  %206 = vmatprep.subr.bf16.mxu0 0
  %207 = vmatpush1.bf16.msra.mxu0 0
  %208 = vmatprep.subr.bf16.mxu0 0
  %209 = vmatpush1.bf16.msra.mxu0 0
  %210 = vmatprep.subr.bf16.mxu0 0
  %211 = vmatpush1.bf16.msra.mxu0 0
  %212 = vmatprep.mubr.bf16.mxu0 0
  %213 = vmatmul.mubr.bf16.gmra.mrb[0].mxu0 %v135
  %v214 = vpop.f32.mrb[0].mxu0
  %v215 = vadd.f32 %v41, %v214
  %v216 = vpop.f32.mrb[0].mxu0
  %v217 = vadd.f32 %v41, %v216
  %v218 = vpop.f32.mrb[0].mxu0
  %v219 = vadd.f32 %v46, %v218
  %v220 = vpop.f32.mrb[0].mxu0
  %v221 = vadd.f32 %v46, %v220
  %222 = vdwg.mxu0
  %223 = vmatprep.subr.bf16.mxu0 %v106
  %224 = vmatpush1.bf16.msra.mxu0 %v105
  %225 = vmatprep.subr.bf16.mxu0 0
  %226 = vmatpush1.bf16.msra.mxu0 0
  %227 = vmatprep.subr.bf16.mxu0 0
  %228 = vmatpush1.bf16.msra.mxu0 0
  %229 = vmatprep.subr.bf16.mxu0 0
  %230 = vmatpush1.bf16.msra.mxu0 0
  %231 = vmatprep.subr.bf16.mxu0 0
  %232 = vmatpush1.bf16.msra.mxu0 0
  %233 = vmatprep.subr.bf16.mxu0 0
  %234 = vmatpush1.bf16.msra.mxu0 0
  %235 = vmatprep.subr.bf16.mxu0 0
  %236 = vmatpush1.bf16.msra.mxu0 0
  %237 = vmatprep.subr.bf16.mxu0 0
  %238 = vmatpush1.bf16.msra.mxu0 0
  %239 = vmatprep.subr.bf16.mxu0 0
  %240 = vmatpush1.bf16.msra.mxu0 0
  %241 = vmatprep.subr.bf16.mxu0 0
  %242 = vmatpush1.bf16.msra.mxu0 0
  %243 = vmatprep.subr.bf16.mxu0 0
  %244 = vmatpush1.bf16.msra.mxu0 0
  %245 = vmatprep.subr.bf16.mxu0 0
  %246 = vmatpush1.bf16.msra.mxu0 0
  %247 = vmatprep.subr.bf16.mxu0 0
  %248 = vmatpush1.bf16.msra.mxu0 0
  %249 = vmatprep.subr.bf16.mxu0 0
  %250 = vmatpush1.bf16.msra.mxu0 0
  %251 = vmatprep.subr.bf16.mxu0 0
  %252 = vmatpush1.bf16.msra.mxu0 0
  %253 = vmatprep.subr.bf16.mxu0 0
  %254 = vmatpush1.bf16.msra.mxu0 0
  %255 = vmatprep.mubr.bf16.mxu0 0
  %256 = vmatmul.mubr.bf16.gmra.mrb[0].mxu0 %v135
  %v257 = vpop.f32.mrb[0].mxu0
  %v258 = vadd.f32 %v41, %v257
  %v259 = vpop.f32.mrb[0].mxu0
  %v260 = vadd.f32 %v41, %v259
  %v261 = vpop.f32.mrb[0].mxu0
  %v262 = vadd.f32 %v46, %v261
  %v263 = vpop.f32.mrb[0].mxu0
  %v264 = vadd.f32 %v46, %v263
  %265 = vdwg.mxu0
  %266 = vmatprep.subr.bf16.mxu0 %v108
  %267 = vmatpush1.bf16.msra.mxu0 %v107
  %268 = vmatprep.subr.bf16.mxu0 0
  %269 = vmatpush1.bf16.msra.mxu0 0
  %270 = vmatprep.subr.bf16.mxu0 0
  %271 = vmatpush1.bf16.msra.mxu0 0
  %272 = vmatprep.subr.bf16.mxu0 0
  %273 = vmatpush1.bf16.msra.mxu0 0
  %274 = vmatprep.subr.bf16.mxu0 0
  %275 = vmatpush1.bf16.msra.mxu0 0
  %276 = vmatprep.subr.bf16.mxu0 0
  %277 = vmatpush1.bf16.msra.mxu0 0
  %278 = vmatprep.subr.bf16.mxu0 0
  %279 = vmatpush1.bf16.msra.mxu0 0
  %280 = vmatprep.subr.bf16.mxu0 0
  %281 = vmatpush1.bf16.msra.mxu0 0
  %282 = vmatprep.subr.bf16.mxu0 0
  %283 = vmatpush1.bf16.msra.mxu0 0
  %284 = vmatprep.subr.bf16.mxu0 0
  %285 = vmatpush1.bf16.msra.mxu0 0
  %286 = vmatprep.subr.bf16.mxu0 0
  %287 = vmatpush1.bf16.msra.mxu0 0
  %288 = vmatprep.subr.bf16.mxu0 0
  %289 = vmatpush1.bf16.msra.mxu0 0
  %290 = vmatprep.subr.bf16.mxu0 0
  %291 = vmatpush1.bf16.msra.mxu0 0
  %292 = vmatprep.subr.bf16.mxu0 0
  %293 = vmatpush1.bf16.msra.mxu0 0
  %294 = vmatprep.subr.bf16.mxu0 0
  %295 = vmatpush1.bf16.msra.mxu0 0
  %296 = vmatprep.subr.bf16.mxu0 0
  %297 = vmatpush1.bf16.msra.mxu0 0
  %298 = vmatprep.mubr.bf16.mxu0 0
  %299 = vmatmul.mubr.bf16.gmra.mrb[0].mxu0 %v135
  %v300 = vpop.f32.mrb[0].mxu0
  %v301 = vadd.f32 %v41, %v300
  %v302 = vpop.f32.mrb[0].mxu0
  %v303 = vadd.f32 %v41, %v302
  %v304 = vpop.f32.mrb[0].mxu0
  %v305 = vadd.f32 %v46, %v304
  %v306 = vpop.f32.mrb[0].mxu0
  %v307 = vadd.f32 %v46, %v306
  %308 = vdwg.mxu0
  %309 = vmatprep.subr.bf16.mxu0 %v110
  %310 = vmatpush1.bf16.msra.mxu0 %v109
  %311 = vmatprep.subr.bf16.mxu0 0
  %312 = vmatpush1.bf16.msra.mxu0 0
  %313 = vmatprep.subr.bf16.mxu0 0
  %314 = vmatpush1.bf16.msra.mxu0 0
  %315 = vmatprep.subr.bf16.mxu0 0
  %316 = vmatpush1.bf16.msra.mxu0 0
  %317 = vmatprep.subr.bf16.mxu0 0
  %318 = vmatpush1.bf16.msra.mxu0 0
  %319 = vmatprep.subr.bf16.mxu0 0
  %320 = vmatpush1.bf16.msra.mxu0 0
  %321 = vmatprep.subr.bf16.mxu0 0
  %322 = vmatpush1.bf16.msra.mxu0 0
  %323 = vmatprep.subr.bf16.mxu0 0
  %324 = vmatpush1.bf16.msra.mxu0 0
  %325 = vmatprep.subr.bf16.mxu0 0
  %326 = vmatpush1.bf16.msra.mxu0 0
  %327 = vmatprep.subr.bf16.mxu0 0
  %328 = vmatpush1.bf16.msra.mxu0 0
  %329 = vmatprep.subr.bf16.mxu0 0
  %330 = vmatpush1.bf16.msra.mxu0 0
  %331 = vmatprep.subr.bf16.mxu0 0
  %332 = vmatpush1.bf16.msra.mxu0 0
  %333 = vmatprep.subr.bf16.mxu0 0
  %334 = vmatpush1.bf16.msra.mxu0 0
  %335 = vmatprep.subr.bf16.mxu0 0
  %336 = vmatpush1.bf16.msra.mxu0 0
  %337 = vmatprep.subr.bf16.mxu0 0
  %338 = vmatpush1.bf16.msra.mxu0 0
  %339 = vmatprep.subr.bf16.mxu0 0
  %340 = vmatpush1.bf16.msra.mxu0 0
  %341 = vmatprep.mubr.bf16.mxu0 0
  %342 = vmatmul.mubr.bf16.gmra.mrb[0].mxu0 %v135
  %v343 = vpop.f32.mrb[0].mxu0
  %v344 = vadd.f32 %v41, %v343
  %v345 = vpop.f32.mrb[0].mxu0
  %v346 = vadd.f32 %v41, %v345
  %v347 = vpop.f32.mrb[0].mxu0
  %v348 = vadd.f32 %v46, %v347
  %v349 = vpop.f32.mrb[0].mxu0
  %v350 = vadd.f32 %v46, %v349
  %351 = vdwg.mxu0
  %352 = vmatprep.subr.bf16.mxu0 %v112
  %353 = vmatpush1.bf16.msra.mxu0 %v111
  %354 = vmatprep.subr.bf16.mxu0 0
  %355 = vmatpush1.bf16.msra.mxu0 0
  %356 = vmatprep.subr.bf16.mxu0 0
  %357 = vmatpush1.bf16.msra.mxu0 0
  %358 = vmatprep.subr.bf16.mxu0 0
  %359 = vmatpush1.bf16.msra.mxu0 0
  %360 = vmatprep.subr.bf16.mxu0 0
  %361 = vmatpush1.bf16.msra.mxu0 0
  %362 = vmatprep.subr.bf16.mxu0 0
  %363 = vmatpush1.bf16.msra.mxu0 0
  %364 = vmatprep.subr.bf16.mxu0 0
  %365 = vmatpush1.bf16.msra.mxu0 0
  %366 = vmatprep.subr.bf16.mxu0 0
  %367 = vmatpush1.bf16.msra.mxu0 0
  %368 = vmatprep.subr.bf16.mxu0 0
  %369 = vmatpush1.bf16.msra.mxu0 0
  %370 = vmatprep.subr.bf16.mxu0 0
  %371 = vmatpush1.bf16.msra.mxu0 0
  %372 = vmatprep.subr.bf16.mxu0 0
  %373 = vmatpush1.bf16.msra.mxu0 0
  %374 = vmatprep.subr.bf16.mxu0 0
  %375 = vmatpush1.bf16.msra.mxu0 0
  %376 = vmatprep.subr.bf16.mxu0 0
  %377 = vmatpush1.bf16.msra.mxu0 0
  %378 = vmatprep.subr.bf16.mxu0 0
  %379 = vmatpush1.bf16.msra.mxu0 0
  %380 = vmatprep.subr.bf16.mxu0 0
  %381 = vmatpush1.bf16.msra.mxu0 0
  %382 = vmatprep.subr.bf16.mxu0 0
  %383 = vmatpush1.bf16.msra.mxu0 0
  %384 = vmatprep.mubr.bf16.mxu0 0
  %385 = vmatmul.mubr.bf16.gmra.mrb[0].mxu0 %v135
  %v386 = vpop.f32.mrb[0].mxu0
  %v387 = vadd.f32 %v41, %v386
  %v388 = vpop.f32.mrb[0].mxu0
  %v389 = vadd.f32 %v41, %v388
  %v390 = vpop.f32.mrb[0].mxu0
  %v391 = vadd.f32 %v46, %v390
  %v392 = vpop.f32.mrb[0].mxu0
  %v393 = vadd.f32 %v46, %v392
  %394 = vdwg.mxu0
  %395 = vmatprep.subr.bf16.mxu0 %v114
  %396 = vmatpush1.bf16.msra.mxu0 %v113
  %397 = vmatprep.subr.bf16.mxu0 0
  %398 = vmatpush1.bf16.msra.mxu0 0
  %399 = vmatprep.subr.bf16.mxu0 0
  %400 = vmatpush1.bf16.msra.mxu0 0
  %401 = vmatprep.subr.bf16.mxu0 0
  %402 = vmatpush1.bf16.msra.mxu0 0
  %403 = vmatprep.subr.bf16.mxu0 0
  %404 = vmatpush1.bf16.msra.mxu0 0
  %405 = vmatprep.subr.bf16.mxu0 0
  %406 = vmatpush1.bf16.msra.mxu0 0
  %407 = vmatprep.subr.bf16.mxu0 0
  %408 = vmatpush1.bf16.msra.mxu0 0
  %409 = vmatprep.subr.bf16.mxu0 0
  %410 = vmatpush1.bf16.msra.mxu0 0
  %411 = vmatprep.subr.bf16.mxu0 0
  %412 = vmatpush1.bf16.msra.mxu0 0
  %413 = vmatprep.subr.bf16.mxu0 0
  %414 = vmatpush1.bf16.msra.mxu0 0
  %415 = vmatprep.subr.bf16.mxu0 0
  %416 = vmatpush1.bf16.msra.mxu0 0
  %417 = vmatprep.subr.bf16.mxu0 0
  %418 = vmatpush1.bf16.msra.mxu0 0
  %419 = vmatprep.subr.bf16.mxu0 0
  %420 = vmatpush1.bf16.msra.mxu0 0
  %421 = vmatprep.subr.bf16.mxu0 0
  %422 = vmatpush1.bf16.msra.mxu0 0
  %423 = vmatprep.subr.bf16.mxu0 0
  %424 = vmatpush1.bf16.msra.mxu0 0
  %425 = vmatprep.subr.bf16.mxu0 0
  %426 = vmatpush1.bf16.msra.mxu0 0
  %427 = vmatprep.mubr.bf16.mxu0 0
  %428 = vmatmul.mubr.bf16.gmra.mrb[0].mxu0 %v135
  %v429 = vpop.f32.mrb[0].mxu0
  %v430 = vadd.f32 %v41, %v429
  %v431 = vpop.f32.mrb[0].mxu0
  %v432 = vadd.f32 %v41, %v431
  %v433 = vpop.f32.mrb[0].mxu0
  %v434 = vadd.f32 %v46, %v433
  %v435 = vpop.f32.mrb[0].mxu0
  %v436 = vadd.f32 %v46, %v435
  %437 = vdwg.mxu0
  %438 = vmatprep.subr.bf16.mxu0 %v116
  %439 = vmatpush1.bf16.msra.mxu0 %v115
  %440 = vmatprep.subr.bf16.mxu0 0
  %441 = vmatpush1.bf16.msra.mxu0 0
  %442 = vmatprep.subr.bf16.mxu0 0
  %443 = vmatpush1.bf16.msra.mxu0 0
  %444 = vmatprep.subr.bf16.mxu0 0
  %445 = vmatpush1.bf16.msra.mxu0 0
  %446 = vmatprep.subr.bf16.mxu0 0
  %447 = vmatpush1.bf16.msra.mxu0 0
  %448 = vmatprep.subr.bf16.mxu0 0
  %449 = vmatpush1.bf16.msra.mxu0 0
  %450 = vmatprep.subr.bf16.mxu0 0
  %451 = vmatpush1.bf16.msra.mxu0 0
  %452 = vmatprep.subr.bf16.mxu0 0
  %453 = vmatpush1.bf16.msra.mxu0 0
  %454 = vmatprep.subr.bf16.mxu0 0
  %455 = vmatpush1.bf16.msra.mxu0 0
  %456 = vmatprep.subr.bf16.mxu0 0
  %457 = vmatpush1.bf16.msra.mxu0 0
  %458 = vmatprep.subr.bf16.mxu0 0
  %459 = vmatpush1.bf16.msra.mxu0 0
  %460 = vmatprep.subr.bf16.mxu0 0
  %461 = vmatpush1.bf16.msra.mxu0 0
  %462 = vmatprep.subr.bf16.mxu0 0
  %463 = vmatpush1.bf16.msra.mxu0 0
  %464 = vmatprep.subr.bf16.mxu0 0
  %465 = vmatpush1.bf16.msra.mxu0 0
  %466 = vmatprep.subr.bf16.mxu0 0
  %467 = vmatpush1.bf16.msra.mxu0 0
  %468 = vmatprep.subr.bf16.mxu0 0
  %469 = vmatpush1.bf16.msra.mxu0 0
  %470 = vmatprep.mubr.bf16.mxu0 0
  %471 = vmatmul.mubr.bf16.gmra.mrb[0].mxu0 %v135
  %v472 = vpop.f32.mrb[0].mxu0
  %v473 = vadd.f32 %v41, %v472
  %v474 = vpop.f32.mrb[0].mxu0
  %v475 = vadd.f32 %v41, %v474
  %v476 = vpop.f32.mrb[0].mxu0
  %v477 = vadd.f32 %v46, %v476
  %v478 = vpop.f32.mrb[0].mxu0
  %v479 = vadd.f32 %v46, %v478
  %480 = vdwg.mxu0
  %v481 = vld [vmem:[%s3] sm:$0xff]
  %v482 = vld [vmem:[%s3 + $0x8] sm:$0xff]
  %v483 = vld [vmem:[%s3 + $0x10] sm:$0xff]
  %v484 = vld [vmem:[%s3 + $0x18] sm:$0xff]
  %v485 = vld [vmem:[%s3 + $0x20] sm:$0xff]
  %v486 = vld [vmem:[%s3 + $0x28] sm:$0xff]
  %v487 = vld [vmem:[%s3 + $0x30] sm:$0xff]
  %v488 = vld [vmem:[%s3 + $0x38] sm:$0xff]
  %v489 = vld [vmem:[%s3 + $0x40] sm:$0xff]
  %v490 = vld [vmem:[%s3 + $0x48] sm:$0xff]
  %v491 = vld [vmem:[%s3 + $0x50] sm:$0xff]
  %v492 = vld [vmem:[%s3 + $0x58] sm:$0xff]
  %v493 = vld [vmem:[%s3 + $0x60] sm:$0xff]
  %v494 = vld [vmem:[%s3 + $0x68] sm:$0xff]
  %v495 = vld [vmem:[%s3 + $0x70] sm:$0xff]
  %v496 = vld [vmem:[%s3 + $0x78] sm:$0xff]
  %v497 = vld [vmem:[%s3 + $0x80] sm:$0xff]
  %v498 = vld [vmem:[%s3 + $0x88] sm:$0xff]
  %v499 = vld [vmem:[%s3 + $0x90] sm:$0xff]
  %v500 = vld [vmem:[%s3 + $0x98] sm:$0xff]
  %v501 = vld [vmem:[%s3 + $0xa0] sm:$0xff]
  %v502 = vld [vmem:[%s3 + $0xa8] sm:$0xff]
  %v503 = vld [vmem:[%s3 + $0xb0] sm:$0xff]
  %v504 = vld [vmem:[%s3 + $0xb8] sm:$0xff]
  %v505 = vld [vmem:[%s3 + $0xc0] sm:$0xff]
  %v506 = vld [vmem:[%s3 + $0xc8] sm:$0xff]
  %v507 = vld [vmem:[%s3 + $0xd0] sm:$0xff]
  %v508 = vld [vmem:[%s3 + $0xd8] sm:$0xff]
  %v509 = vld [vmem:[%s3 + $0xe0] sm:$0xff]
  %v510 = vld [vmem:[%s3 + $0xe8] sm:$0xff]
  %v511 = vld [vmem:[%s3 + $0xf0] sm:$0xff]
  %v512 = vld [vmem:[%s3 + $0xf8] sm:$0xff]
  %v513 = vadd.f32 %v172, %v481
  %v514 = vadd.f32 %v174, %v482
  %v515 = vadd.f32 %v215, %v483
  %v516 = vadd.f32 %v217, %v484
  %v517 = vadd.f32 %v258, %v485
  %v518 = vadd.f32 %v260, %v486
  %v519 = vadd.f32 %v301, %v487
  %v520 = vadd.f32 %v303, %v488
  %v521 = vadd.f32 %v344, %v489
  %v522 = vadd.f32 %v346, %v490
  %v523 = vadd.f32 %v387, %v491
  %v524 = vadd.f32 %v389, %v492
  %v525 = vadd.f32 %v430, %v493
  %v526 = vadd.f32 %v432, %v494
  %v527 = vadd.f32 %v473, %v495
  %v528 = vadd.f32 %v475, %v496
  %v529 = vadd.f32 %v176, %v497
  %v530 = vadd.f32 %v178, %v498
  %v531 = vadd.f32 %v219, %v499
  %v532 = vadd.f32 %v221, %v500
  %v533 = vadd.f32 %v262, %v501
  %v534 = vadd.f32 %v264, %v502
  %v535 = vadd.f32 %v305, %v503
  %v536 = vadd.f32 %v307, %v504
  %v537 = vadd.f32 %v348, %v505
  %v538 = vadd.f32 %v350, %v506
  %v539 = vadd.f32 %v391, %v507
  %v540 = vadd.f32 %v393, %v508
  %v541 = vadd.f32 %v434, %v509
  %v542 = vadd.f32 %v436, %v510
  %v543 = vadd.f32 %v477, %v511
  %v544 = vadd.f32 %v479, %v512
  %v545 = vmax.f32 %v513, 0.0
  %v546 = vmax.f32 %v514, 0.0
  %v547 = vmax.f32 %v515, 0.0
  %v548 = vmax.f32 %v516, 0.0
  %v549 = vmax.f32 %v517, 0.0
  %v550 = vmax.f32 %v518, 0.0
  %v551 = vmax.f32 %v519, 0.0
  %v552 = vmax.f32 %v520, 0.0
  %v553 = vmax.f32 %v521, 0.0
  %v554 = vmax.f32 %v522, 0.0
  %v555 = vmax.f32 %v523, 0.0
  %v556 = vmax.f32 %v524, 0.0
  %v557 = vmax.f32 %v525, 0.0
  %v558 = vmax.f32 %v526, 0.0
  %v559 = vmax.f32 %v527, 0.0
  %v560 = vmax.f32 %v528, 0.0
  %v561 = vmax.f32 %v529, 0.0
  %v562 = vmax.f32 %v530, 0.0
  %v563 = vmax.f32 %v531, 0.0
  %v564 = vmax.f32 %v532, 0.0
  %v565 = vmax.f32 %v533, 0.0
  %v566 = vmax.f32 %v534, 0.0
  %v567 = vmax.f32 %v535, 0.0
  %v568 = vmax.f32 %v536, 0.0
  %v569 = vmax.f32 %v537, 0.0
  %v570 = vmax.f32 %v538, 0.0
  %v571 = vmax.f32 %v539, 0.0
  %v572 = vmax.f32 %v540, 0.0
  %v573 = vmax.f32 %v541, 0.0
  %v574 = vmax.f32 %v542, 0.0
  %v575 = vmax.f32 %v543, 0.0
  %v576 = vmax.f32 %v544, 0.0
  %577 = vst [vmem:[%s4] sm:$0xff] %v545
  %578 = vst [vmem:[%s4 + $0x8] sm:$0xff] %v546
  %579 = vst [vmem:[%s4 + $0x10] sm:$0xff] %v547
  %580 = vst [vmem:[%s4 + $0x18] sm:$0xff] %v548
  %581 = vst [vmem:[%s4 + $0x20] sm:$0xff] %v549
  %582 = vst [vmem:[%s4 + $0x28] sm:$0xff] %v550
  %583 = vst [vmem:[%s4 + $0x30] sm:$0xff] %v551
  %584 = vst [vmem:[%s4 + $0x38] sm:$0xff] %v552
  %585 = vst [vmem:[%s4 + $0x40] sm:$0xff] %v553
  %586 = vst [vmem:[%s4 + $0x48] sm:$0xff] %v554
  %587 = vst [vmem:[%s4 + $0x50] sm:$0xff] %v555
  %588 = vst [vmem:[%s4 + $0x58] sm:$0xff] %v556
  %589 = vst [vmem:[%s4 + $0x60] sm:$0xff] %v557
  %590 = vst [vmem:[%s4 + $0x68] sm:$0xff] %v558
  %591 = vst [vmem:[%s4 + $0x70] sm:$0xff] %v559
  %592 = vst [vmem:[%s4 + $0x78] sm:$0xff] %v560
  %593 = vst [vmem:[%s4 + $0x80] sm:$0xff] %v561
  %594 = vst [vmem:[%s4 + $0x88] sm:$0xff] %v562
  %595 = vst [vmem:[%s4 + $0x90] sm:$0xff] %v563
  %596 = vst [vmem:[%s4 + $0x98] sm:$0xff] %v564
  %597 = vst [vmem:[%s4 + $0xa0] sm:$0xff] %v565
  %598 = vst [vmem:[%s4 + $0xa8] sm:$0xff] %v566
  %599 = vst [vmem:[%s4 + $0xb0] sm:$0xff] %v567
  %600 = vst [vmem:[%s4 + $0xb8] sm:$0xff] %v568
  %601 = vst [vmem:[%s4 + $0xc0] sm:$0xff] %v569
  %602 = vst [vmem:[%s4 + $0xc8] sm:$0xff] %v570
  %603 = vst [vmem:[%s4 + $0xd0] sm:$0xff] %v571
  %604 = vst [vmem:[%s4 + $0xd8] sm:$0xff] %v572
  %605 = vst [vmem:[%s4 + $0xe0] sm:$0xff] %v573
  %606 = vst [vmem:[%s4 + $0xe8] sm:$0xff] %v574
  %607 = vst [vmem:[%s4 + $0xf0] sm:$0xff] %v575
  %608 = vst [vmem:[%s4 + $0xf8] sm:$0xff] %v576
  // Predicated region
  $region18: #{_lambda_.7} parent=0 // pred_check
    _
  $region19: #{_lambda_.7} parent=0 // pred_check_branch
    %610 = sbr.rel (0) target = $region21
  $region20: #{_lambda_.7} parent=0 // pred_region
    _
  $region21: #{_lambda_.7} parent=0 // pred_fallthru
    _
  // Predicated region
  $region22: #{_lambda_.7} parent=0 // pred_check
    _
  $region23: #{_lambda_.7} parent=0 // pred_check_branch
    %612 = sbr.rel (0) target = $region25
  $region24: #{_lambda_.7} parent=0 // pred_region
    _
  $region25: #{_lambda_.7} parent=0 // pred_fallthru
    _

</llo_original>
